<compile_context>
chip_gen: v7x
topology: tpu7x:2x2x1
jax: 0.10.0
libtpu: 0.0.40
codegen_flags: <defaults>
</compile_context>

<pallas_src>
import functools

import numpy as np
import jax
import jax.numpy as jnp
from jax.experimental import pallas as pl
from jax.experimental.pallas import tpu as pltpu


# ---------------- fused Pallas kernel ----------------

def _fused_forward_kernel(a_ref, x_ref,
                          c1w, c1b, c2w, c2b, c3w, c3b,
                          lw, lb,
                          h1w, h1wa, h1b,
                          h2w, h2b,
                          h3w, h3b,
                          o_ref):
    """Whole BoostrappedDQN forward for a small batch, VMEM-resident.

    a_ref : (B, 1) f32 in SMEM (per-sample scalar appended to features)
    x_ref : (B, H, W*Cin) f32 -- NHWC rows flattened along lanes
    cKw   : (2, Win*Cin, Wout*Cout) banded conv weights (one slab per row shift)
    cKb   : (1, Wout*Cout) bias rows
    lw    : (Hout3, Wout3*C3, F) feature-linear weights, reordered at init
    lb    : (1, F)
    h1w   : (F, nheads*Hd)    h1wa/h1b : (1, nheads*Hd)
    h2w   : (nheads*Hd, nheads*Hd) block-diagonal   h2b : (1, nheads*Hd)
    h3w   : (nheads*Hd, 128) block-structured, lane-padded   h3b : (1, 128)
    o_ref : (B, 128) f32 (columns k*A+a hold head k / action a; rest zero-pad)
    """
    B = x_ref.shape[0]

    def conv_relu(x2d, w_ref, b_ref):
        # x2d: (Hin, Win*Cin); 2x2 / stride-1 valid conv as 2 row-shifted matmuls.
        Ho = x2d.shape[0] - 1
        acc = jnp.dot(x2d[0:Ho, :], w_ref[0], preferred_element_type=jnp.float32)
        acc = acc + jnp.dot(x2d[1:Ho + 1, :], w_ref[1],
                            preferred_element_type=jnp.float32)
        return jnp.maximum(acc + b_ref[...], 0.0)        # (Ho, Wo*Cout)

    for b in range(B):                                   # tiny static unroll
        y = x_ref[b]                                     # (H, W*Cin)
        y = conv_relu(y, c1w, c1b)
        y = conv_relu(y, c2w, c2b)
        y = conv_relu(y, c3w, c3b)                       # (Ho3, Wo3*C3)

        # feature Linear + ReLU (flatten folded into the weight layout)
        feat = lb[...]                                   # (1, F)
        for h in range(lw.shape[0]):
            feat = feat + jnp.dot(y[h:h + 1, :], lw[h],
                                  preferred_element_type=jnp.float32)
        feat = jnp.maximum(feat, 0.0)                    # (1, F)

        # all heads at once; `a` handled as rank-1 extra bias (avoids K=F+1)
        a_b = a_ref[b, 0]
        z = jnp.dot(feat, h1w[...], preferred_element_type=jnp.float32)
        z = jnp.maximum(z + a_b * h1wa[...] + h1b[...], 0.0)     # (1, nheads*Hd)
        z = jnp.dot(z, h2w[...], preferred_element_type=jnp.float32) + h2b[...]
        z = jnp.maximum(z, 0.0)                                  # (1, nheads*Hd)
        z = jnp.dot(z, h3w[...], preferred_element_type=jnp.float32) + h3b[...]
        o_ref[pl.ds(b, 1), :] = z.astype(o_ref.dtype)            # (1, 128)


@functools.partial(jax.jit, static_argnames=("nheads", "action_dim"))
def bootstrapped_dqn_forward(kp, x_nchw, a, *, nheads, action_dim):
    """x_nchw: (B, C, H, W); a: (B, 1). Returns stacked (nheads, B, action_dim)."""
    B, C, H, W = x_nchw.shape
    # layout glue only (zero FLOPs), fused into the jitted XLA program
    x2d = jnp.transpose(x_nchw, (0, 2, 3, 1)).reshape(B, H, W * C)

    n_out = kp["h3_w"].shape[1]                          # lane-padded (>=128)
    out = pl.pallas_call(
        _fused_forward_kernel,
        out_shape=jax.ShapeDtypeStruct((B, n_out), jnp.float32),
        in_specs=(
            [pl.BlockSpec(memory_space=pltpu.MemorySpace.SMEM)]      # a
            + [pl.BlockSpec(memory_space=pltpu.MemorySpace.VMEM)] * 16
        ),
        out_specs=pl.BlockSpec(memory_space=pltpu.MemorySpace.VMEM),
    )(a, x2d,
      kp["c1_w"], kp["c1_b"], kp["c2_w"], kp["c2_b"], kp["c3_w"], kp["c3_b"],
      kp["lin_w"], kp["lin_b"],
      kp["h1_w"], kp["h1_wa"], kp["h1_b"],
      kp["h2_w"], kp["h2_b"],
      kp["h3_w"], kp["h3_b"])

    q = out[:, :nheads * action_dim].reshape(B, nheads, action_dim)
    return jnp.transpose(q, (1, 0, 2))                   # (nheads, B, action_dim)


# ---------------- one-time weight re-layout (host side) ----------------

def prepare_kernel_params(p, obs_shape, out_pad=128):
    """Convert PyTorch-layout params into the fused-kernel layouts (done once)."""
    C, H, W = obs_shape
    feature_dim = int(p["lin_w"].shape[0])
    nheads, hidden = int(p["head_w1"].shape[0]), int(p["head_w1"].shape[1])
    action_dim = int(p["head_w3"].shape[1])

    def banded(w_oihw, Win):
        w = np.asarray(w_oihw, np.float32)               # (Cout, Cin, 2, 2)
        Cout, Cin, KH, KW = w.shape
        Wo = Win - KW + 1
        M = np.zeros((KH, Win * Cin, Wo * Cout), np.float32)
        for di in range(KH):
            for j in range(Wo):
                for dj in range(KW):
                    M[di, (j + dj) * Cin:(j + dj + 1) * Cin,
                          j * Cout:(j + 1) * Cout] = w[:, :, di, dj].T
        return M

    def bias_row(b, Wo):
        return np.tile(np.asarray(b, np.float32), Wo)[None, :]

    W1o, W2o, W3o = W - 1, W - 2, W - 3
    H3o = H - 3
    C3 = int(p["conv3_w"].shape[0])

    kp = {}
    kp["c1_w"], kp["c1_b"] = banded(p["conv1_w"], W), bias_row(p["conv1_b"], W1o)
    kp["c2_w"], kp["c2_b"] = banded(p["conv2_w"], W1o), bias_row(p["conv2_b"], W2o)
    kp["c3_w"], kp["c3_b"] = banded(p["conv3_w"], W2o), bias_row(p["conv3_b"], W3o)

    # feature Linear: PyTorch weight (F, C3*H3o*W3o) consumes NCHW-flatten order;
    # reorder rows so it consumes our (h, w*C3 + c) activation layout directly.
    lw = np.asarray(p["lin_w"], np.float32).T.reshape(C3, H3o, W3o, feature_dim)
    kp["lin_w"] = np.ascontiguousarray(
        np.transpose(lw, (1, 2, 0, 3))).reshape(H3o, W3o * C3, feature_dim)
    kp["lin_b"] = np.asarray(p["lin_b"], np.float32)[None, :]

    # heads layer 1: concatenate all heads along output lanes; split off the
    # weight column that multiplies `a` (rank-1 term).
    w1 = np.asarray(p["head_w1"], np.float32)            # (nh, Hd, F+1)
    kp["h1_w"] = np.concatenate([w1[k, :, :feature_dim].T for k in range(nheads)],
                                axis=1)                   # (F, nh*Hd)
    kp["h1_wa"] = np.concatenate([w1[k, :, feature_dim] for k in range(nheads)])[None, :]
    kp["h1_b"] = np.asarray(p["head_b1"], np.float32).reshape(1, nheads * hidden)

    # heads layer 2: block-diagonal
    w2 = np.asarray(p["head_w2"], np.float32)
    bd = np.zeros((nheads * hidden, nheads * hidden), np.float32)
    for k in range(nheads):
        bd[k * hidden:(k + 1) * hidden, k * hidden:(k + 1) * hidden] = w2[k].T
    kp["h2_w"] = bd
    kp["h2_b"] = np.asarray(p["head_b2"], np.float32).reshape(1, nheads * hidden)

    # heads layer 3: block-structured, lane-padded output columns
    w3 = np.asarray(p["head_w3"], np.float32)
    ncols = max(out_pad, nheads * action_dim)
    w3m = np.zeros((nheads * hidden, ncols), np.float32)
    b3m = np.zeros((1, ncols), np.float32)
    for k in range(nheads):
        w3m[k * hidden:(k + 1) * hidden, k * action_dim:(k + 1) * action_dim] = w3[k].T
        b3m[0, k * action_dim:(k + 1) * action_dim] = np.asarray(p["head_b3"])[k]
    kp["h3_w"], kp["h3_b"] = w3m, b3m

    return {k: jnp.asarray(v, jnp.float32) for k, v in kp.items()}


# ---------------- deterministic PyTorch-layout parameter init ----------------

def init_params_pt(key, obs_shape, action_dim, nheads, feature_dim=128, hidden_dim=64):
    C, H, W = obs_shape
    ks = jax.random.split(key, 14)

    def u(k, shape, fan_in):
        bound = 1.0 / jnp.sqrt(jnp.float32(fan_in))
        return jax.random.uniform(k, shape, jnp.float32, -bound, bound)

    p = {}
    p["conv1_w"] = u(ks[0], (16, C, 2, 2), C * 4);    p["conv1_b"] = u(ks[1], (16,), C * 4)
    p["conv2_w"] = u(ks[2], (32, 16, 2, 2), 64);      p["conv2_b"] = u(ks[3], (32,), 64)
    p["conv3_w"] = u(ks[4], (64, 32, 2, 2), 128);     p["conv3_b"] = u(ks[5], (64,), 128)
    n_flat = 64 * (H - 3) * (W - 3)
    p["lin_w"] = u(ks[6], (feature_dim, n_flat), n_flat)          # PyTorch (out, in)
    p["lin_b"] = u(ks[7], (feature_dim,), n_flat)
    fin = feature_dim + 1
    p["head_w1"] = u(ks[8], (nheads, hidden_dim, fin), fin)
    p["head_b1"] = u(ks[9], (nheads, hidden_dim), fin)
    p["head_w2"] = u(ks[10], (nheads, hidden_dim, hidden_dim), hidden_dim)
    p["head_b2"] = u(ks[11], (nheads, hidden_dim), hidden_dim)
    p["head_w3"] = u(ks[12], (nheads, action_dim, hidden_dim), hidden_dim)
    p["head_b3"] = u(ks[13], (nheads, action_dim), hidden_dim)
    return p


# ---------------- pure-JAX reference (PyTorch semantics) ----------------

def reference_forward(p, x_nchw, a, nheads):
    x = jnp.transpose(x_nchw, (0, 2, 3, 1))

    def conv_relu(x, w, b):
        Cout, Cin, KH, KW = w.shape
        B, H, W, C = x.shape
        Ho, Wo = H - KH + 1, W - KW + 1
        cols = [x[:, di:di + Ho, dj:dj + Wo, :] for di in range(KH) for dj in range(KW)]
        pcols = jnp.stack(cols, axis=3).reshape(B * Ho * Wo, KH * KW * C)
        wm = jnp.transpose(w, (2, 3, 1, 0)).reshape(KH * KW * Cin, Cout)
        return jnp.maximum(pcols @ wm + b, 0.0).reshape(B, Ho, Wo, Cout)

    x = conv_relu(x, p["conv1_w"], p["conv1_b"])
    x = conv_relu(x, p["conv2_w"], p["conv2_b"])
    x = conv_relu(x, p["conv3_w"], p["conv3_b"])
    B = x.shape[0]
    flat = jnp.transpose(x, (0, 3, 1, 2)).reshape(B, -1)          # PyTorch Flatten order
    feat = jnp.maximum(flat @ p["lin_w"].T + p["lin_b"], 0.0)
    fa = jnp.concatenate([feat, a], axis=1)
    outs = []
    for k in range(nheads):
        h = jnp.maximum(fa @ p["head_w1"][k].T + p["head_b1"][k], 0.0)
        h = jnp.maximum(h @ p["head_w2"][k].T + p["head_b2"][k], 0.0)
        outs.append(h @ p["head_w3"][k].T + p["head_b3"][k])
    return jnp.stack(outs, axis=0)                                # (nheads, B, A)


if __name__ == "__main__":
    key = jax.random.PRNGKey(0)
    kx, ka, kparam = jax.random.split(key, 3)

    obs_shape = (3, 7, 7)            # (C, H, W) minigrid-like observation
    B, action_dim, nheads = 2, 6, 4

    x = jax.random.normal(kx, (B,) + obs_shape, jnp.float32)      # NCHW input
    a = jax.random.normal(ka, (B, 1), jnp.float32)

    pt_params = init_params_pt(kparam, obs_shape, action_dim, nheads)
    kparams = prepare_kernel_params(pt_params, obs_shape)

    out = bootstrapped_dqn_forward(kparams, x, a, nheads=nheads, action_dim=action_dim)
    out = jax.block_until_ready(out)                              # (nheads, B, A)

    # per-head list, matching the PyTorch forward() return convention
    outs = [out[k] for k in range(nheads)]
    assert len(outs) == nheads
    assert all(o.shape == (B, action_dim) for o in outs)
    assert bool(jnp.all(jnp.isfinite(out)))

    ref = jax.block_until_ready(reference_forward(pt_params, x, a, nheads))
    assert bool(jnp.allclose(out, ref, rtol=2e-2, atol=2e-2)), \
        float(jnp.max(jnp.abs(out - ref)))

    print("KERNEL_OK")
</pallas_src>

<mosaic_0001>
module attributes {stable_mosaic.version = 11 : i64} {
  func.func @_fused_forward_kernel(%arg0: memref<2x1xf32, #tpu.memory_space<smem>>, %arg1: memref<2x7x21xf32, #tpu.memory_space<vmem>>, %arg2: memref<2x21x96xf32, #tpu.memory_space<vmem>>, %arg3: memref<1x96xf32, #tpu.memory_space<vmem>>, %arg4: memref<2x96x160xf32, #tpu.memory_space<vmem>>, %arg5: memref<1x160xf32, #tpu.memory_space<vmem>>, %arg6: memref<2x160x256xf32, #tpu.memory_space<vmem>>, %arg7: memref<1x256xf32, #tpu.memory_space<vmem>>, %arg8: memref<4x256x128xf32, #tpu.memory_space<vmem>>, %arg9: memref<1x128xf32, #tpu.memory_space<vmem>>, %arg10: memref<128x256xf32, #tpu.memory_space<vmem>>, %arg11: memref<1x256xf32, #tpu.memory_space<vmem>>, %arg12: memref<1x256xf32, #tpu.memory_space<vmem>>, %arg13: memref<256x256xf32, #tpu.memory_space<vmem>>, %arg14: memref<1x256xf32, #tpu.memory_space<vmem>>, %arg15: memref<256x128xf32, #tpu.memory_space<vmem>>, %arg16: memref<1x128xf32, #tpu.memory_space<vmem>>, %arg17: memref<2x128xf32, #tpu.memory_space<vmem>>) attributes {dimension_semantics = [], scalar_prefetch = 0 : i64, scratch_operands = 0 : i64, tpu.core_type = #tpu.core_type<tc>} {
    %c0 = arith.constant 0 : index
    %c0_0 = arith.constant 0 : index
    %c0_1 = arith.constant 0 : index
    %0 = vector.load %arg1[%c0, %c0_0, %c0_1] : memref<2x7x21xf32, #tpu.memory_space<vmem>>, vector<1x7x21xf32>
    %1 = vector.shape_cast %0 : vector<1x7x21xf32> to vector<7x21xf32>
    %2 = vector.extract_strided_slice %1 {offsets = [0, 0], sizes = [6, 21], strides = [1, 1]} : vector<7x21xf32> to vector<6x21xf32>
    %c0_2 = arith.constant 0 : index
    %c0_3 = arith.constant 0 : index
    %c0_4 = arith.constant 0 : index
    %3 = vector.load %arg2[%c0_2, %c0_3, %c0_4] : memref<2x21x96xf32, #tpu.memory_space<vmem>>, vector<1x21x96xf32>
    %4 = vector.shape_cast %3 : vector<1x21x96xf32> to vector<21x96xf32>
    %cst = arith.constant dense<0.000000e+00> : vector<6x96xf32>
    %5 = tpu.matmul %2, %4, %cst {dimension_numbers = #tpu.dot_dimension_numbers<[1], [0], [0], [1], [0, 0, 1, 1], [], []>} : vector<6x21xf32>, vector<21x96xf32>, vector<6x96xf32> -> vector<6x96xf32>
    %6 = vector.extract_strided_slice %1 {offsets = [1, 0], sizes = [6, 21], strides = [1, 1]} : vector<7x21xf32> to vector<6x21xf32>
    %c1 = arith.constant 1 : index
    %c0_5 = arith.constant 0 : index
    %c0_6 = arith.constant 0 : index
    %7 = vector.load %arg2[%c1, %c0_5, %c0_6] : memref<2x21x96xf32, #tpu.memory_space<vmem>>, vector<1x21x96xf32>
    %8 = vector.shape_cast %7 : vector<1x21x96xf32> to vector<21x96xf32>
    %cst_7 = arith.constant dense<0.000000e+00> : vector<6x96xf32>
    %9 = tpu.matmul %6, %8, %cst_7 {dimension_numbers = #tpu.dot_dimension_numbers<[1], [0], [0], [1], [0, 0, 1, 1], [], []>} : vector<6x21xf32>, vector<21x96xf32>, vector<6x96xf32> -> vector<6x96xf32>
    %10 = arith.addf %5, %9 : vector<6x96xf32>
    %c0_8 = arith.constant 0 : index
    %c0_9 = arith.constant 0 : index
    %11 = vector.load %arg3[%c0_8, %c0_9] : memref<1x96xf32, #tpu.memory_space<vmem>>, vector<1x96xf32>
    %12 = vector.broadcast %11 : vector<1x96xf32> to vector<6x96xf32>
    %13 = arith.addf %10, %12 : vector<6x96xf32>
    %cst_10 = arith.constant 0.000000e+00 : f32
    %14 = vector.broadcast %cst_10 : f32 to vector<6x96xf32>
    %15 = arith.maximumf %13, %14 : vector<6x96xf32>
    %16 = vector.extract_strided_slice %15 {offsets = [0, 0], sizes = [5, 96], strides = [1, 1]} : vector<6x96xf32> to vector<5x96xf32>
    %c0_11 = arith.constant 0 : index
    %c0_12 = arith.constant 0 : index
    %c0_13 = arith.constant 0 : index
    %17 = vector.load %arg4[%c0_11, %c0_12, %c0_13] : memref<2x96x160xf32, #tpu.memory_space<vmem>>, vector<1x96x160xf32>
    %18 = vector.shape_cast %17 : vector<1x96x160xf32> to vector<96x160xf32>
    %cst_14 = arith.constant dense<0.000000e+00> : vector<5x160xf32>
    %19 = tpu.matmul %16, %18, %cst_14 {dimension_numbers = #tpu.dot_dimension_numbers<[1], [0], [0], [1], [0, 0, 1, 1], [], []>} : vector<5x96xf32>, vector<96x160xf32>, vector<5x160xf32> -> vector<5x160xf32>
    %20 = vector.extract_strided_slice %15 {offsets = [1, 0], sizes = [5, 96], strides = [1, 1]} : vector<6x96xf32> to vector<5x96xf32>
    %c1_15 = arith.constant 1 : index
    %c0_16 = arith.constant 0 : index
    %c0_17 = arith.constant 0 : index
    %21 = vector.load %arg4[%c1_15, %c0_16, %c0_17] : memref<2x96x160xf32, #tpu.memory_space<vmem>>, vector<1x96x160xf32>
    %22 = vector.shape_cast %21 : vector<1x96x160xf32> to vector<96x160xf32>
    %cst_18 = arith.constant dense<0.000000e+00> : vector<5x160xf32>
    %23 = tpu.matmul %20, %22, %cst_18 {dimension_numbers = #tpu.dot_dimension_numbers<[1], [0], [0], [1], [0, 0, 1, 1], [], []>} : vector<5x96xf32>, vector<96x160xf32>, vector<5x160xf32> -> vector<5x160xf32>
    %24 = arith.addf %19, %23 : vector<5x160xf32>
    %c0_19 = arith.constant 0 : index
    %c0_20 = arith.constant 0 : index
    %25 = vector.load %arg5[%c0_19, %c0_20] : memref<1x160xf32, #tpu.memory_space<vmem>>, vector<1x160xf32>
    %26 = vector.broadcast %25 : vector<1x160xf32> to vector<5x160xf32>
    %27 = arith.addf %24, %26 : vector<5x160xf32>
    %cst_21 = arith.constant 0.000000e+00 : f32
    %28 = vector.broadcast %cst_21 : f32 to vector<5x160xf32>
    %29 = arith.maximumf %27, %28 : vector<5x160xf32>
    %30 = vector.extract_strided_slice %29 {offsets = [0, 0], sizes = [4, 160], strides = [1, 1]} : vector<5x160xf32> to vector<4x160xf32>
    %c0_22 = arith.constant 0 : index
    %c0_23 = arith.constant 0 : index
    %c0_24 = arith.constant 0 : index
    %31 = vector.load %arg6[%c0_22, %c0_23, %c0_24] : memref<2x160x256xf32, #tpu.memory_space<vmem>>, vector<1x160x256xf32>
    %32 = vector.shape_cast %31 : vector<1x160x256xf32> to vector<160x256xf32>
    %cst_25 = arith.constant dense<0.000000e+00> : vector<4x256xf32>
    %33 = tpu.matmul %30, %32, %cst_25 {dimension_numbers = #tpu.dot_dimension_numbers<[1], [0], [0], [1], [0, 0, 1, 1], [], []>} : vector<4x160xf32>, vector<160x256xf32>, vector<4x256xf32> -> vector<4x256xf32>
    %34 = vector.extract_strided_slice %29 {offsets = [1, 0], sizes = [4, 160], strides = [1, 1]} : vector<5x160xf32> to vector<4x160xf32>
    %c1_26 = arith.constant 1 : index
    %c0_27 = arith.constant 0 : index
    %c0_28 = arith.constant 0 : index
    %35 = vector.load %arg6[%c1_26, %c0_27, %c0_28] : memref<2x160x256xf32, #tpu.memory_space<vmem>>, vector<1x160x256xf32>
    %36 = vector.shape_cast %35 : vector<1x160x256xf32> to vector<160x256xf32>
    %cst_29 = arith.constant dense<0.000000e+00> : vector<4x256xf32>
    %37 = tpu.matmul %34, %36, %cst_29 {dimension_numbers = #tpu.dot_dimension_numbers<[1], [0], [0], [1], [0, 0, 1, 1], [], []>} : vector<4x160xf32>, vector<160x256xf32>, vector<4x256xf32> -> vector<4x256xf32>
    %38 = arith.addf %33, %37 : vector<4x256xf32>
    %c0_30 = arith.constant 0 : index
    %c0_31 = arith.constant 0 : index
    %39 = vector.load %arg7[%c0_30, %c0_31] : memref<1x256xf32, #tpu.memory_space<vmem>>, vector<1x256xf32>
    %40 = vector.broadcast %39 : vector<1x256xf32> to vector<4x256xf32>
    %41 = arith.addf %38, %40 : vector<4x256xf32>
    %cst_32 = arith.constant 0.000000e+00 : f32
    %42 = vector.broadcast %cst_32 : f32 to vector<4x256xf32>
    %43 = arith.maximumf %41, %42 : vector<4x256xf32>
    %c0_33 = arith.constant 0 : index
    %c0_34 = arith.constant 0 : index
    %44 = vector.load %arg9[%c0_33, %c0_34] : memref<1x128xf32, #tpu.memory_space<vmem>>, vector<1x128xf32>
    %45 = vector.extract_strided_slice %43 {offsets = [0, 0], sizes = [1, 256], strides = [1, 1]} : vector<4x256xf32> to vector<1x256xf32>
    %c0_35 = arith.constant 0 : index
    %c0_36 = arith.constant 0 : index
    %c0_37 = arith.constant 0 : index
    %46 = vector.load %arg8[%c0_35, %c0_36, %c0_37] : memref<4x256x128xf32, #tpu.memory_space<vmem>>, vector<1x256x128xf32>
    %47 = vector.shape_cast %46 : vector<1x256x128xf32> to vector<256x128xf32>
    %cst_38 = arith.constant dense<0.000000e+00> : vector<1x128xf32>
    %48 = tpu.matmul %45, %47, %cst_38 {dimension_numbers = #tpu.dot_dimension_numbers<[1], [0], [0], [1], [0, 0, 1, 1], [], []>} : vector<1x256xf32>, vector<256x128xf32>, vector<1x128xf32> -> vector<1x128xf32>
    %49 = arith.addf %44, %48 : vector<1x128xf32>
    %50 = vector.extract_strided_slice %43 {offsets = [1, 0], sizes = [1, 256], strides = [1, 1]} : vector<4x256xf32> to vector<1x256xf32>
    %c1_39 = arith.constant 1 : index
    %c0_40 = arith.constant 0 : index
    %c0_41 = arith.constant 0 : index
    %51 = vector.load %arg8[%c1_39, %c0_40, %c0_41] : memref<4x256x128xf32, #tpu.memory_space<vmem>>, vector<1x256x128xf32>
    %52 = vector.shape_cast %51 : vector<1x256x128xf32> to vector<256x128xf32>
    %cst_42 = arith.constant dense<0.000000e+00> : vector<1x128xf32>
    %53 = tpu.matmul %50, %52, %cst_42 {dimension_numbers = #tpu.dot_dimension_numbers<[1], [0], [0], [1], [0, 0, 1, 1], [], []>} : vector<1x256xf32>, vector<256x128xf32>, vector<1x128xf32> -> vector<1x128xf32>
    %54 = arith.addf %49, %53 : vector<1x128xf32>
    %55 = vector.extract_strided_slice %43 {offsets = [2, 0], sizes = [1, 256], strides = [1, 1]} : vector<4x256xf32> to vector<1x256xf32>
    %c2 = arith.constant 2 : index
    %c0_43 = arith.constant 0 : index
    %c0_44 = arith.constant 0 : index
    %56 = vector.load %arg8[%c2, %c0_43, %c0_44] : memref<4x256x128xf32, #tpu.memory_space<vmem>>, vector<1x256x128xf32>
    %57 = vector.shape_cast %56 : vector<1x256x128xf32> to vector<256x128xf32>
    %cst_45 = arith.constant dense<0.000000e+00> : vector<1x128xf32>
    %58 = tpu.matmul %55, %57, %cst_45 {dimension_numbers = #tpu.dot_dimension_numbers<[1], [0], [0], [1], [0, 0, 1, 1], [], []>} : vector<1x256xf32>, vector<256x128xf32>, vector<1x128xf32> -> vector<1x128xf32>
    %59 = arith.addf %54, %58 : vector<1x128xf32>
    %60 = vector.extract_strided_slice %43 {offsets = [3, 0], sizes = [1, 256], strides = [1, 1]} : vector<4x256xf32> to vector<1x256xf32>
    %c3 = arith.constant 3 : index
    %c0_46 = arith.constant 0 : index
    %c0_47 = arith.constant 0 : index
    %61 = vector.load %arg8[%c3, %c0_46, %c0_47] : memref<4x256x128xf32, #tpu.memory_space<vmem>>, vector<1x256x128xf32>
    %62 = vector.shape_cast %61 : vector<1x256x128xf32> to vector<256x128xf32>
    %cst_48 = arith.constant dense<0.000000e+00> : vector<1x128xf32>
    %63 = tpu.matmul %60, %62, %cst_48 {dimension_numbers = #tpu.dot_dimension_numbers<[1], [0], [0], [1], [0, 0, 1, 1], [], []>} : vector<1x256xf32>, vector<256x128xf32>, vector<1x128xf32> -> vector<1x128xf32>
    %64 = arith.addf %59, %63 : vector<1x128xf32>
    %cst_49 = arith.constant 0.000000e+00 : f32
    %65 = vector.broadcast %cst_49 : f32 to vector<1x128xf32>
    %66 = arith.maximumf %64, %65 : vector<1x128xf32>
    %c0_50 = arith.constant 0 : index
    %c0_51 = arith.constant 0 : index
    %67 = memref.load %arg0[%c0_50, %c0_51] : memref<2x1xf32, #tpu.memory_space<smem>>
    %c0_52 = arith.constant 0 : index
    %c0_53 = arith.constant 0 : index
    %68 = vector.load %arg10[%c0_52, %c0_53] : memref<128x256xf32, #tpu.memory_space<vmem>>, vector<128x256xf32>
    %cst_54 = arith.constant dense<0.000000e+00> : vector<1x256xf32>
    %69 = tpu.matmul %66, %68, %cst_54 {dimension_numbers = #tpu.dot_dimension_numbers<[1], [0], [0], [1], [0, 0, 1, 1], [], []>} : vector<1x128xf32>, vector<128x256xf32>, vector<1x256xf32> -> vector<1x256xf32>
    %c0_55 = arith.constant 0 : index
    %c0_56 = arith.constant 0 : index
    %70 = vector.load %arg11[%c0_55, %c0_56] : memref<1x256xf32, #tpu.memory_space<vmem>>, vector<1x256xf32>
    %71 = vector.broadcast %67 : f32 to vector<1x256xf32>
    %72 = arith.mulf %71, %70 : vector<1x256xf32>
    %73 = arith.addf %69, %72 : vector<1x256xf32>
    %c0_57 = arith.constant 0 : index
    %c0_58 = arith.constant 0 : index
    %74 = vector.load %arg12[%c0_57, %c0_58] : memref<1x256xf32, #tpu.memory_space<vmem>>, vector<1x256xf32>
    %75 = arith.addf %73, %74 : vector<1x256xf32>
    %cst_59 = arith.constant 0.000000e+00 : f32
    %76 = vector.broadcast %cst_59 : f32 to vector<1x256xf32>
    %77 = arith.maximumf %75, %76 : vector<1x256xf32>
    %c0_60 = arith.constant 0 : index
    %c0_61 = arith.constant 0 : index
    %78 = vector.load %arg13[%c0_60, %c0_61] : memref<256x256xf32, #tpu.memory_space<vmem>>, vector<256x256xf32>
    %cst_62 = arith.constant dense<0.000000e+00> : vector<1x256xf32>
    %79 = tpu.matmul %77, %78, %cst_62 {dimension_numbers = #tpu.dot_dimension_numbers<[1], [0], [0], [1], [0, 0, 1, 1], [], []>} : vector<1x256xf32>, vector<256x256xf32>, vector<1x256xf32> -> vector<1x256xf32>
    %c0_63 = arith.constant 0 : index
    %c0_64 = arith.constant 0 : index
    %80 = vector.load %arg14[%c0_63, %c0_64] : memref<1x256xf32, #tpu.memory_space<vmem>>, vector<1x256xf32>
    %81 = arith.addf %79, %80 : vector<1x256xf32>
    %cst_65 = arith.constant 0.000000e+00 : f32
    %82 = vector.broadcast %cst_65 : f32 to vector<1x256xf32>
    %83 = arith.maximumf %81, %82 : vector<1x256xf32>
    %c0_66 = arith.constant 0 : index
    %c0_67 = arith.constant 0 : index
    %84 = vector.load %arg15[%c0_66, %c0_67] : memref<256x128xf32, #tpu.memory_space<vmem>>, vector<256x128xf32>
    %cst_68 = arith.constant dense<0.000000e+00> : vector<1x128xf32>
    %85 = tpu.matmul %83, %84, %cst_68 {dimension_numbers = #tpu.dot_dimension_numbers<[1], [0], [0], [1], [0, 0, 1, 1], [], []>} : vector<1x256xf32>, vector<256x128xf32>, vector<1x128xf32> -> vector<1x128xf32>
    %c0_69 = arith.constant 0 : index
    %c0_70 = arith.constant 0 : index
    %86 = vector.load %arg16[%c0_69, %c0_70] : memref<1x128xf32, #tpu.memory_space<vmem>>, vector<1x128xf32>
    %87 = arith.addf %85, %86 : vector<1x128xf32>
    %c0_71 = arith.constant 0 : index
    %c0_72 = arith.constant 0 : index
    %88 = vector.load %arg17[%c0_71, %c0_72] : memref<2x128xf32, #tpu.memory_space<vmem>>, vector<1x128xf32>
    tpu.vector_store %arg17[%c0_71, %c0_72], %87 {strides = array<i32>} : memref<2x128xf32, #tpu.memory_space<vmem>>, vector<1x128xf32>,
    %c1_73 = arith.constant 1 : index
    %c0_74 = arith.constant 0 : index
    %c0_75 = arith.constant 0 : index
    %89 = vector.load %arg1[%c1_73, %c0_74, %c0_75] : memref<2x7x21xf32, #tpu.memory_space<vmem>>, vector<1x7x21xf32>
    %90 = vector.shape_cast %89 : vector<1x7x21xf32> to vector<7x21xf32>
    %91 = vector.extract_strided_slice %90 {offsets = [0, 0], sizes = [6, 21], strides = [1, 1]} : vector<7x21xf32> to vector<6x21xf32>
    %c0_76 = arith.constant 0 : index
    %c0_77 = arith.constant 0 : index
    %c0_78 = arith.constant 0 : index
    %92 = vector.load %arg2[%c0_76, %c0_77, %c0_78] : memref<2x21x96xf32, #tpu.memory_space<vmem>>, vector<1x21x96xf32>
    %93 = vector.shape_cast %92 : vector<1x21x96xf32> to vector<21x96xf32>
    %cst_79 = arith.constant dense<0.000000e+00> : vector<6x96xf32>
    %94 = tpu.matmul %91, %93, %cst_79 {dimension_numbers = #tpu.dot_dimension_numbers<[1], [0], [0], [1], [0, 0, 1, 1], [], []>} : vector<6x21xf32>, vector<21x96xf32>, vector<6x96xf32> -> vector<6x96xf32>
    %95 = vector.extract_strided_slice %90 {offsets = [1, 0], sizes = [6, 21], strides = [1, 1]} : vector<7x21xf32> to vector<6x21xf32>
    %c1_80 = arith.constant 1 : index
    %c0_81 = arith.constant 0 : index
    %c0_82 = arith.constant 0 : index
    %96 = vector.load %arg2[%c1_80, %c0_81, %c0_82] : memref<2x21x96xf32, #tpu.memory_space<vmem>>, vector<1x21x96xf32>
    %97 = vector.shape_cast %96 : vector<1x21x96xf32> to vector<21x96xf32>
    %cst_83 = arith.constant dense<0.000000e+00> : vector<6x96xf32>
    %98 = tpu.matmul %95, %97, %cst_83 {dimension_numbers = #tpu.dot_dimension_numbers<[1], [0], [0], [1], [0, 0, 1, 1], [], []>} : vector<6x21xf32>, vector<21x96xf32>, vector<6x96xf32> -> vector<6x96xf32>
    %99 = arith.addf %94, %98 : vector<6x96xf32>
    %c0_84 = arith.constant 0 : index
    %c0_85 = arith.constant 0 : index
    %100 = vector.load %arg3[%c0_84, %c0_85] : memref<1x96xf32, #tpu.memory_space<vmem>>, vector<1x96xf32>
    %101 = vector.broadcast %100 : vector<1x96xf32> to vector<6x96xf32>
    %102 = arith.addf %99, %101 : vector<6x96xf32>
    %cst_86 = arith.constant 0.000000e+00 : f32
    %103 = vector.broadcast %cst_86 : f32 to vector<6x96xf32>
    %104 = arith.maximumf %102, %103 : vector<6x96xf32>
    %105 = vector.extract_strided_slice %104 {offsets = [0, 0], sizes = [5, 96], strides = [1, 1]} : vector<6x96xf32> to vector<5x96xf32>
    %c0_87 = arith.constant 0 : index
    %c0_88 = arith.constant 0 : index
    %c0_89 = arith.constant 0 : index
    %106 = vector.load %arg4[%c0_87, %c0_88, %c0_89] : memref<2x96x160xf32, #tpu.memory_space<vmem>>, vector<1x96x160xf32>
    %107 = vector.shape_cast %106 : vector<1x96x160xf32> to vector<96x160xf32>
    %cst_90 = arith.constant dense<0.000000e+00> : vector<5x160xf32>
    %108 = tpu.matmul %105, %107, %cst_90 {dimension_numbers = #tpu.dot_dimension_numbers<[1], [0], [0], [1], [0, 0, 1, 1], [], []>} : vector<5x96xf32>, vector<96x160xf32>, vector<5x160xf32> -> vector<5x160xf32>
    %109 = vector.extract_strided_slice %104 {offsets = [1, 0], sizes = [5, 96], strides = [1, 1]} : vector<6x96xf32> to vector<5x96xf32>
    %c1_91 = arith.constant 1 : index
    %c0_92 = arith.constant 0 : index
    %c0_93 = arith.constant 0 : index
    %110 = vector.load %arg4[%c1_91, %c0_92, %c0_93] : memref<2x96x160xf32, #tpu.memory_space<vmem>>, vector<1x96x160xf32>
    %111 = vector.shape_cast %110 : vector<1x96x160xf32> to vector<96x160xf32>
    %cst_94 = arith.constant dense<0.000000e+00> : vector<5x160xf32>
    %112 = tpu.matmul %109, %111, %cst_94 {dimension_numbers = #tpu.dot_dimension_numbers<[1], [0], [0], [1], [0, 0, 1, 1], [], []>} : vector<5x96xf32>, vector<96x160xf32>, vector<5x160xf32> -> vector<5x160xf32>
    %113 = arith.addf %108, %112 : vector<5x160xf32>
    %c0_95 = arith.constant 0 : index
    %c0_96 = arith.constant 0 : index
    %114 = vector.load %arg5[%c0_95, %c0_96] : memref<1x160xf32, #tpu.memory_space<vmem>>, vector<1x160xf32>
    %115 = vector.broadcast %114 : vector<1x160xf32> to vector<5x160xf32>
    %116 = arith.addf %113, %115 : vector<5x160xf32>
    %cst_97 = arith.constant 0.000000e+00 : f32
    %117 = vector.broadcast %cst_97 : f32 to vector<5x160xf32>
    %118 = arith.maximumf %116, %117 : vector<5x160xf32>
    %119 = vector.extract_strided_slice %118 {offsets = [0, 0], sizes = [4, 160], strides = [1, 1]} : vector<5x160xf32> to vector<4x160xf32>
    %c0_98 = arith.constant 0 : index
    %c0_99 = arith.constant 0 : index
    %c0_100 = arith.constant 0 : index
    %120 = vector.load %arg6[%c0_98, %c0_99, %c0_100] : memref<2x160x256xf32, #tpu.memory_space<vmem>>, vector<1x160x256xf32>
    %121 = vector.shape_cast %120 : vector<1x160x256xf32> to vector<160x256xf32>
    %cst_101 = arith.constant dense<0.000000e+00> : vector<4x256xf32>
    %122 = tpu.matmul %119, %121, %cst_101 {dimension_numbers = #tpu.dot_dimension_numbers<[1], [0], [0], [1], [0, 0, 1, 1], [], []>} : vector<4x160xf32>, vector<160x256xf32>, vector<4x256xf32> -> vector<4x256xf32>
    %123 = vector.extract_strided_slice %118 {offsets = [1, 0], sizes = [4, 160], strides = [1, 1]} : vector<5x160xf32> to vector<4x160xf32>
    %c1_102 = arith.constant 1 : index
    %c0_103 = arith.constant 0 : index
    %c0_104 = arith.constant 0 : index
    %124 = vector.load %arg6[%c1_102, %c0_103, %c0_104] : memref<2x160x256xf32, #tpu.memory_space<vmem>>, vector<1x160x256xf32>
    %125 = vector.shape_cast %124 : vector<1x160x256xf32> to vector<160x256xf32>
    %cst_105 = arith.constant dense<0.000000e+00> : vector<4x256xf32>
    %126 = tpu.matmul %123, %125, %cst_105 {dimension_numbers = #tpu.dot_dimension_numbers<[1], [0], [0], [1], [0, 0, 1, 1], [], []>} : vector<4x160xf32>, vector<160x256xf32>, vector<4x256xf32> -> vector<4x256xf32>
    %127 = arith.addf %122, %126 : vector<4x256xf32>
    %c0_106 = arith.constant 0 : index
    %c0_107 = arith.constant 0 : index
    %128 = vector.load %arg7[%c0_106, %c0_107] : memref<1x256xf32, #tpu.memory_space<vmem>>, vector<1x256xf32>
    %129 = vector.broadcast %128 : vector<1x256xf32> to vector<4x256xf32>
    %130 = arith.addf %127, %129 : vector<4x256xf32>
    %cst_108 = arith.constant 0.000000e+00 : f32
    %131 = vector.broadcast %cst_108 : f32 to vector<4x256xf32>
    %132 = arith.maximumf %130, %131 : vector<4x256xf32>
    %c0_109 = arith.constant 0 : index
    %c0_110 = arith.constant 0 : index
    %133 = vector.load %arg9[%c0_109, %c0_110] : memref<1x128xf32, #tpu.memory_space<vmem>>, vector<1x128xf32>
    %134 = vector.extract_strided_slice %132 {offsets = [0, 0], sizes = [1, 256], strides = [1, 1]} : vector<4x256xf32> to vector<1x256xf32>
    %c0_111 = arith.constant 0 : index
    %c0_112 = arith.constant 0 : index
    %c0_113 = arith.constant 0 : index
    %135 = vector.load %arg8[%c0_111, %c0_112, %c0_113] : memref<4x256x128xf32, #tpu.memory_space<vmem>>, vector<1x256x128xf32>
    %136 = vector.shape_cast %135 : vector<1x256x128xf32> to vector<256x128xf32>
    %cst_114 = arith.constant dense<0.000000e+00> : vector<1x128xf32>
    %137 = tpu.matmul %134, %136, %cst_114 {dimension_numbers = #tpu.dot_dimension_numbers<[1], [0], [0], [1], [0, 0, 1, 1], [], []>} : vector<1x256xf32>, vector<256x128xf32>, vector<1x128xf32> -> vector<1x128xf32>
    %138 = arith.addf %133, %137 : vector<1x128xf32>
    %139 = vector.extract_strided_slice %132 {offsets = [1, 0], sizes = [1, 256], strides = [1, 1]} : vector<4x256xf32> to vector<1x256xf32>
    %c1_115 = arith.constant 1 : index
    %c0_116 = arith.constant 0 : index
    %c0_117 = arith.constant 0 : index
    %140 = vector.load %arg8[%c1_115, %c0_116, %c0_117] : memref<4x256x128xf32, #tpu.memory_space<vmem>>, vector<1x256x128xf32>
    %141 = vector.shape_cast %140 : vector<1x256x128xf32> to vector<256x128xf32>
    %cst_118 = arith.constant dense<0.000000e+00> : vector<1x128xf32>
    %142 = tpu.matmul %139, %141, %cst_118 {dimension_numbers = #tpu.dot_dimension_numbers<[1], [0], [0], [1], [0, 0, 1, 1], [], []>} : vector<1x256xf32>, vector<256x128xf32>, vector<1x128xf32> -> vector<1x128xf32>
    %143 = arith.addf %138, %142 : vector<1x128xf32>
    %144 = vector.extract_strided_slice %132 {offsets = [2, 0], sizes = [1, 256], strides = [1, 1]} : vector<4x256xf32> to vector<1x256xf32>
    %c2_119 = arith.constant 2 : index
    %c0_120 = arith.constant 0 : index
    %c0_121 = arith.constant 0 : index
    %145 = vector.load %arg8[%c2_119, %c0_120, %c0_121] : memref<4x256x128xf32, #tpu.memory_space<vmem>>, vector<1x256x128xf32>
    %146 = vector.shape_cast %145 : vector<1x256x128xf32> to vector<256x128xf32>
    %cst_122 = arith.constant dense<0.000000e+00> : vector<1x128xf32>
    %147 = tpu.matmul %144, %146, %cst_122 {dimension_numbers = #tpu.dot_dimension_numbers<[1], [0], [0], [1], [0, 0, 1, 1], [], []>} : vector<1x256xf32>, vector<256x128xf32>, vector<1x128xf32> -> vector<1x128xf32>
    %148 = arith.addf %143, %147 : vector<1x128xf32>
    %149 = vector.extract_strided_slice %132 {offsets = [3, 0], sizes = [1, 256], strides = [1, 1]} : vector<4x256xf32> to vector<1x256xf32>
    %c3_123 = arith.constant 3 : index
    %c0_124 = arith.constant 0 : index
    %c0_125 = arith.constant 0 : index
    %150 = vector.load %arg8[%c3_123, %c0_124, %c0_125] : memref<4x256x128xf32, #tpu.memory_space<vmem>>, vector<1x256x128xf32>
    %151 = vector.shape_cast %150 : vector<1x256x128xf32> to vector<256x128xf32>
    %cst_126 = arith.constant dense<0.000000e+00> : vector<1x128xf32>
    %152 = tpu.matmul %149, %151, %cst_126 {dimension_numbers = #tpu.dot_dimension_numbers<[1], [0], [0], [1], [0, 0, 1, 1], [], []>} : vector<1x256xf32>, vector<256x128xf32>, vector<1x128xf32> -> vector<1x128xf32>
    %153 = arith.addf %148, %152 : vector<1x128xf32>
    %cst_127 = arith.constant 0.000000e+00 : f32
    %154 = vector.broadcast %cst_127 : f32 to vector<1x128xf32>
    %155 = arith.maximumf %153, %154 : vector<1x128xf32>
    %c1_128 = arith.constant 1 : index
    %c0_129 = arith.constant 0 : index
    %156 = memref.load %arg0[%c1_128, %c0_129] : memref<2x1xf32, #tpu.memory_space<smem>>
    %c0_130 = arith.constant 0 : index
    %c0_131 = arith.constant 0 : index
    %157 = vector.load %arg10[%c0_130, %c0_131] : memref<128x256xf32, #tpu.memory_space<vmem>>, vector<128x256xf32>
    %cst_132 = arith.constant dense<0.000000e+00> : vector<1x256xf32>
    %158 = tpu.matmul %155, %157, %cst_132 {dimension_numbers = #tpu.dot_dimension_numbers<[1], [0], [0], [1], [0, 0, 1, 1], [], []>} : vector<1x128xf32>, vector<128x256xf32>, vector<1x256xf32> -> vector<1x256xf32>
    %c0_133 = arith.constant 0 : index
    %c0_134 = arith.constant 0 : index
    %159 = vector.load %arg11[%c0_133, %c0_134] : memref<1x256xf32, #tpu.memory_space<vmem>>, vector<1x256xf32>
    %160 = vector.broadcast %156 : f32 to vector<1x256xf32>
    %161 = arith.mulf %160, %159 : vector<1x256xf32>
    %162 = arith.addf %158, %161 : vector<1x256xf32>
    %c0_135 = arith.constant 0 : index
    %c0_136 = arith.constant 0 : index
    %163 = vector.load %arg12[%c0_135, %c0_136] : memref<1x256xf32, #tpu.memory_space<vmem>>, vector<1x256xf32>
    %164 = arith.addf %162, %163 : vector<1x256xf32>
    %cst_137 = arith.constant 0.000000e+00 : f32
    %165 = vector.broadcast %cst_137 : f32 to vector<1x256xf32>
    %166 = arith.maximumf %164, %165 : vector<1x256xf32>
    %c0_138 = arith.constant 0 : index
    %c0_139 = arith.constant 0 : index
    %167 = vector.load %arg13[%c0_138, %c0_139] : memref<256x256xf32, #tpu.memory_space<vmem>>, vector<256x256xf32>
    %cst_140 = arith.constant dense<0.000000e+00> : vector<1x256xf32>
    %168 = tpu.matmul %166, %167, %cst_140 {dimension_numbers = #tpu.dot_dimension_numbers<[1], [0], [0], [1], [0, 0, 1, 1], [], []>} : vector<1x256xf32>, vector<256x256xf32>, vector<1x256xf32> -> vector<1x256xf32>
    %c0_141 = arith.constant 0 : index
    %c0_142 = arith.constant 0 : index
    %169 = vector.load %arg14[%c0_141, %c0_142] : memref<1x256xf32, #tpu.memory_space<vmem>>, vector<1x256xf32>
    %170 = arith.addf %168, %169 : vector<1x256xf32>
    %cst_143 = arith.constant 0.000000e+00 : f32
    %171 = vector.broadcast %cst_143 : f32 to vector<1x256xf32>
    %172 = arith.maximumf %170, %171 : vector<1x256xf32>
    %c0_144 = arith.constant 0 : index
    %c0_145 = arith.constant 0 : index
    %173 = vector.load %arg15[%c0_144, %c0_145] : memref<256x128xf32, #tpu.memory_space<vmem>>, vector<256x128xf32>
    %cst_146 = arith.constant dense<0.000000e+00> : vector<1x128xf32>
    %174 = tpu.matmul %172, %173, %cst_146 {dimension_numbers = #tpu.dot_dimension_numbers<[1], [0], [0], [1], [0, 0, 1, 1], [], []>} : vector<1x256xf32>, vector<256x128xf32>, vector<1x128xf32> -> vector<1x128xf32>
    %c0_147 = arith.constant 0 : index
    %c0_148 = arith.constant 0 : index
    %175 = vector.load %arg16[%c0_147, %c0_148] : memref<1x128xf32, #tpu.memory_space<vmem>>, vector<1x128xf32>
    %176 = arith.addf %174, %175 : vector<1x128xf32>
    %c1_149 = arith.constant 1 : index
    %c0_150 = arith.constant 0 : index
    %177 = vector.load %arg17[%c1_149, %c0_150] : memref<2x128xf32, #tpu.memory_space<vmem>>, vector<1x128xf32>
    tpu.vector_store %arg17[%c1_149, %c0_150], %176 {strides = array<i32>} : memref<2x128xf32, #tpu.memory_space<vmem>>, vector<1x128xf32>,
    return
  }
}

</mosaic_0001>

<llo_original>
// kernel: bootstrapped_dqn_forward.1
$region0: #{bootstrapped_dqn_forward.1}
  #allocation0 [shape = 'u32[]', space=smem, size = 0x4, offset = 0x4, fixed_abs, tag = 'smem constant byte address 0x4 - core index']
  #allocation1 [shape = 'u32[144,128]{1,0:T(1,128)}', space=vmem, size = 0x12000, scoped, tag = 'internal scratch']
  %s0 = inlined_call_operand.vmem [shape: f32[2,1], index: 0, kind: input, shape index: {}]
  %s1 = inlined_call_operand.vmem [shape: f32[2,7,21], index: 1, kind: input, shape index: {}]
  %s2 = inlined_call_operand.vmem [shape: f32[2,21,96], index: 2, kind: input, shape index: {}]
  %s3 = inlined_call_operand.vmem [shape: f32[1,96], index: 3, kind: input, shape index: {}]
  %s4 = inlined_call_operand.vmem [shape: f32[2,96,160], index: 4, kind: input, shape index: {}]
  %s5 = inlined_call_operand.vmem [shape: f32[1,160], index: 5, kind: input, shape index: {}]
  %s6 = inlined_call_operand.vmem [shape: f32[2,160,256], index: 6, kind: input, shape index: {}]
  %s7 = inlined_call_operand.vmem [shape: f32[1,256], index: 7, kind: input, shape index: {}]
  %s8 = inlined_call_operand.hbm [shape: f32[4,256,128], index: 8, kind: input, shape index: {}]
  %s9 = inlined_call_operand.vmem [shape: f32[1,128], index: 9, kind: input, shape index: {}]
  %s10 = inlined_call_operand.vmem [shape: f32[128,256], index: 10, kind: input, shape index: {}]
  %s11 = inlined_call_operand.vmem [shape: f32[1,256], index: 11, kind: input, shape index: {}]
  %s12 = inlined_call_operand.vmem [shape: f32[1,256], index: 12, kind: input, shape index: {}]
  %s13 = inlined_call_operand.hbm [shape: f32[256,256], index: 13, kind: input, shape index: {}]
  %s14 = inlined_call_operand.vmem [shape: f32[1,256], index: 14, kind: input, shape index: {}]
  %s15 = inlined_call_operand.hbm [shape: f32[256,128], index: 15, kind: input, shape index: {}]
  %s16 = inlined_call_operand.vmem [shape: f32[1,128], index: 16, kind: input, shape index: {}]
  %s17 = inlined_call_operand.vmem [shape: f32[2,128], index: 17, kind: output, shape index: {}]
  %s18 = sld [smem:[#allocation0]]
  $region94: #{bootstrapped_dqn_forward.1} parent=0
    _
  %s20 = ssub.s32 1, %s18
  %s21 = scalar_select 0, %s20, %s18
  $region1: #{bootstrapped_dqn_forward.1} parent=0
    #allocation2 [shape = 'u8[1024]{0}', space=smem, size = 0x400, scoped, tag = 'input window, operand 0, single buffered']
    #allocation3 [shape = 's32[1]{0}', space=sflag, size = 0x4, scoped, tag = 'scoped memory for bootstrapped_dqn_forward.1']
    #allocation4 [shape = 's32[1]{0}', space=sflag, size = 0x4, scoped, tag = 'scoped memory for bootstrapped_dqn_forward.1']
    #allocation5 [shape = 'u8[524288]{0}', space=vmem, size = 0x80000, scoped, tag = 'input window, operand 8, single buffered']
    #allocation6 [shape = 'u8[262144]{0}', space=vmem, size = 0x40000, scoped, tag = 'input window, operand 13, single buffered']
    #allocation7 [shape = 's32[1]{0}', space=sflag, size = 0x4, scoped, tag = 'scoped memory for bootstrapped_dqn_forward.1']
    #allocation8 [shape = 'u8[131072]{0}', space=vmem, size = 0x20000, scoped, tag = 'input window, operand 15, single buffered']
    %22 = vsyncpa [#allocation4], 0
    %23 = vsyncpa [#allocation3], 0
    %24 = vsyncpa [#allocation7], 0
    // Predicated region
    $region2: #{bootstrapped_dqn_forward.1} parent=1 // pred_check
      _
    $region3: #{bootstrapped_dqn_forward.1} parent=1 // pred_check_branch
      %26 = sbr.rel (0) target = $region5
    $region4: #{bootstrapped_dqn_forward.1} parent=1 // pred_region
      %s28 = ssub.s32 32, 32
      %29 = vsyncadd [#allocation4], %s28
      %s31 = sshll.u32 %s0, 4
      %s32 = int_to_ptr.vmem [resolvable:$true] %s31
      %34 = dma.vmem_to_smem %s32, 32, [#allocation2], [#allocation4]
    $region5: #{bootstrapped_dqn_forward.1} parent=1 // pred_fallthru
      _
    // Predicated region
    $region6: #{bootstrapped_dqn_forward.1} parent=1 // pred_check
      _
    $region7: #{bootstrapped_dqn_forward.1} parent=1 // pred_check_branch
      %36 = sbr.rel (0) target = $region9
    $region8: #{bootstrapped_dqn_forward.1} parent=1 // pred_region
      _
    $region9: #{bootstrapped_dqn_forward.1} parent=1 // pred_fallthru
      _
    // Predicated region
    $region10: #{bootstrapped_dqn_forward.1} parent=1 // pred_check
      _
    $region11: #{bootstrapped_dqn_forward.1} parent=1 // pred_check_branch
      %38 = sbr.rel (0) target = $region13
    $region12: #{bootstrapped_dqn_forward.1} parent=1 // pred_region
      _
    $region13: #{bootstrapped_dqn_forward.1} parent=1 // pred_fallthru
      _
    // Predicated region
    $region14: #{bootstrapped_dqn_forward.1} parent=1 // pred_check
      _
    $region15: #{bootstrapped_dqn_forward.1} parent=1 // pred_check_branch
      %40 = sbr.rel (0) target = $region17
    $region16: #{bootstrapped_dqn_forward.1} parent=1 // pred_region
      _
    $region17: #{bootstrapped_dqn_forward.1} parent=1 // pred_fallthru
      _
    // Predicated region
    $region18: #{bootstrapped_dqn_forward.1} parent=1 // pred_check
      _
    $region19: #{bootstrapped_dqn_forward.1} parent=1 // pred_check_branch
      %42 = sbr.rel (0) target = $region21
    $region20: #{bootstrapped_dqn_forward.1} parent=1 // pred_region
      _
    $region21: #{bootstrapped_dqn_forward.1} parent=1 // pred_fallthru
      _
    // Predicated region
    $region22: #{bootstrapped_dqn_forward.1} parent=1 // pred_check
      _
    $region23: #{bootstrapped_dqn_forward.1} parent=1 // pred_check_branch
      %44 = sbr.rel (0) target = $region25
    $region24: #{bootstrapped_dqn_forward.1} parent=1 // pred_region
      _
    $region25: #{bootstrapped_dqn_forward.1} parent=1 // pred_fallthru
      _
    // Predicated region
    $region26: #{bootstrapped_dqn_forward.1} parent=1 // pred_check
      _
    $region27: #{bootstrapped_dqn_forward.1} parent=1 // pred_check_branch
      %46 = sbr.rel (0) target = $region29
    $region28: #{bootstrapped_dqn_forward.1} parent=1 // pred_region
      _
    $region29: #{bootstrapped_dqn_forward.1} parent=1 // pred_fallthru
      _
    // Predicated region
    $region30: #{bootstrapped_dqn_forward.1} parent=1 // pred_check
      _
    $region31: #{bootstrapped_dqn_forward.1} parent=1 // pred_check_branch
      %48 = sbr.rel (0) target = $region33
    $region32: #{bootstrapped_dqn_forward.1} parent=1 // pred_region
      _
    $region33: #{bootstrapped_dqn_forward.1} parent=1 // pred_fallthru
      _
    // Predicated region
    $region34: #{bootstrapped_dqn_forward.1} parent=1 // pred_check
      _
    $region35: #{bootstrapped_dqn_forward.1} parent=1 // pred_check_branch
      %50 = sbr.rel (0) target = $region37
    $region36: #{bootstrapped_dqn_forward.1} parent=1 // pred_region
      %s52 = ssub.s32 16384, 16384
      %53 = vsyncadd [#allocation3], %s52
      %s54 = sshll.u32 [#allocation5], 4
      %s55 = int_to_ptr.vmem [resolvable:$true] %s54
      %60 = dma.hbm_to_vmem [thread:$0]  %s8, 16384, %s55, [#allocation3], 128, 128, 8
    $region37: #{bootstrapped_dqn_forward.1} parent=1 // pred_fallthru
      _
    // Predicated region
    $region38: #{bootstrapped_dqn_forward.1} parent=1 // pred_check
      _
    $region39: #{bootstrapped_dqn_forward.1} parent=1 // pred_check_branch
      %62 = sbr.rel (0) target = $region41
    $region40: #{bootstrapped_dqn_forward.1} parent=1 // pred_region
      _
    $region41: #{bootstrapped_dqn_forward.1} parent=1 // pred_fallthru
      _
    // Predicated region
    $region42: #{bootstrapped_dqn_forward.1} parent=1 // pred_check
      _
    $region43: #{bootstrapped_dqn_forward.1} parent=1 // pred_check_branch
      %64 = sbr.rel (0) target = $region45
    $region44: #{bootstrapped_dqn_forward.1} parent=1 // pred_region
      _
    $region45: #{bootstrapped_dqn_forward.1} parent=1 // pred_fallthru
      _
    // Predicated region
    $region46: #{bootstrapped_dqn_forward.1} parent=1 // pred_check
      _
    $region47: #{bootstrapped_dqn_forward.1} parent=1 // pred_check_branch
      %66 = sbr.rel (0) target = $region49
    $region48: #{bootstrapped_dqn_forward.1} parent=1 // pred_region
      _
    $region49: #{bootstrapped_dqn_forward.1} parent=1 // pred_fallthru
      _
    // Predicated region
    $region50: #{bootstrapped_dqn_forward.1} parent=1 // pred_check
      _
    $region51: #{bootstrapped_dqn_forward.1} parent=1 // pred_check_branch
      %68 = sbr.rel (0) target = $region53
    $region52: #{bootstrapped_dqn_forward.1} parent=1 // pred_region
      _
    $region53: #{bootstrapped_dqn_forward.1} parent=1 // pred_fallthru
      _
    // Predicated region
    $region54: #{bootstrapped_dqn_forward.1} parent=1 // pred_check
      _
    $region55: #{bootstrapped_dqn_forward.1} parent=1 // pred_check_branch
      %70 = sbr.rel (0) target = $region57
    $region56: #{bootstrapped_dqn_forward.1} parent=1 // pred_region
      %s72 = ssub.s32 8192, 8192
      %73 = vsyncadd [#allocation7], %s72
      %s74 = sshll.u32 [#allocation6], 4
      %s75 = int_to_ptr.vmem [resolvable:$true] %s74
      %80 = dma.hbm_to_vmem [thread:$0]  %s13, 8192, %s75, [#allocation7], 256, 256, 16
    $region57: #{bootstrapped_dqn_forward.1} parent=1 // pred_fallthru
      _
    // Predicated region
    $region58: #{bootstrapped_dqn_forward.1} parent=1 // pred_check
      _
    $region59: #{bootstrapped_dqn_forward.1} parent=1 // pred_check_branch
      %82 = sbr.rel (0) target = $region61
    $region60: #{bootstrapped_dqn_forward.1} parent=1 // pred_region
      _
    $region61: #{bootstrapped_dqn_forward.1} parent=1 // pred_fallthru
      _
    // Predicated region
    $region62: #{bootstrapped_dqn_forward.1} parent=1 // pred_check
      _
    $region63: #{bootstrapped_dqn_forward.1} parent=1 // pred_check_branch
      %84 = sbr.rel (0) target = $region65
    $region64: #{bootstrapped_dqn_forward.1} parent=1 // pred_region
      %s86 = ssub.s32 4096, 4096
      %87 = vsyncadd [#allocation7], %s86
      %s88 = sshll.u32 [#allocation8], 4
      %s89 = int_to_ptr.vmem [resolvable:$true] %s88
      %94 = dma.hbm_to_vmem [thread:$0]  %s15, 4096, %s89, [#allocation7], 128, 128, 8
    $region65: #{bootstrapped_dqn_forward.1} parent=1 // pred_fallthru
      _
    // Predicated region
    $region66: #{bootstrapped_dqn_forward.1} parent=1 // pred_check
      _
    $region67: #{bootstrapped_dqn_forward.1} parent=1 // pred_check_branch
      %96 = sbr.rel (0) target = $region69
    $region68: #{bootstrapped_dqn_forward.1} parent=1 // pred_region
      _
    $region69: #{bootstrapped_dqn_forward.1} parent=1 // pred_fallthru
      _
    // Predicated region
    $region70: #{bootstrapped_dqn_forward.1} parent=1 // pred_check
      _
    $region71: #{bootstrapped_dqn_forward.1} parent=1 // pred_check_branch
      %98 = sbr.rel (0) target = $region73
    $region72: #{bootstrapped_dqn_forward.1} parent=1 // pred_region
      %99 = dma.done [#allocation4], 32
    $region73: #{bootstrapped_dqn_forward.1} parent=1 // pred_fallthru
      _
    // Predicated region
    $region74: #{bootstrapped_dqn_forward.1} parent=1 // pred_check
      _
    $region75: #{bootstrapped_dqn_forward.1} parent=1 // pred_check_branch
      %101 = sbr.rel (0) target = $region77
    $region76: #{bootstrapped_dqn_forward.1} parent=1 // pred_region
      %102 = dma.done [#allocation3], 16384
    $region77: #{bootstrapped_dqn_forward.1} parent=1 // pred_fallthru
      _
    // Predicated region
    $region78: #{bootstrapped_dqn_forward.1} parent=1 // pred_check
      _
    $region79: #{bootstrapped_dqn_forward.1} parent=1 // pred_check_branch
      %104 = sbr.rel (0) target = $region81
    $region80: #{bootstrapped_dqn_forward.1} parent=1 // pred_region
      %105 = dma.done [#allocation7], 8192
    $region81: #{bootstrapped_dqn_forward.1} parent=1 // pred_fallthru
      _
    // Predicated region
    $region82: #{bootstrapped_dqn_forward.1} parent=1 // pred_check
      _
    $region83: #{bootstrapped_dqn_forward.1} parent=1 // pred_check_branch
      %107 = sbr.rel (0) target = $region85
    $region84: #{bootstrapped_dqn_forward.1} parent=1 // pred_region
      %108 = dma.done [#allocation7], 4096
    $region85: #{bootstrapped_dqn_forward.1} parent=1 // pred_fallthru
      _
    %109 = sfence
    %v110 = vld [vmem:[%s1] sm:$0x7f]
    %v111 = vld [vmem:[%s2] sm:$0xff]
    %v112 = vld [vmem:[%s2 + $0x8] sm:$0xff]
    %v113 = vld [vmem:[%s2 + $0x10] sm:$0x1f]
    %s114 = scalar_lea.vmem %s2, 24
    %v115 = vld [vmem:[%s114] sm:$0xff]
    %v116 = vld [vmem:[%s114 + $0x8] sm:$0xff]
    %v117 = vld [vmem:[%s114 + $0x10] sm:$0x1f]
    %v119 = vrot.slane %v110, 1
    %vm120 = vcmask 171008
    %v121 = vsel %vm120, %v119, 0
    %vm123 = vcmask 1044480
    %v125 = vsel %vm123, %v117, 0
    %127 = vmatprep.subr.mxu0 0.0
    %128 = vmatpush1.msra.mxu0 %v115
    %129 = vmatprep.subr.mxu0 0.0
    %130 = vmatpush1.msra.mxu0 %v116
    %131 = vmatprep.subr.mxu0 0.0
    %132 = vmatpush1.msra.mxu0 %v125
    %133 = vmatprep.subr.mxu0 0.0
    %134 = vmatpush1.msra.mxu0 0.0
    %135 = vmatprep.subr.mxu0 0.0
    %136 = vmatpush1.msra.mxu0 0.0
    %137 = vmatprep.subr.mxu0 0.0
    %138 = vmatpush1.msra.mxu0 0.0
    %139 = vmatprep.subr.mxu0 0.0
    %140 = vmatpush1.msra.mxu0 0.0
    %141 = vmatprep.subr.mxu0 0.0
    %142 = vmatpush1.msra.mxu0 0.0
    %143 = vmatprep.subr.mxu0 0.0
    %144 = vmatpush1.msra.mxu0 0.0
    %145 = vmatprep.subr.mxu0 0.0
    %146 = vmatpush1.msra.mxu0 0.0
    %147 = vmatprep.subr.mxu0 0.0
    %148 = vmatpush1.msra.mxu0 0.0
    %149 = vmatprep.subr.mxu0 0.0
    %150 = vmatpush1.msra.mxu0 0.0
    %151 = vmatprep.subr.mxu0 0.0
    %152 = vmatpush1.msra.mxu0 0.0
    %153 = vmatprep.subr.mxu0 0.0
    %154 = vmatpush1.msra.mxu0 0.0
    %155 = vmatprep.subr.mxu0 0.0
    %156 = vmatpush1.msra.mxu0 0.0
    %157 = vmatprep.subr.mxu0 0.0
    %158 = vmatpush1.msra.mxu0 0.0
    %159 = vmatprep.subr.mxu0 0.0
    %160 = vmatpush1.msra.mxu0 0.0
    %161 = vmatprep.subr.mxu0 0.0
    %162 = vmatpush1.msra.mxu0 0.0
    %163 = vmatprep.subr.mxu0 0.0
    %164 = vmatpush1.msra.mxu0 0.0
    %165 = vmatprep.subr.mxu0 0.0
    %166 = vmatpush1.msra.mxu0 0.0
    %167 = vmatprep.subr.mxu0 0.0
    %168 = vmatpush1.msra.mxu0 0.0
    %169 = vmatprep.subr.mxu0 0.0
    %170 = vmatpush1.msra.mxu0 0.0
    %171 = vmatprep.subr.mxu0 0.0
    %172 = vmatpush1.msra.mxu0 0.0
    %173 = vmatprep.subr.mxu0 0.0
    %174 = vmatpush1.msra.mxu0 0.0
    %175 = vmatprep.subr.mxu0 0.0
    %176 = vmatpush1.msra.mxu0 0.0
    %177 = vmatprep.subr.mxu0 0.0
    %178 = vmatpush1.msra.mxu0 0.0
    %179 = vmatprep.subr.mxu0 0.0
    %180 = vmatpush1.msra.mxu0 0.0
    %181 = vmatprep.subr.mxu0 0.0
    %182 = vmatpush1.msra.mxu0 0.0
    %183 = vmatprep.subr.mxu0 0.0
    %184 = vmatpush1.msra.mxu0 0.0
    %185 = vmatprep.subr.mxu0 0.0
    %186 = vmatpush1.msra.mxu0 0.0
    %187 = vmatprep.subr.mxu0 0.0
    %188 = vmatpush1.msra.mxu0 0.0
    %189 = vmatprep.subr.mxu0 0.0
    %190 = vmatpush1.msra.mxu0 0.0
    %191 = vmatprep.mubr.f32.mxu0 0.0
    %192 = vmatmul.mubr.f32.gmra.mrb[0].mxu0 %v121
    %v193 = vpop.f32.mrb[0].mxu0
    %v194 = vadd.f32 0.0, %v193
    %v195 = vpop.f32.mrb[0].mxu0
    %196 = vdwg.mxu0
    %v197 = vsel %vm120, %v110, 0
    %v200 = vsel %vm123, %v113, 0
    %202 = vmatprep.subr.mxu0 0.0
    %203 = vmatpush1.msra.mxu0 %v111
    %204 = vmatprep.subr.mxu0 0.0
    %205 = vmatpush1.msra.mxu0 %v112
    %206 = vmatprep.subr.mxu0 0.0
    %207 = vmatpush1.msra.mxu0 %v200
    %208 = vmatprep.subr.mxu0 0.0
    %209 = vmatpush1.msra.mxu0 0.0
    %210 = vmatprep.subr.mxu0 0.0
    %211 = vmatpush1.msra.mxu0 0.0
    %212 = vmatprep.subr.mxu0 0.0
    %213 = vmatpush1.msra.mxu0 0.0
    %214 = vmatprep.subr.mxu0 0.0
    %215 = vmatpush1.msra.mxu0 0.0
    %216 = vmatprep.subr.mxu0 0.0
    %217 = vmatpush1.msra.mxu0 0.0
    %218 = vmatprep.subr.mxu0 0.0
    %219 = vmatpush1.msra.mxu0 0.0
    %220 = vmatprep.subr.mxu0 0.0
    %221 = vmatpush1.msra.mxu0 0.0
    %222 = vmatprep.subr.mxu0 0.0
    %223 = vmatpush1.msra.mxu0 0.0
    %224 = vmatprep.subr.mxu0 0.0
    %225 = vmatpush1.msra.mxu0 0.0
    %226 = vmatprep.subr.mxu0 0.0
    %227 = vmatpush1.msra.mxu0 0.0
    %228 = vmatprep.subr.mxu0 0.0
    %229 = vmatpush1.msra.mxu0 0.0
    %230 = vmatprep.subr.mxu0 0.0
    %231 = vmatpush1.msra.mxu0 0.0
    %232 = vmatprep.subr.mxu0 0.0
    %233 = vmatpush1.msra.mxu0 0.0
    %234 = vmatprep.subr.mxu0 0.0
    %235 = vmatpush1.msra.mxu0 0.0
    %236 = vmatprep.subr.mxu0 0.0
    %237 = vmatpush1.msra.mxu0 0.0
    %238 = vmatprep.subr.mxu0 0.0
    %239 = vmatpush1.msra.mxu0 0.0
    %240 = vmatprep.subr.mxu0 0.0
    %241 = vmatpush1.msra.mxu0 0.0
    %242 = vmatprep.subr.mxu0 0.0
    %243 = vmatpush1.msra.mxu0 0.0
    %244 = vmatprep.subr.mxu0 0.0
    %245 = vmatpush1.msra.mxu0 0.0
    %246 = vmatprep.subr.mxu0 0.0
    %247 = vmatpush1.msra.mxu0 0.0
    %248 = vmatprep.subr.mxu0 0.0
    %249 = vmatpush1.msra.mxu0 0.0
    %250 = vmatprep.subr.mxu0 0.0
    %251 = vmatpush1.msra.mxu0 0.0
    %252 = vmatprep.subr.mxu0 0.0
    %253 = vmatpush1.msra.mxu0 0.0
    %254 = vmatprep.subr.mxu0 0.0
    %255 = vmatpush1.msra.mxu0 0.0
    %256 = vmatprep.subr.mxu0 0.0
    %257 = vmatpush1.msra.mxu0 0.0
    %258 = vmatprep.subr.mxu0 0.0
    %259 = vmatpush1.msra.mxu0 0.0
    %260 = vmatprep.subr.mxu0 0.0
    %261 = vmatpush1.msra.mxu0 0.0
    %262 = vmatprep.subr.mxu0 0.0
    %263 = vmatpush1.msra.mxu0 0.0
    %264 = vmatprep.subr.mxu0 0.0
    %265 = vmatpush1.msra.mxu0 0.0
    %266 = vmatprep.mubr.f32.mxu0 0.0
    %267 = vmatmul.mubr.f32.gmra.mrb[0].mxu0 %v197
    %v268 = vpop.f32.mrb[0].mxu0
    %v269 = vadd.f32 %v194, %v268
    %v270 = vpop.f32.mrb[0].mxu0
    %271 = vdwg.mxu0
    %v272 = vld [vmem:[%s3] sm:$0x1]
    %v274 = vlaneseq
    %v275 = vshrl.u32 %v274, 7
    %v276 = vsub.s32 0, %v275
    %v277 = vrot.slane %v272, %v276
    %v279 = vadd.f32 %v269, %v277
    %v280 = vmax.f32 %v279, 0.0
    %v281 = vld [vmem:[%s4] sm:$0xff]
    %v282 = vld [vmem:[%s4 + $0x8] sm:$0xff]
    %v283 = vld [vmem:[%s4 + $0x10] sm:$0xff]
    %v284 = vld [vmem:[%s4 + $0x18] sm:$0xff]
    %v285 = vld [vmem:[%s4 + $0x20] sm:$0xff]
    %v286 = vld [vmem:[%s4 + $0x28] sm:$0xff]
    %v287 = vld [vmem:[%s4 + $0x30] sm:$0xff]
    %v288 = vld [vmem:[%s4 + $0x38] sm:$0xff]
    %v289 = vld [vmem:[%s4 + $0x40] sm:$0xff]
    %v290 = vld [vmem:[%s4 + $0x48] sm:$0xff]
    %v291 = vld [vmem:[%s4 + $0x50] sm:$0xff]
    %v292 = vld [vmem:[%s4 + $0x58] sm:$0xff]
    %v293 = vld [vmem:[%s4 + $0x60] sm:$0xff]
    %v294 = vld [vmem:[%s4 + $0x68] sm:$0xff]
    %v295 = vld [vmem:[%s4 + $0x70] sm:$0xff]
    %v296 = vld [vmem:[%s4 + $0x78] sm:$0xff]
    %v297 = vld [vmem:[%s4 + $0x80] sm:$0xff]
    %v298 = vld [vmem:[%s4 + $0x88] sm:$0xff]
    %v299 = vld [vmem:[%s4 + $0x90] sm:$0xff]
    %v300 = vld [vmem:[%s4 + $0x98] sm:$0xff]
    %v301 = vld [vmem:[%s4 + $0xa0] sm:$0xff]
    %v302 = vld [vmem:[%s4 + $0xa8] sm:$0xff]
    %v303 = vld [vmem:[%s4 + $0xb0] sm:$0xff]
    %v304 = vld [vmem:[%s4 + $0xb8] sm:$0xff]
    %s305 = scalar_lea.vmem %s4, 192
    %v306 = vld [vmem:[%s305] sm:$0xff]
    %v307 = vld [vmem:[%s305 + $0x8] sm:$0xff]
    %v308 = vld [vmem:[%s305 + $0x10] sm:$0xff]
    %v309 = vld [vmem:[%s305 + $0x18] sm:$0xff]
    %v310 = vld [vmem:[%s305 + $0x20] sm:$0xff]
    %v311 = vld [vmem:[%s305 + $0x28] sm:$0xff]
    %v312 = vld [vmem:[%s305 + $0x30] sm:$0xff]
    %v313 = vld [vmem:[%s305 + $0x38] sm:$0xff]
    %v314 = vld [vmem:[%s305 + $0x40] sm:$0xff]
    %v315 = vld [vmem:[%s305 + $0x48] sm:$0xff]
    %v316 = vld [vmem:[%s305 + $0x50] sm:$0xff]
    %v317 = vld [vmem:[%s305 + $0x58] sm:$0xff]
    %v318 = vld [vmem:[%s305 + $0x60] sm:$0xff]
    %v319 = vld [vmem:[%s305 + $0x68] sm:$0xff]
    %v320 = vld [vmem:[%s305 + $0x70] sm:$0xff]
    %v321 = vld [vmem:[%s305 + $0x78] sm:$0xff]
    %v322 = vld [vmem:[%s305 + $0x80] sm:$0xff]
    %v323 = vld [vmem:[%s305 + $0x88] sm:$0xff]
    %v324 = vld [vmem:[%s305 + $0x90] sm:$0xff]
    %v325 = vld [vmem:[%s305 + $0x98] sm:$0xff]
    %v326 = vld [vmem:[%s305 + $0xa0] sm:$0xff]
    %v327 = vld [vmem:[%s305 + $0xa8] sm:$0xff]
    %v328 = vld [vmem:[%s305 + $0xb0] sm:$0xff]
    %v329 = vld [vmem:[%s305 + $0xb8] sm:$0xff]
    %v331 = vrot.slane %v280, 1
    %vm332 = vcmask 785408
    %v333 = vsel %vm332, %v331, 0
    %335 = vmatprep.subr.mxu0 %v307
    %336 = vmatpush1.msra.mxu0 %v306
    %337 = vmatprep.subr.mxu0 %v309
    %338 = vmatpush1.msra.mxu0 %v308
    %339 = vmatprep.subr.mxu0 %v311
    %340 = vmatpush1.msra.mxu0 %v310
    %341 = vmatprep.subr.mxu0 %v313
    %342 = vmatpush1.msra.mxu0 %v312
    %343 = vmatprep.subr.mxu0 %v315
    %344 = vmatpush1.msra.mxu0 %v314
    %345 = vmatprep.subr.mxu0 %v317
    %346 = vmatpush1.msra.mxu0 %v316
    %347 = vmatprep.subr.mxu0 %v319
    %348 = vmatpush1.msra.mxu0 %v318
    %349 = vmatprep.subr.mxu0 %v321
    %350 = vmatpush1.msra.mxu0 %v320
    %351 = vmatprep.subr.mxu0 %v323
    %352 = vmatpush1.msra.mxu0 %v322
    %353 = vmatprep.subr.mxu0 %v325
    %354 = vmatpush1.msra.mxu0 %v324
    %355 = vmatprep.subr.mxu0 %v327
    %356 = vmatpush1.msra.mxu0 %v326
    %357 = vmatprep.subr.mxu0 %v329
    %358 = vmatpush1.msra.mxu0 %v328
    %359 = vmatprep.subr.mxu0 0.0
    %360 = vmatpush1.msra.mxu0 0.0
    %361 = vmatprep.subr.mxu0 0.0
    %362 = vmatpush1.msra.mxu0 0.0
    %363 = vmatprep.subr.mxu0 0.0
    %364 = vmatpush1.msra.mxu0 0.0
    %365 = vmatprep.subr.mxu0 0.0
    %366 = vmatpush1.msra.mxu0 0.0
    %367 = vmatprep.subr.mxu0 0.0
    %368 = vmatpush1.msra.mxu0 0.0
    %369 = vmatprep.subr.mxu0 0.0
    %370 = vmatpush1.msra.mxu0 0.0
    %371 = vmatprep.subr.mxu0 0.0
    %372 = vmatpush1.msra.mxu0 0.0
    %373 = vmatprep.subr.mxu0 0.0
    %374 = vmatpush1.msra.mxu0 0.0
    %375 = vmatprep.subr.mxu0 0.0
    %376 = vmatpush1.msra.mxu0 0.0
    %377 = vmatprep.subr.mxu0 0.0
    %378 = vmatpush1.msra.mxu0 0.0
    %379 = vmatprep.subr.mxu0 0.0
    %380 = vmatpush1.msra.mxu0 0.0
    %381 = vmatprep.subr.mxu0 0.0
    %382 = vmatpush1.msra.mxu0 0.0
    %383 = vmatprep.subr.mxu0 0.0
    %384 = vmatpush1.msra.mxu0 0.0
    %385 = vmatprep.subr.mxu0 0.0
    %386 = vmatpush1.msra.mxu0 0.0
    %387 = vmatprep.subr.mxu0 0.0
    %388 = vmatpush1.msra.mxu0 0.0
    %389 = vmatprep.subr.mxu0 0.0
    %390 = vmatpush1.msra.mxu0 0.0
    %391 = vmatprep.subr.mxu0 0.0
    %392 = vmatpush1.msra.mxu0 0.0
    %393 = vmatprep.subr.mxu0 0.0
    %394 = vmatpush1.msra.mxu0 0.0
    %395 = vmatprep.subr.mxu0 0.0
    %396 = vmatpush1.msra.mxu0 0.0
    %397 = vmatprep.subr.mxu0 0.0
    %398 = vmatpush1.msra.mxu0 0.0
    %399 = vmatprep.mubr.f32.mxu0 0.0
    %400 = vmatmul.mubr.f32.gmra.mrb[0].mxu0 %v333
    %v401 = vpop.f32.mrb[0].mxu0
    %v402 = vadd.f32 0.0, %v401
    %v403 = vpop.f32.mrb[0].mxu0
    %v404 = vadd.f32 0.0, %v403
    %405 = vdwg.mxu0
    %v406 = vsel %vm332, %v280, 0
    %408 = vmatprep.subr.mxu0 %v282
    %409 = vmatpush1.msra.mxu0 %v281
    %410 = vmatprep.subr.mxu0 %v284
    %411 = vmatpush1.msra.mxu0 %v283
    %412 = vmatprep.subr.mxu0 %v286
    %413 = vmatpush1.msra.mxu0 %v285
    %414 = vmatprep.subr.mxu0 %v288
    %415 = vmatpush1.msra.mxu0 %v287
    %416 = vmatprep.subr.mxu0 %v290
    %417 = vmatpush1.msra.mxu0 %v289
    %418 = vmatprep.subr.mxu0 %v292
    %419 = vmatpush1.msra.mxu0 %v291
    %420 = vmatprep.subr.mxu0 %v294
    %421 = vmatpush1.msra.mxu0 %v293
    %422 = vmatprep.subr.mxu0 %v296
    %423 = vmatpush1.msra.mxu0 %v295
    %424 = vmatprep.subr.mxu0 %v298
    %425 = vmatpush1.msra.mxu0 %v297
    %426 = vmatprep.subr.mxu0 %v300
    %427 = vmatpush1.msra.mxu0 %v299
    %428 = vmatprep.subr.mxu0 %v302
    %429 = vmatpush1.msra.mxu0 %v301
    %430 = vmatprep.subr.mxu0 %v304
    %431 = vmatpush1.msra.mxu0 %v303
    %432 = vmatprep.subr.mxu0 0.0
    %433 = vmatpush1.msra.mxu0 0.0
    %434 = vmatprep.subr.mxu0 0.0
    %435 = vmatpush1.msra.mxu0 0.0
    %436 = vmatprep.subr.mxu0 0.0
    %437 = vmatpush1.msra.mxu0 0.0
    %438 = vmatprep.subr.mxu0 0.0
    %439 = vmatpush1.msra.mxu0 0.0
    %440 = vmatprep.subr.mxu0 0.0
    %441 = vmatpush1.msra.mxu0 0.0
    %442 = vmatprep.subr.mxu0 0.0
    %443 = vmatpush1.msra.mxu0 0.0
    %444 = vmatprep.subr.mxu0 0.0
    %445 = vmatpush1.msra.mxu0 0.0
    %446 = vmatprep.subr.mxu0 0.0
    %447 = vmatpush1.msra.mxu0 0.0
    %448 = vmatprep.subr.mxu0 0.0
    %449 = vmatpush1.msra.mxu0 0.0
    %450 = vmatprep.subr.mxu0 0.0
    %451 = vmatpush1.msra.mxu0 0.0
    %452 = vmatprep.subr.mxu0 0.0
    %453 = vmatpush1.msra.mxu0 0.0
    %454 = vmatprep.subr.mxu0 0.0
    %455 = vmatpush1.msra.mxu0 0.0
    %456 = vmatprep.subr.mxu0 0.0
    %457 = vmatpush1.msra.mxu0 0.0
    %458 = vmatprep.subr.mxu0 0.0
    %459 = vmatpush1.msra.mxu0 0.0
    %460 = vmatprep.subr.mxu0 0.0
    %461 = vmatpush1.msra.mxu0 0.0
    %462 = vmatprep.subr.mxu0 0.0
    %463 = vmatpush1.msra.mxu0 0.0
    %464 = vmatprep.subr.mxu0 0.0
    %465 = vmatpush1.msra.mxu0 0.0
    %466 = vmatprep.subr.mxu0 0.0
    %467 = vmatpush1.msra.mxu0 0.0
    %468 = vmatprep.subr.mxu0 0.0
    %469 = vmatpush1.msra.mxu0 0.0
    %470 = vmatprep.subr.mxu0 0.0
    %471 = vmatpush1.msra.mxu0 0.0
    %472 = vmatprep.mubr.f32.mxu0 0.0
    %473 = vmatmul.mubr.f32.gmra.mrb[0].mxu0 %v406
    %v474 = vpop.f32.mrb[0].mxu0
    %v475 = vadd.f32 %v402, %v474
    %v476 = vpop.f32.mrb[0].mxu0
    %v477 = vadd.f32 %v404, %v476
    %478 = vdwg.mxu0
    %v479 = vld [vmem:[%s5] sm:$0x3]
    %v481 = vlaneseq
    %v482 = vshrl.u32 %v481, 7
    %v483 = vsub.s32 0, %v482
    %v484 = vrot.slane %v479, %v483
    %v485 = vlaneseq
    %v486 = vshrl.u32 %v485, 7
    %v487 = vsub.s32 1, %v486
    %v488 = vrot.slane %v479, %v487
    %v491 = vadd.f32 %v475, %v484
    %v492 = vadd.f32 %v477, %v488
    %v493 = vmax.f32 %v491, 0.0
    %v494 = vmax.f32 %v492, 0.0
    %v495 = vld [vmem:[%s6] sm:$0xff]
    %v496 = vld [vmem:[%s6 + $0x8] sm:$0xff]
    %v497 = vld [vmem:[%s6 + $0x10] sm:$0xff]
    %v498 = vld [vmem:[%s6 + $0x18] sm:$0xff]
    %v499 = vld [vmem:[%s6 + $0x20] sm:$0xff]
    %v500 = vld [vmem:[%s6 + $0x28] sm:$0xff]
    %v501 = vld [vmem:[%s6 + $0x30] sm:$0xff]
    %v502 = vld [vmem:[%s6 + $0x38] sm:$0xff]
    %v503 = vld [vmem:[%s6 + $0x40] sm:$0xff]
    %v504 = vld [vmem:[%s6 + $0x48] sm:$0xff]
    %v505 = vld [vmem:[%s6 + $0x50] sm:$0xff]
    %v506 = vld [vmem:[%s6 + $0x58] sm:$0xff]
    %v507 = vld [vmem:[%s6 + $0x60] sm:$0xff]
    %v508 = vld [vmem:[%s6 + $0x68] sm:$0xff]
    %v509 = vld [vmem:[%s6 + $0x70] sm:$0xff]
    %v510 = vld [vmem:[%s6 + $0x78] sm:$0xff]
    %v511 = vld [vmem:[%s6 + $0x80] sm:$0xff]
    %v512 = vld [vmem:[%s6 + $0x88] sm:$0xff]
    %v513 = vld [vmem:[%s6 + $0x90] sm:$0xff]
    %v514 = vld [vmem:[%s6 + $0x98] sm:$0xff]
    %v515 = vld [vmem:[%s6 + $0xa0] sm:$0xff]
    %v516 = vld [vmem:[%s6 + $0xa8] sm:$0xff]
    %v517 = vld [vmem:[%s6 + $0xb0] sm:$0xff]
    %v518 = vld [vmem:[%s6 + $0xb8] sm:$0xff]
    %v519 = vld [vmem:[%s6 + $0xc0] sm:$0xff]
    %v520 = vld [vmem:[%s6 + $0xc8] sm:$0xff]
    %v521 = vld [vmem:[%s6 + $0xd0] sm:$0xff]
    %v522 = vld [vmem:[%s6 + $0xd8] sm:$0xff]
    %v523 = vld [vmem:[%s6 + $0xe0] sm:$0xff]
    %v524 = vld [vmem:[%s6 + $0xe8] sm:$0xff]
    %v525 = vld [vmem:[%s6 + $0xf0] sm:$0xff]
    %v526 = vld [vmem:[%s6 + $0xf8] sm:$0xff]
    %v527 = vld [vmem:[%s6 + $0x100] sm:$0xff]
    %v528 = vld [vmem:[%s6 + $0x108] sm:$0xff]
    %v529 = vld [vmem:[%s6 + $0x110] sm:$0xff]
    %v530 = vld [vmem:[%s6 + $0x118] sm:$0xff]
    %v531 = vld [vmem:[%s6 + $0x120] sm:$0xff]
    %v532 = vld [vmem:[%s6 + $0x128] sm:$0xff]
    %v533 = vld [vmem:[%s6 + $0x130] sm:$0xff]
    %v534 = vld [vmem:[%s6 + $0x138] sm:$0xff]
    %s535 = scalar_lea.vmem %s6, 320
    %v536 = vld [vmem:[%s535] sm:$0xff]
    %v537 = vld [vmem:[%s535 + $0x8] sm:$0xff]
    %v538 = vld [vmem:[%s535 + $0x10] sm:$0xff]
    %v539 = vld [vmem:[%s535 + $0x18] sm:$0xff]
    %v540 = vld [vmem:[%s535 + $0x20] sm:$0xff]
    %v541 = vld [vmem:[%s535 + $0x28] sm:$0xff]
    %v542 = vld [vmem:[%s535 + $0x30] sm:$0xff]
    %v543 = vld [vmem:[%s535 + $0x38] sm:$0xff]
    %v544 = vld [vmem:[%s535 + $0x40] sm:$0xff]
    %v545 = vld [vmem:[%s535 + $0x48] sm:$0xff]
    %v546 = vld [vmem:[%s535 + $0x50] sm:$0xff]
    %v547 = vld [vmem:[%s535 + $0x58] sm:$0xff]
    %v548 = vld [vmem:[%s535 + $0x60] sm:$0xff]
    %v549 = vld [vmem:[%s535 + $0x68] sm:$0xff]
    %v550 = vld [vmem:[%s535 + $0x70] sm:$0xff]
    %v551 = vld [vmem:[%s535 + $0x78] sm:$0xff]
    %v552 = vld [vmem:[%s535 + $0x80] sm:$0xff]
    %v553 = vld [vmem:[%s535 + $0x88] sm:$0xff]
    %v554 = vld [vmem:[%s535 + $0x90] sm:$0xff]
    %v555 = vld [vmem:[%s535 + $0x98] sm:$0xff]
    %v556 = vld [vmem:[%s535 + $0xa0] sm:$0xff]
    %v557 = vld [vmem:[%s535 + $0xa8] sm:$0xff]
    %v558 = vld [vmem:[%s535 + $0xb0] sm:$0xff]
    %v559 = vld [vmem:[%s535 + $0xb8] sm:$0xff]
    %v560 = vld [vmem:[%s535 + $0xc0] sm:$0xff]
    %v561 = vld [vmem:[%s535 + $0xc8] sm:$0xff]
    %v562 = vld [vmem:[%s535 + $0xd0] sm:$0xff]
    %v563 = vld [vmem:[%s535 + $0xd8] sm:$0xff]
    %v564 = vld [vmem:[%s535 + $0xe0] sm:$0xff]
    %v565 = vld [vmem:[%s535 + $0xe8] sm:$0xff]
    %v566 = vld [vmem:[%s535 + $0xf0] sm:$0xff]
    %v567 = vld [vmem:[%s535 + $0xf8] sm:$0xff]
    %v568 = vld [vmem:[%s535 + $0x100] sm:$0xff]
    %v569 = vld [vmem:[%s535 + $0x108] sm:$0xff]
    %v570 = vld [vmem:[%s535 + $0x110] sm:$0xff]
    %v571 = vld [vmem:[%s535 + $0x118] sm:$0xff]
    %v572 = vld [vmem:[%s535 + $0x120] sm:$0xff]
    %v573 = vld [vmem:[%s535 + $0x128] sm:$0xff]
    %v574 = vld [vmem:[%s535 + $0x130] sm:$0xff]
    %v575 = vld [vmem:[%s535 + $0x138] sm:$0xff]
    %v578 = vrot.slane %v493, 1
    %v579 = vrot.slane %v494, 1
    %vm581 = vcmask 261120
    %v582 = vsel %vm581, %v579, 0
    %584 = vmatprep.subr.mxu0 %v537
    %585 = vmatpush1.msra.mxu0 %v536
    %586 = vmatprep.subr.mxu0 %v539
    %587 = vmatpush1.msra.mxu0 %v538
    %588 = vmatprep.subr.mxu0 %v541
    %589 = vmatpush1.msra.mxu0 %v540
    %590 = vmatprep.subr.mxu0 %v543
    %591 = vmatpush1.msra.mxu0 %v542
    %592 = vmatprep.subr.mxu0 %v545
    %593 = vmatpush1.msra.mxu0 %v544
    %594 = vmatprep.subr.mxu0 %v547
    %595 = vmatpush1.msra.mxu0 %v546
    %596 = vmatprep.subr.mxu0 %v549
    %597 = vmatpush1.msra.mxu0 %v548
    %598 = vmatprep.subr.mxu0 %v551
    %599 = vmatpush1.msra.mxu0 %v550
    %600 = vmatprep.subr.mxu0 %v553
    %601 = vmatpush1.msra.mxu0 %v552
    %602 = vmatprep.subr.mxu0 %v555
    %603 = vmatpush1.msra.mxu0 %v554
    %604 = vmatprep.subr.mxu0 %v557
    %605 = vmatpush1.msra.mxu0 %v556
    %606 = vmatprep.subr.mxu0 %v559
    %607 = vmatpush1.msra.mxu0 %v558
    %608 = vmatprep.subr.mxu0 %v561
    %609 = vmatpush1.msra.mxu0 %v560
    %610 = vmatprep.subr.mxu0 %v563
    %611 = vmatpush1.msra.mxu0 %v562
    %612 = vmatprep.subr.mxu0 %v565
    %613 = vmatpush1.msra.mxu0 %v564
    %614 = vmatprep.subr.mxu0 %v567
    %615 = vmatpush1.msra.mxu0 %v566
    %616 = vmatprep.subr.mxu0 %v569
    %617 = vmatpush1.msra.mxu0 %v568
    %618 = vmatprep.subr.mxu0 %v571
    %619 = vmatpush1.msra.mxu0 %v570
    %620 = vmatprep.subr.mxu0 %v573
    %621 = vmatpush1.msra.mxu0 %v572
    %622 = vmatprep.subr.mxu0 %v575
    %623 = vmatpush1.msra.mxu0 %v574
    %624 = vmatprep.subr.mxu0 0.0
    %625 = vmatpush1.msra.mxu0 0.0
    %626 = vmatprep.subr.mxu0 0.0
    %627 = vmatpush1.msra.mxu0 0.0
    %628 = vmatprep.subr.mxu0 0.0
    %629 = vmatpush1.msra.mxu0 0.0
    %630 = vmatprep.subr.mxu0 0.0
    %631 = vmatpush1.msra.mxu0 0.0
    %632 = vmatprep.subr.mxu0 0.0
    %633 = vmatpush1.msra.mxu0 0.0
    %634 = vmatprep.subr.mxu0 0.0
    %635 = vmatpush1.msra.mxu0 0.0
    %636 = vmatprep.subr.mxu0 0.0
    %637 = vmatpush1.msra.mxu0 0.0
    %638 = vmatprep.subr.mxu0 0.0
    %639 = vmatpush1.msra.mxu0 0.0
    %640 = vmatprep.subr.mxu0 0.0
    %641 = vmatpush1.msra.mxu0 0.0
    %642 = vmatprep.subr.mxu0 0.0
    %643 = vmatpush1.msra.mxu0 0.0
    %644 = vmatprep.subr.mxu0 0.0
    %645 = vmatpush1.msra.mxu0 0.0
    %646 = vmatprep.subr.mxu0 0.0
    %647 = vmatpush1.msra.mxu0 0.0
    %648 = vmatprep.mubr.f32.mxu0 %v582
    %649 = vmatmul.mubr.f32.gmra.mrb[0].mxu0 %v578
    %v650 = vpop.f32.mrb[0].mxu0
    %v651 = vadd.f32 0.0, %v650
    %v652 = vpop.f32.mrb[0].mxu0
    %v653 = vadd.f32 0.0, %v652
    %654 = vdwg.mxu0
    %v655 = vsel %vm581, %v494, 0
    %657 = vmatprep.subr.mxu0 %v496
    %658 = vmatpush1.msra.mxu0 %v495
    %659 = vmatprep.subr.mxu0 %v498
    %660 = vmatpush1.msra.mxu0 %v497
    %661 = vmatprep.subr.mxu0 %v500
    %662 = vmatpush1.msra.mxu0 %v499
    %663 = vmatprep.subr.mxu0 %v502
    %664 = vmatpush1.msra.mxu0 %v501
    %665 = vmatprep.subr.mxu0 %v504
    %666 = vmatpush1.msra.mxu0 %v503
    %667 = vmatprep.subr.mxu0 %v506
    %668 = vmatpush1.msra.mxu0 %v505
    %669 = vmatprep.subr.mxu0 %v508
    %670 = vmatpush1.msra.mxu0 %v507
    %671 = vmatprep.subr.mxu0 %v510
    %672 = vmatpush1.msra.mxu0 %v509
    %673 = vmatprep.subr.mxu0 %v512
    %674 = vmatpush1.msra.mxu0 %v511
    %675 = vmatprep.subr.mxu0 %v514
    %676 = vmatpush1.msra.mxu0 %v513
    %677 = vmatprep.subr.mxu0 %v516
    %678 = vmatpush1.msra.mxu0 %v515
    %679 = vmatprep.subr.mxu0 %v518
    %680 = vmatpush1.msra.mxu0 %v517
    %681 = vmatprep.subr.mxu0 %v520
    %682 = vmatpush1.msra.mxu0 %v519
    %683 = vmatprep.subr.mxu0 %v522
    %684 = vmatpush1.msra.mxu0 %v521
    %685 = vmatprep.subr.mxu0 %v524
    %686 = vmatpush1.msra.mxu0 %v523
    %687 = vmatprep.subr.mxu0 %v526
    %688 = vmatpush1.msra.mxu0 %v525
    %689 = vmatprep.subr.mxu0 %v528
    %690 = vmatpush1.msra.mxu0 %v527
    %691 = vmatprep.subr.mxu0 %v530
    %692 = vmatpush1.msra.mxu0 %v529
    %693 = vmatprep.subr.mxu0 %v532
    %694 = vmatpush1.msra.mxu0 %v531
    %695 = vmatprep.subr.mxu0 %v534
    %696 = vmatpush1.msra.mxu0 %v533
    %697 = vmatprep.subr.mxu0 0.0
    %698 = vmatpush1.msra.mxu0 0.0
    %699 = vmatprep.subr.mxu0 0.0
    %700 = vmatpush1.msra.mxu0 0.0
    %701 = vmatprep.subr.mxu0 0.0
    %702 = vmatpush1.msra.mxu0 0.0
    %703 = vmatprep.subr.mxu0 0.0
    %704 = vmatpush1.msra.mxu0 0.0
    %705 = vmatprep.subr.mxu0 0.0
    %706 = vmatpush1.msra.mxu0 0.0
    %707 = vmatprep.subr.mxu0 0.0
    %708 = vmatpush1.msra.mxu0 0.0
    %709 = vmatprep.subr.mxu0 0.0
    %710 = vmatpush1.msra.mxu0 0.0
    %711 = vmatprep.subr.mxu0 0.0
    %712 = vmatpush1.msra.mxu0 0.0
    %713 = vmatprep.subr.mxu0 0.0
    %714 = vmatpush1.msra.mxu0 0.0
    %715 = vmatprep.subr.mxu0 0.0
    %716 = vmatpush1.msra.mxu0 0.0
    %717 = vmatprep.subr.mxu0 0.0
    %718 = vmatpush1.msra.mxu0 0.0
    %719 = vmatprep.subr.mxu0 0.0
    %720 = vmatpush1.msra.mxu0 0.0
    %721 = vmatprep.mubr.f32.mxu0 %v655
    %722 = vmatmul.mubr.f32.gmra.mrb[0].mxu0 %v493
    %v723 = vpop.f32.mrb[0].mxu0
    %v724 = vadd.f32 %v651, %v723
    %v725 = vpop.f32.mrb[0].mxu0
    %v726 = vadd.f32 %v653, %v725
    %727 = vdwg.mxu0
    %v728 = vld [vmem:[%s7] sm:$0x3]
    %v730 = vlaneseq
    %v731 = vshrl.u32 %v730, 7
    %v732 = vsub.s32 0, %v731
    %v733 = vrot.slane %v728, %v732
    %v734 = vlaneseq
    %v735 = vshrl.u32 %v734, 7
    %v736 = vsub.s32 1, %v735
    %v737 = vrot.slane %v728, %v736
    %v740 = vadd.f32 %v724, %v733
    %v741 = vadd.f32 %v726, %v737
    %v742 = vmax.f32 %v740, 0.0
    %v743 = vmax.f32 %v741, 0.0
    %v744 = vld [vmem:[%s9] sm:$0x1]
    %v745 = vld [vmem:[#allocation5] sm:$0xff]
    %v746 = vld [vmem:[#allocation5 + $0x8] sm:$0xff]
    %v747 = vld [vmem:[#allocation5 + $0x10] sm:$0xff]
    %v748 = vld [vmem:[#allocation5 + $0x18] sm:$0xff]
    %v749 = vld [vmem:[#allocation5 + $0x20] sm:$0xff]
    %v750 = vld [vmem:[#allocation5 + $0x28] sm:$0xff]
    %v751 = vld [vmem:[#allocation5 + $0x30] sm:$0xff]
    %v752 = vld [vmem:[#allocation5 + $0x38] sm:$0xff]
    %v753 = vld [vmem:[#allocation5 + $0x40] sm:$0xff]
    %v754 = vld [vmem:[#allocation5 + $0x48] sm:$0xff]
    %v755 = vld [vmem:[#allocation5 + $0x50] sm:$0xff]
    %v756 = vld [vmem:[#allocation5 + $0x58] sm:$0xff]
    %v757 = vld [vmem:[#allocation5 + $0x60] sm:$0xff]
    %v758 = vld [vmem:[#allocation5 + $0x68] sm:$0xff]
    %v759 = vld [vmem:[#allocation5 + $0x70] sm:$0xff]
    %v760 = vld [vmem:[#allocation5 + $0x78] sm:$0xff]
    %v761 = vld [vmem:[#allocation5 + $0x80] sm:$0xff]
    %v762 = vld [vmem:[#allocation5 + $0x88] sm:$0xff]
    %v763 = vld [vmem:[#allocation5 + $0x90] sm:$0xff]
    %v764 = vld [vmem:[#allocation5 + $0x98] sm:$0xff]
    %v765 = vld [vmem:[#allocation5 + $0xa0] sm:$0xff]
    %v766 = vld [vmem:[#allocation5 + $0xa8] sm:$0xff]
    %v767 = vld [vmem:[#allocation5 + $0xb0] sm:$0xff]
    %v768 = vld [vmem:[#allocation5 + $0xb8] sm:$0xff]
    %v769 = vld [vmem:[#allocation5 + $0xc0] sm:$0xff]
    %v770 = vld [vmem:[#allocation5 + $0xc8] sm:$0xff]
    %v771 = vld [vmem:[#allocation5 + $0xd0] sm:$0xff]
    %v772 = vld [vmem:[#allocation5 + $0xd8] sm:$0xff]
    %v773 = vld [vmem:[#allocation5 + $0xe0] sm:$0xff]
    %v774 = vld [vmem:[#allocation5 + $0xe8] sm:$0xff]
    %v775 = vld [vmem:[#allocation5 + $0xf0] sm:$0xff]
    %v776 = vld [vmem:[#allocation5 + $0xf8] sm:$0xff]
    %777 = vmatprep.subr.mxu0 0.0
    %778 = vmatpush1.msra.mxu0 %v745
    %779 = vmatprep.subr.mxu0 0.0
    %780 = vmatpush1.msra.mxu0 %v746
    %781 = vmatprep.subr.mxu0 0.0
    %782 = vmatpush1.msra.mxu0 %v747
    %783 = vmatprep.subr.mxu0 0.0
    %784 = vmatpush1.msra.mxu0 %v748
    %785 = vmatprep.subr.mxu0 0.0
    %786 = vmatpush1.msra.mxu0 %v749
    %787 = vmatprep.subr.mxu0 0.0
    %788 = vmatpush1.msra.mxu0 %v750
    %789 = vmatprep.subr.mxu0 0.0
    %790 = vmatpush1.msra.mxu0 %v751
    %791 = vmatprep.subr.mxu0 0.0
    %792 = vmatpush1.msra.mxu0 %v752
    %793 = vmatprep.subr.mxu0 0.0
    %794 = vmatpush1.msra.mxu0 %v753
    %795 = vmatprep.subr.mxu0 0.0
    %796 = vmatpush1.msra.mxu0 %v754
    %797 = vmatprep.subr.mxu0 0.0
    %798 = vmatpush1.msra.mxu0 %v755
    %799 = vmatprep.subr.mxu0 0.0
    %800 = vmatpush1.msra.mxu0 %v756
    %801 = vmatprep.subr.mxu0 0.0
    %802 = vmatpush1.msra.mxu0 %v757
    %803 = vmatprep.subr.mxu0 0.0
    %804 = vmatpush1.msra.mxu0 %v758
    %805 = vmatprep.subr.mxu0 0.0
    %806 = vmatpush1.msra.mxu0 %v759
    %807 = vmatprep.subr.mxu0 0.0
    %808 = vmatpush1.msra.mxu0 %v760
    %809 = vmatprep.subr.mxu0 0.0
    %810 = vmatpush1.msra.mxu0 %v761
    %811 = vmatprep.subr.mxu0 0.0
    %812 = vmatpush1.msra.mxu0 %v762
    %813 = vmatprep.subr.mxu0 0.0
    %814 = vmatpush1.msra.mxu0 %v763
    %815 = vmatprep.subr.mxu0 0.0
    %816 = vmatpush1.msra.mxu0 %v764
    %817 = vmatprep.subr.mxu0 0.0
    %818 = vmatpush1.msra.mxu0 %v765
    %819 = vmatprep.subr.mxu0 0.0
    %820 = vmatpush1.msra.mxu0 %v766
    %821 = vmatprep.subr.mxu0 0.0
    %822 = vmatpush1.msra.mxu0 %v767
    %823 = vmatprep.subr.mxu0 0.0
    %824 = vmatpush1.msra.mxu0 %v768
    %825 = vmatprep.subr.mxu0 0.0
    %826 = vmatpush1.msra.mxu0 %v769
    %827 = vmatprep.subr.mxu0 0.0
    %828 = vmatpush1.msra.mxu0 %v770
    %829 = vmatprep.subr.mxu0 0.0
    %830 = vmatpush1.msra.mxu0 %v771
    %831 = vmatprep.subr.mxu0 0.0
    %832 = vmatpush1.msra.mxu0 %v772
    %833 = vmatprep.subr.mxu0 0.0
    %834 = vmatpush1.msra.mxu0 %v773
    %835 = vmatprep.subr.mxu0 0.0
    %836 = vmatpush1.msra.mxu0 %v774
    %837 = vmatprep.subr.mxu0 0.0
    %838 = vmatpush1.msra.mxu0 %v775
    %839 = vmatprep.subr.mxu0 0.0
    %840 = vmatpush1.msra.mxu0 %v776
    %841 = vmatprep.mubr.f32.mxu0 %v743
    %842 = vmatmul.mubr.f32.gmra.mrb[0].mxu0 %v742
    %v843 = vpop.f32.mrb[0].mxu0
    %v844 = vadd.f32 0.0, %v843
    %v845 = vpop.f32.mrb[0].mxu0
    %846 = vdwg.mxu0
    %v847 = vadd.f32 %v744, %v844
    %s848 = scalar_lea.vmem [#allocation5], 256
    %v849 = vld [vmem:[%s848] sm:$0xff]
    %v850 = vld [vmem:[%s848 + $0x8] sm:$0xff]
    %v851 = vld [vmem:[%s848 + $0x10] sm:$0xff]
    %v852 = vld [vmem:[%s848 + $0x18] sm:$0xff]
    %v853 = vld [vmem:[%s848 + $0x20] sm:$0xff]
    %v854 = vld [vmem:[%s848 + $0x28] sm:$0xff]
    %v855 = vld [vmem:[%s848 + $0x30] sm:$0xff]
    %v856 = vld [vmem:[%s848 + $0x38] sm:$0xff]
    %v857 = vld [vmem:[%s848 + $0x40] sm:$0xff]
    %v858 = vld [vmem:[%s848 + $0x48] sm:$0xff]
    %v859 = vld [vmem:[%s848 + $0x50] sm:$0xff]
    %v860 = vld [vmem:[%s848 + $0x58] sm:$0xff]
    %v861 = vld [vmem:[%s848 + $0x60] sm:$0xff]
    %v862 = vld [vmem:[%s848 + $0x68] sm:$0xff]
    %v863 = vld [vmem:[%s848 + $0x70] sm:$0xff]
    %v864 = vld [vmem:[%s848 + $0x78] sm:$0xff]
    %v865 = vld [vmem:[%s848 + $0x80] sm:$0xff]
    %v866 = vld [vmem:[%s848 + $0x88] sm:$0xff]
    %v867 = vld [vmem:[%s848 + $0x90] sm:$0xff]
    %v868 = vld [vmem:[%s848 + $0x98] sm:$0xff]
    %v869 = vld [vmem:[%s848 + $0xa0] sm:$0xff]
    %v870 = vld [vmem:[%s848 + $0xa8] sm:$0xff]
    %v871 = vld [vmem:[%s848 + $0xb0] sm:$0xff]
    %v872 = vld [vmem:[%s848 + $0xb8] sm:$0xff]
    %v873 = vld [vmem:[%s848 + $0xc0] sm:$0xff]
    %v874 = vld [vmem:[%s848 + $0xc8] sm:$0xff]
    %v875 = vld [vmem:[%s848 + $0xd0] sm:$0xff]
    %v876 = vld [vmem:[%s848 + $0xd8] sm:$0xff]
    %v877 = vld [vmem:[%s848 + $0xe0] sm:$0xff]
    %v878 = vld [vmem:[%s848 + $0xe8] sm:$0xff]
    %v879 = vld [vmem:[%s848 + $0xf0] sm:$0xff]
    %v880 = vld [vmem:[%s848 + $0xf8] sm:$0xff]
    %v883 = vrot.slane %v742, 1
    %v884 = vrot.slane %v743, 1
    %887 = vmatprep.subr.mxu0 0.0
    %888 = vmatpush1.msra.mxu0 %v849
    %889 = vmatprep.subr.mxu0 0.0
    %890 = vmatpush1.msra.mxu0 %v850
    %891 = vmatprep.subr.mxu0 0.0
    %892 = vmatpush1.msra.mxu0 %v851
    %893 = vmatprep.subr.mxu0 0.0
    %894 = vmatpush1.msra.mxu0 %v852
    %895 = vmatprep.subr.mxu0 0.0
    %896 = vmatpush1.msra.mxu0 %v853
    %897 = vmatprep.subr.mxu0 0.0
    %898 = vmatpush1.msra.mxu0 %v854
    %899 = vmatprep.subr.mxu0 0.0
    %900 = vmatpush1.msra.mxu0 %v855
    %901 = vmatprep.subr.mxu0 0.0
    %902 = vmatpush1.msra.mxu0 %v856
    %903 = vmatprep.subr.mxu0 0.0
    %904 = vmatpush1.msra.mxu0 %v857
    %905 = vmatprep.subr.mxu0 0.0
    %906 = vmatpush1.msra.mxu0 %v858
    %907 = vmatprep.subr.mxu0 0.0
    %908 = vmatpush1.msra.mxu0 %v859
    %909 = vmatprep.subr.mxu0 0.0
    %910 = vmatpush1.msra.mxu0 %v860
    %911 = vmatprep.subr.mxu0 0.0
    %912 = vmatpush1.msra.mxu0 %v861
    %913 = vmatprep.subr.mxu0 0.0
    %914 = vmatpush1.msra.mxu0 %v862
    %915 = vmatprep.subr.mxu0 0.0
    %916 = vmatpush1.msra.mxu0 %v863
    %917 = vmatprep.subr.mxu0 0.0
    %918 = vmatpush1.msra.mxu0 %v864
    %919 = vmatprep.subr.mxu0 0.0
    %920 = vmatpush1.msra.mxu0 %v865
    %921 = vmatprep.subr.mxu0 0.0
    %922 = vmatpush1.msra.mxu0 %v866
    %923 = vmatprep.subr.mxu0 0.0
    %924 = vmatpush1.msra.mxu0 %v867
    %925 = vmatprep.subr.mxu0 0.0
    %926 = vmatpush1.msra.mxu0 %v868
    %927 = vmatprep.subr.mxu0 0.0
    %928 = vmatpush1.msra.mxu0 %v869
    %929 = vmatprep.subr.mxu0 0.0
    %930 = vmatpush1.msra.mxu0 %v870
    %931 = vmatprep.subr.mxu0 0.0
    %932 = vmatpush1.msra.mxu0 %v871
    %933 = vmatprep.subr.mxu0 0.0
    %934 = vmatpush1.msra.mxu0 %v872
    %935 = vmatprep.subr.mxu0 0.0
    %936 = vmatpush1.msra.mxu0 %v873
    %937 = vmatprep.subr.mxu0 0.0
    %938 = vmatpush1.msra.mxu0 %v874
    %939 = vmatprep.subr.mxu0 0.0
    %940 = vmatpush1.msra.mxu0 %v875
    %941 = vmatprep.subr.mxu0 0.0
    %942 = vmatpush1.msra.mxu0 %v876
    %943 = vmatprep.subr.mxu0 0.0
    %944 = vmatpush1.msra.mxu0 %v877
    %945 = vmatprep.subr.mxu0 0.0
    %946 = vmatpush1.msra.mxu0 %v878
    %947 = vmatprep.subr.mxu0 0.0
    %948 = vmatpush1.msra.mxu0 %v879
    %949 = vmatprep.subr.mxu0 0.0
    %950 = vmatpush1.msra.mxu0 %v880
    %951 = vmatprep.mubr.f32.mxu0 %v884
    %952 = vmatmul.mubr.f32.gmra.mrb[0].mxu0 %v883
    %v953 = vpop.f32.mrb[0].mxu0
    %v954 = vadd.f32 0.0, %v953
    %v955 = vpop.f32.mrb[0].mxu0
    %956 = vdwg.mxu0
    %v957 = vadd.f32 %v847, %v954
    %s958 = scalar_lea.vmem [#allocation5], 512
    %v959 = vld [vmem:[%s958] sm:$0xff]
    %v960 = vld [vmem:[%s958 + $0x8] sm:$0xff]
    %v961 = vld [vmem:[%s958 + $0x10] sm:$0xff]
    %v962 = vld [vmem:[%s958 + $0x18] sm:$0xff]
    %v963 = vld [vmem:[%s958 + $0x20] sm:$0xff]
    %v964 = vld [vmem:[%s958 + $0x28] sm:$0xff]
    %v965 = vld [vmem:[%s958 + $0x30] sm:$0xff]
    %v966 = vld [vmem:[%s958 + $0x38] sm:$0xff]
    %v967 = vld [vmem:[%s958 + $0x40] sm:$0xff]
    %v968 = vld [vmem:[%s958 + $0x48] sm:$0xff]
    %v969 = vld [vmem:[%s958 + $0x50] sm:$0xff]
    %v970 = vld [vmem:[%s958 + $0x58] sm:$0xff]
    %v971 = vld [vmem:[%s958 + $0x60] sm:$0xff]
    %v972 = vld [vmem:[%s958 + $0x68] sm:$0xff]
    %v973 = vld [vmem:[%s958 + $0x70] sm:$0xff]
    %v974 = vld [vmem:[%s958 + $0x78] sm:$0xff]
    %v975 = vld [vmem:[%s958 + $0x80] sm:$0xff]
    %v976 = vld [vmem:[%s958 + $0x88] sm:$0xff]
    %v977 = vld [vmem:[%s958 + $0x90] sm:$0xff]
    %v978 = vld [vmem:[%s958 + $0x98] sm:$0xff]
    %v979 = vld [vmem:[%s958 + $0xa0] sm:$0xff]
    %v980 = vld [vmem:[%s958 + $0xa8] sm:$0xff]
    %v981 = vld [vmem:[%s958 + $0xb0] sm:$0xff]
    %v982 = vld [vmem:[%s958 + $0xb8] sm:$0xff]
    %v983 = vld [vmem:[%s958 + $0xc0] sm:$0xff]
    %v984 = vld [vmem:[%s958 + $0xc8] sm:$0xff]
    %v985 = vld [vmem:[%s958 + $0xd0] sm:$0xff]
    %v986 = vld [vmem:[%s958 + $0xd8] sm:$0xff]
    %v987 = vld [vmem:[%s958 + $0xe0] sm:$0xff]
    %v988 = vld [vmem:[%s958 + $0xe8] sm:$0xff]
    %v989 = vld [vmem:[%s958 + $0xf0] sm:$0xff]
    %v990 = vld [vmem:[%s958 + $0xf8] sm:$0xff]
    %v991 = vrot.slane %v742, 2
    %v992 = vrot.slane %v743, 2
    %995 = vmatprep.subr.mxu0 0.0
    %996 = vmatpush1.msra.mxu0 %v959
    %997 = vmatprep.subr.mxu0 0.0
    %998 = vmatpush1.msra.mxu0 %v960
    %999 = vmatprep.subr.mxu0 0.0
    %1000 = vmatpush1.msra.mxu0 %v961
    %1001 = vmatprep.subr.mxu0 0.0
    %1002 = vmatpush1.msra.mxu0 %v962
    %1003 = vmatprep.subr.mxu0 0.0
    %1004 = vmatpush1.msra.mxu0 %v963
    %1005 = vmatprep.subr.mxu0 0.0
    %1006 = vmatpush1.msra.mxu0 %v964
    %1007 = vmatprep.subr.mxu0 0.0
    %1008 = vmatpush1.msra.mxu0 %v965
    %1009 = vmatprep.subr.mxu0 0.0
    %1010 = vmatpush1.msra.mxu0 %v966
    %1011 = vmatprep.subr.mxu0 0.0
    %1012 = vmatpush1.msra.mxu0 %v967
    %1013 = vmatprep.subr.mxu0 0.0
    %1014 = vmatpush1.msra.mxu0 %v968
    %1015 = vmatprep.subr.mxu0 0.0
    %1016 = vmatpush1.msra.mxu0 %v969
    %1017 = vmatprep.subr.mxu0 0.0
    %1018 = vmatpush1.msra.mxu0 %v970
    %1019 = vmatprep.subr.mxu0 0.0
    %1020 = vmatpush1.msra.mxu0 %v971
    %1021 = vmatprep.subr.mxu0 0.0
    %1022 = vmatpush1.msra.mxu0 %v972
    %1023 = vmatprep.subr.mxu0 0.0
    %1024 = vmatpush1.msra.mxu0 %v973
    %1025 = vmatprep.subr.mxu0 0.0
    %1026 = vmatpush1.msra.mxu0 %v974
    %1027 = vmatprep.subr.mxu0 0.0
    %1028 = vmatpush1.msra.mxu0 %v975
    %1029 = vmatprep.subr.mxu0 0.0
    %1030 = vmatpush1.msra.mxu0 %v976
    %1031 = vmatprep.subr.mxu0 0.0
    %1032 = vmatpush1.msra.mxu0 %v977
    %1033 = vmatprep.subr.mxu0 0.0
    %1034 = vmatpush1.msra.mxu0 %v978
    %1035 = vmatprep.subr.mxu0 0.0
    %1036 = vmatpush1.msra.mxu0 %v979
    %1037 = vmatprep.subr.mxu0 0.0
    %1038 = vmatpush1.msra.mxu0 %v980
    %1039 = vmatprep.subr.mxu0 0.0
    %1040 = vmatpush1.msra.mxu0 %v981
    %1041 = vmatprep.subr.mxu0 0.0
    %1042 = vmatpush1.msra.mxu0 %v982
    %1043 = vmatprep.subr.mxu0 0.0
    %1044 = vmatpush1.msra.mxu0 %v983
    %1045 = vmatprep.subr.mxu0 0.0
    %1046 = vmatpush1.msra.mxu0 %v984
    %1047 = vmatprep.subr.mxu0 0.0
    %1048 = vmatpush1.msra.mxu0 %v985
    %1049 = vmatprep.subr.mxu0 0.0
    %1050 = vmatpush1.msra.mxu0 %v986
    %1051 = vmatprep.subr.mxu0 0.0
    %1052 = vmatpush1.msra.mxu0 %v987
    %1053 = vmatprep.subr.mxu0 0.0
    %1054 = vmatpush1.msra.mxu0 %v988
    %1055 = vmatprep.subr.mxu0 0.0
    %1056 = vmatpush1.msra.mxu0 %v989
    %1057 = vmatprep.subr.mxu0 0.0
    %1058 = vmatpush1.msra.mxu0 %v990
    %1059 = vmatprep.mubr.f32.mxu0 %v992
    %1060 = vmatmul.mubr.f32.gmra.mrb[0].mxu0 %v991
    %v1061 = vpop.f32.mrb[0].mxu0
    %v1062 = vadd.f32 0.0, %v1061
    %v1063 = vpop.f32.mrb[0].mxu0
    %1064 = vdwg.mxu0
    %v1065 = vadd.f32 %v957, %v1062
    %s1066 = scalar_lea.vmem [#allocation5], 768
    %v1067 = vld [vmem:[%s1066] sm:$0xff]
    %v1068 = vld [vmem:[%s1066 + $0x8] sm:$0xff]
    %v1069 = vld [vmem:[%s1066 + $0x10] sm:$0xff]
    %v1070 = vld [vmem:[%s1066 + $0x18] sm:$0xff]
    %v1071 = vld [vmem:[%s1066 + $0x20] sm:$0xff]
    %v1072 = vld [vmem:[%s1066 + $0x28] sm:$0xff]
    %v1073 = vld [vmem:[%s1066 + $0x30] sm:$0xff]
    %v1074 = vld [vmem:[%s1066 + $0x38] sm:$0xff]
    %v1075 = vld [vmem:[%s1066 + $0x40] sm:$0xff]
    %v1076 = vld [vmem:[%s1066 + $0x48] sm:$0xff]
    %v1077 = vld [vmem:[%s1066 + $0x50] sm:$0xff]
    %v1078 = vld [vmem:[%s1066 + $0x58] sm:$0xff]
    %v1079 = vld [vmem:[%s1066 + $0x60] sm:$0xff]
    %v1080 = vld [vmem:[%s1066 + $0x68] sm:$0xff]
    %v1081 = vld [vmem:[%s1066 + $0x70] sm:$0xff]
    %v1082 = vld [vmem:[%s1066 + $0x78] sm:$0xff]
    %v1083 = vld [vmem:[%s1066 + $0x80] sm:$0xff]
    %v1084 = vld [vmem:[%s1066 + $0x88] sm:$0xff]
    %v1085 = vld [vmem:[%s1066 + $0x90] sm:$0xff]
    %v1086 = vld [vmem:[%s1066 + $0x98] sm:$0xff]
    %v1087 = vld [vmem:[%s1066 + $0xa0] sm:$0xff]
    %v1088 = vld [vmem:[%s1066 + $0xa8] sm:$0xff]
    %v1089 = vld [vmem:[%s1066 + $0xb0] sm:$0xff]
    %v1090 = vld [vmem:[%s1066 + $0xb8] sm:$0xff]
    %v1091 = vld [vmem:[%s1066 + $0xc0] sm:$0xff]
    %v1092 = vld [vmem:[%s1066 + $0xc8] sm:$0xff]
    %v1093 = vld [vmem:[%s1066 + $0xd0] sm:$0xff]
    %v1094 = vld [vmem:[%s1066 + $0xd8] sm:$0xff]
    %v1095 = vld [vmem:[%s1066 + $0xe0] sm:$0xff]
    %v1096 = vld [vmem:[%s1066 + $0xe8] sm:$0xff]
    %v1097 = vld [vmem:[%s1066 + $0xf0] sm:$0xff]
    %v1098 = vld [vmem:[%s1066 + $0xf8] sm:$0xff]
    %v1099 = vrot.slane %v742, 3
    %v1100 = vrot.slane %v743, 3
    %1103 = vmatprep.subr.mxu0 0.0
    %1104 = vmatpush1.msra.mxu0 %v1067
    %1105 = vmatprep.subr.mxu0 0.0
    %1106 = vmatpush1.msra.mxu0 %v1068
    %1107 = vmatprep.subr.mxu0 0.0
    %1108 = vmatpush1.msra.mxu0 %v1069
    %1109 = vmatprep.subr.mxu0 0.0
    %1110 = vmatpush1.msra.mxu0 %v1070
    %1111 = vmatprep.subr.mxu0 0.0
    %1112 = vmatpush1.msra.mxu0 %v1071
    %1113 = vmatprep.subr.mxu0 0.0
    %1114 = vmatpush1.msra.mxu0 %v1072
    %1115 = vmatprep.subr.mxu0 0.0
    %1116 = vmatpush1.msra.mxu0 %v1073
    %1117 = vmatprep.subr.mxu0 0.0
    %1118 = vmatpush1.msra.mxu0 %v1074
    %1119 = vmatprep.subr.mxu0 0.0
    %1120 = vmatpush1.msra.mxu0 %v1075
    %1121 = vmatprep.subr.mxu0 0.0
    %1122 = vmatpush1.msra.mxu0 %v1076
    %1123 = vmatprep.subr.mxu0 0.0
    %1124 = vmatpush1.msra.mxu0 %v1077
    %1125 = vmatprep.subr.mxu0 0.0
    %1126 = vmatpush1.msra.mxu0 %v1078
    %1127 = vmatprep.subr.mxu0 0.0
    %1128 = vmatpush1.msra.mxu0 %v1079
    %1129 = vmatprep.subr.mxu0 0.0
    %1130 = vmatpush1.msra.mxu0 %v1080
    %1131 = vmatprep.subr.mxu0 0.0
    %1132 = vmatpush1.msra.mxu0 %v1081
    %1133 = vmatprep.subr.mxu0 0.0
    %1134 = vmatpush1.msra.mxu0 %v1082
    %1135 = vmatprep.subr.mxu0 0.0
    %1136 = vmatpush1.msra.mxu0 %v1083
    %1137 = vmatprep.subr.mxu0 0.0
    %1138 = vmatpush1.msra.mxu0 %v1084
    %1139 = vmatprep.subr.mxu0 0.0
    %1140 = vmatpush1.msra.mxu0 %v1085
    %1141 = vmatprep.subr.mxu0 0.0
    %1142 = vmatpush1.msra.mxu0 %v1086
    %1143 = vmatprep.subr.mxu0 0.0
    %1144 = vmatpush1.msra.mxu0 %v1087
    %1145 = vmatprep.subr.mxu0 0.0
    %1146 = vmatpush1.msra.mxu0 %v1088
    %1147 = vmatprep.subr.mxu0 0.0
    %1148 = vmatpush1.msra.mxu0 %v1089
    %1149 = vmatprep.subr.mxu0 0.0
    %1150 = vmatpush1.msra.mxu0 %v1090
    %1151 = vmatprep.subr.mxu0 0.0
    %1152 = vmatpush1.msra.mxu0 %v1091
    %1153 = vmatprep.subr.mxu0 0.0
    %1154 = vmatpush1.msra.mxu0 %v1092
    %1155 = vmatprep.subr.mxu0 0.0
    %1156 = vmatpush1.msra.mxu0 %v1093
    %1157 = vmatprep.subr.mxu0 0.0
    %1158 = vmatpush1.msra.mxu0 %v1094
    %1159 = vmatprep.subr.mxu0 0.0
    %1160 = vmatpush1.msra.mxu0 %v1095
    %1161 = vmatprep.subr.mxu0 0.0
    %1162 = vmatpush1.msra.mxu0 %v1096
    %1163 = vmatprep.subr.mxu0 0.0
    %1164 = vmatpush1.msra.mxu0 %v1097
    %1165 = vmatprep.subr.mxu0 0.0
    %1166 = vmatpush1.msra.mxu0 %v1098
    %1167 = vmatprep.mubr.f32.mxu0 %v1100
    %1168 = vmatmul.mubr.f32.gmra.mrb[0].mxu0 %v1099
    %v1169 = vpop.f32.mrb[0].mxu0
    %v1170 = vadd.f32 0.0, %v1169
    %v1171 = vpop.f32.mrb[0].mxu0
    %1172 = vdwg.mxu0
    %v1173 = vadd.f32 %v1065, %v1170
    %v1174 = vmax.f32 %v1173, 0.0
    %s1175 = sld [smem:[#allocation2]]
    %v1176 = vld [vmem:[%s10] sm:$0xff]
    %v1177 = vld [vmem:[%s10 + $0x8] sm:$0xff]
    %v1178 = vld [vmem:[%s10 + $0x10] sm:$0xff]
    %v1179 = vld [vmem:[%s10 + $0x18] sm:$0xff]
    %v1180 = vld [vmem:[%s10 + $0x20] sm:$0xff]
    %v1181 = vld [vmem:[%s10 + $0x28] sm:$0xff]
    %v1182 = vld [vmem:[%s10 + $0x30] sm:$0xff]
    %v1183 = vld [vmem:[%s10 + $0x38] sm:$0xff]
    %v1184 = vld [vmem:[%s10 + $0x40] sm:$0xff]
    %v1185 = vld [vmem:[%s10 + $0x48] sm:$0xff]
    %v1186 = vld [vmem:[%s10 + $0x50] sm:$0xff]
    %v1187 = vld [vmem:[%s10 + $0x58] sm:$0xff]
    %v1188 = vld [vmem:[%s10 + $0x60] sm:$0xff]
    %v1189 = vld [vmem:[%s10 + $0x68] sm:$0xff]
    %v1190 = vld [vmem:[%s10 + $0x70] sm:$0xff]
    %v1191 = vld [vmem:[%s10 + $0x78] sm:$0xff]
    %v1192 = vld [vmem:[%s10 + $0x80] sm:$0xff]
    %v1193 = vld [vmem:[%s10 + $0x88] sm:$0xff]
    %v1194 = vld [vmem:[%s10 + $0x90] sm:$0xff]
    %v1195 = vld [vmem:[%s10 + $0x98] sm:$0xff]
    %v1196 = vld [vmem:[%s10 + $0xa0] sm:$0xff]
    %v1197 = vld [vmem:[%s10 + $0xa8] sm:$0xff]
    %v1198 = vld [vmem:[%s10 + $0xb0] sm:$0xff]
    %v1199 = vld [vmem:[%s10 + $0xb8] sm:$0xff]
    %v1200 = vld [vmem:[%s10 + $0xc0] sm:$0xff]
    %v1201 = vld [vmem:[%s10 + $0xc8] sm:$0xff]
    %v1202 = vld [vmem:[%s10 + $0xd0] sm:$0xff]
    %v1203 = vld [vmem:[%s10 + $0xd8] sm:$0xff]
    %v1204 = vld [vmem:[%s10 + $0xe0] sm:$0xff]
    %v1205 = vld [vmem:[%s10 + $0xe8] sm:$0xff]
    %v1206 = vld [vmem:[%s10 + $0xf0] sm:$0xff]
    %v1207 = vld [vmem:[%s10 + $0xf8] sm:$0xff]
    %v1208 = vld [vmem:[%s11] sm:$0x3]
    %v1209 = vstv %s1175
    %v1210 = vmul.f32 %v1209, %v1208
    %v1212 = vlaneseq
    %v1213 = vshrl.u32 %v1212, 7
    %v1214 = vsub.s32 0, %v1213
    %v1215 = vrot.slane %v1210, %v1214
    %v1216 = vlaneseq
    %v1217 = vshrl.u32 %v1216, 7
    %v1218 = vsub.s32 1, %v1217
    %v1219 = vrot.slane %v1210, %v1218
    %1222 = vmatprep.subr.mxu0 %v1177
    %1223 = vmatpush1.msra.mxu0 %v1176
    %1224 = vmatprep.subr.mxu0 %v1179
    %1225 = vmatpush1.msra.mxu0 %v1178
    %1226 = vmatprep.subr.mxu0 %v1181
    %1227 = vmatpush1.msra.mxu0 %v1180
    %1228 = vmatprep.subr.mxu0 %v1183
    %1229 = vmatpush1.msra.mxu0 %v1182
    %1230 = vmatprep.subr.mxu0 %v1185
    %1231 = vmatpush1.msra.mxu0 %v1184
    %1232 = vmatprep.subr.mxu0 %v1187
    %1233 = vmatpush1.msra.mxu0 %v1186
    %1234 = vmatprep.subr.mxu0 %v1189
    %1235 = vmatpush1.msra.mxu0 %v1188
    %1236 = vmatprep.subr.mxu0 %v1191
    %1237 = vmatpush1.msra.mxu0 %v1190
    %1238 = vmatprep.subr.mxu0 %v1193
    %1239 = vmatpush1.msra.mxu0 %v1192
    %1240 = vmatprep.subr.mxu0 %v1195
    %1241 = vmatpush1.msra.mxu0 %v1194
    %1242 = vmatprep.subr.mxu0 %v1197
    %1243 = vmatpush1.msra.mxu0 %v1196
    %1244 = vmatprep.subr.mxu0 %v1199
    %1245 = vmatpush1.msra.mxu0 %v1198
    %1246 = vmatprep.subr.mxu0 %v1201
    %1247 = vmatpush1.msra.mxu0 %v1200
    %1248 = vmatprep.subr.mxu0 %v1203
    %1249 = vmatpush1.msra.mxu0 %v1202
    %1250 = vmatprep.subr.mxu0 %v1205
    %1251 = vmatpush1.msra.mxu0 %v1204
    %1252 = vmatprep.subr.mxu0 %v1207
    %1253 = vmatpush1.msra.mxu0 %v1206
    %1254 = vmatprep.subr.mxu0 0.0
    %1255 = vmatpush1.msra.mxu0 0.0
    %1256 = vmatprep.subr.mxu0 0.0
    %1257 = vmatpush1.msra.mxu0 0.0
    %1258 = vmatprep.subr.mxu0 0.0
    %1259 = vmatpush1.msra.mxu0 0.0
    %1260 = vmatprep.subr.mxu0 0.0
    %1261 = vmatpush1.msra.mxu0 0.0
    %1262 = vmatprep.subr.mxu0 0.0
    %1263 = vmatpush1.msra.mxu0 0.0
    %1264 = vmatprep.subr.mxu0 0.0
    %1265 = vmatpush1.msra.mxu0 0.0
    %1266 = vmatprep.subr.mxu0 0.0
    %1267 = vmatpush1.msra.mxu0 0.0
    %1268 = vmatprep.subr.mxu0 0.0
    %1269 = vmatpush1.msra.mxu0 0.0
    %1270 = vmatprep.subr.mxu0 0.0
    %1271 = vmatpush1.msra.mxu0 0.0
    %1272 = vmatprep.subr.mxu0 0.0
    %1273 = vmatpush1.msra.mxu0 0.0
    %1274 = vmatprep.subr.mxu0 0.0
    %1275 = vmatpush1.msra.mxu0 0.0
    %1276 = vmatprep.subr.mxu0 0.0
    %1277 = vmatpush1.msra.mxu0 0.0
    %1278 = vmatprep.subr.mxu0 0.0
    %1279 = vmatpush1.msra.mxu0 0.0
    %1280 = vmatprep.subr.mxu0 0.0
    %1281 = vmatpush1.msra.mxu0 0.0
    %1282 = vmatprep.subr.mxu0 0.0
    %1283 = vmatpush1.msra.mxu0 0.0
    %1284 = vmatprep.subr.mxu0 0.0
    %1285 = vmatpush1.msra.mxu0 0.0
    %1286 = vmatprep.mubr.f32.mxu0 0.0
    %1287 = vmatmul.mubr.f32.gmra.mrb[0].mxu0 %v1174
    %v1288 = vpop.f32.mrb[0].mxu0
    %v1289 = vadd.f32 %v1215, %v1288
    %v1290 = vpop.f32.mrb[0].mxu0
    %v1291 = vadd.f32 %v1219, %v1290
    %1292 = vdwg.mxu0
    %v1293 = vld [vmem:[%s12] sm:$0x3]
    %v1295 = vlaneseq
    %v1296 = vshrl.u32 %v1295, 7
    %v1297 = vsub.s32 0, %v1296
    %v1298 = vrot.slane %v1293, %v1297
    %v1299 = vlaneseq
    %v1300 = vshrl.u32 %v1299, 7
    %v1301 = vsub.s32 1, %v1300
    %v1302 = vrot.slane %v1293, %v1301
    %v1305 = vadd.f32 %v1289, %v1298
    %v1306 = vadd.f32 %v1291, %v1302
    %v1307 = vmax.f32 %v1305, 0.0
    %v1308 = vmax.f32 %v1306, 0.0
    %v1309 = vld [vmem:[#allocation6] sm:$0xff]
    %v1310 = vld [vmem:[#allocation6 + $0x8] sm:$0xff]
    %v1311 = vld [vmem:[#allocation6 + $0x10] sm:$0xff]
    %v1312 = vld [vmem:[#allocation6 + $0x18] sm:$0xff]
    %v1313 = vld [vmem:[#allocation6 + $0x20] sm:$0xff]
    %v1314 = vld [vmem:[#allocation6 + $0x28] sm:$0xff]
    %v1315 = vld [vmem:[#allocation6 + $0x30] sm:$0xff]
    %v1316 = vld [vmem:[#allocation6 + $0x38] sm:$0xff]
    %v1317 = vld [vmem:[#allocation6 + $0x40] sm:$0xff]
    %v1318 = vld [vmem:[#allocation6 + $0x48] sm:$0xff]
    %v1319 = vld [vmem:[#allocation6 + $0x50] sm:$0xff]
    %v1320 = vld [vmem:[#allocation6 + $0x58] sm:$0xff]
    %v1321 = vld [vmem:[#allocation6 + $0x60] sm:$0xff]
    %v1322 = vld [vmem:[#allocation6 + $0x68] sm:$0xff]
    %v1323 = vld [vmem:[#allocation6 + $0x70] sm:$0xff]
    %v1324 = vld [vmem:[#allocation6 + $0x78] sm:$0xff]
    %v1325 = vld [vmem:[#allocation6 + $0x80] sm:$0xff]
    %v1326 = vld [vmem:[#allocation6 + $0x88] sm:$0xff]
    %v1327 = vld [vmem:[#allocation6 + $0x90] sm:$0xff]
    %v1328 = vld [vmem:[#allocation6 + $0x98] sm:$0xff]
    %v1329 = vld [vmem:[#allocation6 + $0xa0] sm:$0xff]
    %v1330 = vld [vmem:[#allocation6 + $0xa8] sm:$0xff]
    %v1331 = vld [vmem:[#allocation6 + $0xb0] sm:$0xff]
    %v1332 = vld [vmem:[#allocation6 + $0xb8] sm:$0xff]
    %v1333 = vld [vmem:[#allocation6 + $0xc0] sm:$0xff]
    %v1334 = vld [vmem:[#allocation6 + $0xc8] sm:$0xff]
    %v1335 = vld [vmem:[#allocation6 + $0xd0] sm:$0xff]
    %v1336 = vld [vmem:[#allocation6 + $0xd8] sm:$0xff]
    %v1337 = vld [vmem:[#allocation6 + $0xe0] sm:$0xff]
    %v1338 = vld [vmem:[#allocation6 + $0xe8] sm:$0xff]
    %v1339 = vld [vmem:[#allocation6 + $0xf0] sm:$0xff]
    %v1340 = vld [vmem:[#allocation6 + $0xf8] sm:$0xff]
    %v1341 = vld [vmem:[#allocation6 + $0x100] sm:$0xff]
    %v1342 = vld [vmem:[#allocation6 + $0x108] sm:$0xff]
    %v1343 = vld [vmem:[#allocation6 + $0x110] sm:$0xff]
    %v1344 = vld [vmem:[#allocation6 + $0x118] sm:$0xff]
    %v1345 = vld [vmem:[#allocation6 + $0x120] sm:$0xff]
    %v1346 = vld [vmem:[#allocation6 + $0x128] sm:$0xff]
    %v1347 = vld [vmem:[#allocation6 + $0x130] sm:$0xff]
    %v1348 = vld [vmem:[#allocation6 + $0x138] sm:$0xff]
    %v1349 = vld [vmem:[#allocation6 + $0x140] sm:$0xff]
    %v1350 = vld [vmem:[#allocation6 + $0x148] sm:$0xff]
    %v1351 = vld [vmem:[#allocation6 + $0x150] sm:$0xff]
    %v1352 = vld [vmem:[#allocation6 + $0x158] sm:$0xff]
    %v1353 = vld [vmem:[#allocation6 + $0x160] sm:$0xff]
    %v1354 = vld [vmem:[#allocation6 + $0x168] sm:$0xff]
    %v1355 = vld [vmem:[#allocation6 + $0x170] sm:$0xff]
    %v1356 = vld [vmem:[#allocation6 + $0x178] sm:$0xff]
    %v1357 = vld [vmem:[#allocation6 + $0x180] sm:$0xff]
    %v1358 = vld [vmem:[#allocation6 + $0x188] sm:$0xff]
    %v1359 = vld [vmem:[#allocation6 + $0x190] sm:$0xff]
    %v1360 = vld [vmem:[#allocation6 + $0x198] sm:$0xff]
    %v1361 = vld [vmem:[#allocation6 + $0x1a0] sm:$0xff]
    %v1362 = vld [vmem:[#allocation6 + $0x1a8] sm:$0xff]
    %v1363 = vld [vmem:[#allocation6 + $0x1b0] sm:$0xff]
    %v1364 = vld [vmem:[#allocation6 + $0x1b8] sm:$0xff]
    %v1365 = vld [vmem:[#allocation6 + $0x1c0] sm:$0xff]
    %v1366 = vld [vmem:[#allocation6 + $0x1c8] sm:$0xff]
    %v1367 = vld [vmem:[#allocation6 + $0x1d0] sm:$0xff]
    %v1368 = vld [vmem:[#allocation6 + $0x1d8] sm:$0xff]
    %v1369 = vld [vmem:[#allocation6 + $0x1e0] sm:$0xff]
    %v1370 = vld [vmem:[#allocation6 + $0x1e8] sm:$0xff]
    %v1371 = vld [vmem:[#allocation6 + $0x1f0] sm:$0xff]
    %v1372 = vld [vmem:[#allocation6 + $0x1f8] sm:$0xff]
    %v1373 = vld [vmem:[%s14] sm:$0x3]
    %v1375 = vlaneseq
    %v1376 = vshrl.u32 %v1375, 7
    %v1377 = vsub.s32 0, %v1376
    %v1378 = vrot.slane %v1373, %v1377
    %v1379 = vlaneseq
    %v1380 = vshrl.u32 %v1379, 7
    %v1381 = vsub.s32 1, %v1380
    %v1382 = vrot.slane %v1373, %v1381
    %1385 = vmatprep.subr.mxu0 %v1310
    %1386 = vmatpush1.msra.mxu0 %v1309
    %1387 = vmatprep.subr.mxu0 %v1312
    %1388 = vmatpush1.msra.mxu0 %v1311
    %1389 = vmatprep.subr.mxu0 %v1314
    %1390 = vmatpush1.msra.mxu0 %v1313
    %1391 = vmatprep.subr.mxu0 %v1316
    %1392 = vmatpush1.msra.mxu0 %v1315
    %1393 = vmatprep.subr.mxu0 %v1318
    %1394 = vmatpush1.msra.mxu0 %v1317
    %1395 = vmatprep.subr.mxu0 %v1320
    %1396 = vmatpush1.msra.mxu0 %v1319
    %1397 = vmatprep.subr.mxu0 %v1322
    %1398 = vmatpush1.msra.mxu0 %v1321
    %1399 = vmatprep.subr.mxu0 %v1324
    %1400 = vmatpush1.msra.mxu0 %v1323
    %1401 = vmatprep.subr.mxu0 %v1326
    %1402 = vmatpush1.msra.mxu0 %v1325
    %1403 = vmatprep.subr.mxu0 %v1328
    %1404 = vmatpush1.msra.mxu0 %v1327
    %1405 = vmatprep.subr.mxu0 %v1330
    %1406 = vmatpush1.msra.mxu0 %v1329
    %1407 = vmatprep.subr.mxu0 %v1332
    %1408 = vmatpush1.msra.mxu0 %v1331
    %1409 = vmatprep.subr.mxu0 %v1334
    %1410 = vmatpush1.msra.mxu0 %v1333
    %1411 = vmatprep.subr.mxu0 %v1336
    %1412 = vmatpush1.msra.mxu0 %v1335
    %1413 = vmatprep.subr.mxu0 %v1338
    %1414 = vmatpush1.msra.mxu0 %v1337
    %1415 = vmatprep.subr.mxu0 %v1340
    %1416 = vmatpush1.msra.mxu0 %v1339
    %1417 = vmatprep.subr.mxu0 %v1342
    %1418 = vmatpush1.msra.mxu0 %v1341
    %1419 = vmatprep.subr.mxu0 %v1344
    %1420 = vmatpush1.msra.mxu0 %v1343
    %1421 = vmatprep.subr.mxu0 %v1346
    %1422 = vmatpush1.msra.mxu0 %v1345
    %1423 = vmatprep.subr.mxu0 %v1348
    %1424 = vmatpush1.msra.mxu0 %v1347
    %1425 = vmatprep.subr.mxu0 %v1350
    %1426 = vmatpush1.msra.mxu0 %v1349
    %1427 = vmatprep.subr.mxu0 %v1352
    %1428 = vmatpush1.msra.mxu0 %v1351
    %1429 = vmatprep.subr.mxu0 %v1354
    %1430 = vmatpush1.msra.mxu0 %v1353
    %1431 = vmatprep.subr.mxu0 %v1356
    %1432 = vmatpush1.msra.mxu0 %v1355
    %1433 = vmatprep.subr.mxu0 %v1358
    %1434 = vmatpush1.msra.mxu0 %v1357
    %1435 = vmatprep.subr.mxu0 %v1360
    %1436 = vmatpush1.msra.mxu0 %v1359
    %1437 = vmatprep.subr.mxu0 %v1362
    %1438 = vmatpush1.msra.mxu0 %v1361
    %1439 = vmatprep.subr.mxu0 %v1364
    %1440 = vmatpush1.msra.mxu0 %v1363
    %1441 = vmatprep.subr.mxu0 %v1366
    %1442 = vmatpush1.msra.mxu0 %v1365
    %1443 = vmatprep.subr.mxu0 %v1368
    %1444 = vmatpush1.msra.mxu0 %v1367
    %1445 = vmatprep.subr.mxu0 %v1370
    %1446 = vmatpush1.msra.mxu0 %v1369
    %1447 = vmatprep.subr.mxu0 %v1372
    %1448 = vmatpush1.msra.mxu0 %v1371
    %1449 = vmatprep.mubr.f32.mxu0 %v1308
    %1450 = vmatmul.mubr.f32.gmra.mrb[0].mxu0 %v1307
    %v1451 = vpop.f32.mrb[0].mxu0
    %v1452 = vadd.f32 %v1378, %v1451
    %v1453 = vpop.f32.mrb[0].mxu0
    %v1454 = vadd.f32 %v1382, %v1453
    %1455 = vdwg.mxu0
    %v1456 = vmax.f32 %v1452, 0.0
    %v1457 = vmax.f32 %v1454, 0.0
    %v1458 = vld [vmem:[#allocation8] sm:$0xff]
    %v1459 = vld [vmem:[#allocation8 + $0x8] sm:$0xff]
    %v1460 = vld [vmem:[#allocation8 + $0x10] sm:$0xff]
    %v1461 = vld [vmem:[#allocation8 + $0x18] sm:$0xff]
    %v1462 = vld [vmem:[#allocation8 + $0x20] sm:$0xff]
    %v1463 = vld [vmem:[#allocation8 + $0x28] sm:$0xff]
    %v1464 = vld [vmem:[#allocation8 + $0x30] sm:$0xff]
    %v1465 = vld [vmem:[#allocation8 + $0x38] sm:$0xff]
    %v1466 = vld [vmem:[#allocation8 + $0x40] sm:$0xff]
    %v1467 = vld [vmem:[#allocation8 + $0x48] sm:$0xff]
    %v1468 = vld [vmem:[#allocation8 + $0x50] sm:$0xff]
    %v1469 = vld [vmem:[#allocation8 + $0x58] sm:$0xff]
    %v1470 = vld [vmem:[#allocation8 + $0x60] sm:$0xff]
    %v1471 = vld [vmem:[#allocation8 + $0x68] sm:$0xff]
    %v1472 = vld [vmem:[#allocation8 + $0x70] sm:$0xff]
    %v1473 = vld [vmem:[#allocation8 + $0x78] sm:$0xff]
    %v1474 = vld [vmem:[#allocation8 + $0x80] sm:$0xff]
    %v1475 = vld [vmem:[#allocation8 + $0x88] sm:$0xff]
    %v1476 = vld [vmem:[#allocation8 + $0x90] sm:$0xff]
    %v1477 = vld [vmem:[#allocation8 + $0x98] sm:$0xff]
    %v1478 = vld [vmem:[#allocation8 + $0xa0] sm:$0xff]
    %v1479 = vld [vmem:[#allocation8 + $0xa8] sm:$0xff]
    %v1480 = vld [vmem:[#allocation8 + $0xb0] sm:$0xff]
    %v1481 = vld [vmem:[#allocation8 + $0xb8] sm:$0xff]
    %v1482 = vld [vmem:[#allocation8 + $0xc0] sm:$0xff]
    %v1483 = vld [vmem:[#allocation8 + $0xc8] sm:$0xff]
    %v1484 = vld [vmem:[#allocation8 + $0xd0] sm:$0xff]
    %v1485 = vld [vmem:[#allocation8 + $0xd8] sm:$0xff]
    %v1486 = vld [vmem:[#allocation8 + $0xe0] sm:$0xff]
    %v1487 = vld [vmem:[#allocation8 + $0xe8] sm:$0xff]
    %v1488 = vld [vmem:[#allocation8 + $0xf0] sm:$0xff]
    %v1489 = vld [vmem:[#allocation8 + $0xf8] sm:$0xff]
    %v1490 = vld [vmem:[%s16] sm:$0x1]
    %1491 = vmatprep.subr.mxu0 0.0
    %1492 = vmatpush1.msra.mxu0 %v1458
    %1493 = vmatprep.subr.mxu0 0.0
    %1494 = vmatpush1.msra.mxu0 %v1459
    %1495 = vmatprep.subr.mxu0 0.0
    %1496 = vmatpush1.msra.mxu0 %v1460
    %1497 = vmatprep.subr.mxu0 0.0
    %1498 = vmatpush1.msra.mxu0 %v1461
    %1499 = vmatprep.subr.mxu0 0.0
    %1500 = vmatpush1.msra.mxu0 %v1462
    %1501 = vmatprep.subr.mxu0 0.0
    %1502 = vmatpush1.msra.mxu0 %v1463
    %1503 = vmatprep.subr.mxu0 0.0
    %1504 = vmatpush1.msra.mxu0 %v1464
    %1505 = vmatprep.subr.mxu0 0.0
    %1506 = vmatpush1.msra.mxu0 %v1465
    %1507 = vmatprep.subr.mxu0 0.0
    %1508 = vmatpush1.msra.mxu0 %v1466
    %1509 = vmatprep.subr.mxu0 0.0
    %1510 = vmatpush1.msra.mxu0 %v1467
    %1511 = vmatprep.subr.mxu0 0.0
    %1512 = vmatpush1.msra.mxu0 %v1468
    %1513 = vmatprep.subr.mxu0 0.0
    %1514 = vmatpush1.msra.mxu0 %v1469
    %1515 = vmatprep.subr.mxu0 0.0
    %1516 = vmatpush1.msra.mxu0 %v1470
    %1517 = vmatprep.subr.mxu0 0.0
    %1518 = vmatpush1.msra.mxu0 %v1471
    %1519 = vmatprep.subr.mxu0 0.0
    %1520 = vmatpush1.msra.mxu0 %v1472
    %1521 = vmatprep.subr.mxu0 0.0
    %1522 = vmatpush1.msra.mxu0 %v1473
    %1523 = vmatprep.subr.mxu0 0.0
    %1524 = vmatpush1.msra.mxu0 %v1474
    %1525 = vmatprep.subr.mxu0 0.0
    %1526 = vmatpush1.msra.mxu0 %v1475
    %1527 = vmatprep.subr.mxu0 0.0
    %1528 = vmatpush1.msra.mxu0 %v1476
    %1529 = vmatprep.subr.mxu0 0.0
    %1530 = vmatpush1.msra.mxu0 %v1477
    %1531 = vmatprep.subr.mxu0 0.0
    %1532 = vmatpush1.msra.mxu0 %v1478
    %1533 = vmatprep.subr.mxu0 0.0
    %1534 = vmatpush1.msra.mxu0 %v1479
    %1535 = vmatprep.subr.mxu0 0.0
    %1536 = vmatpush1.msra.mxu0 %v1480
    %1537 = vmatprep.subr.mxu0 0.0
    %1538 = vmatpush1.msra.mxu0 %v1481
    %1539 = vmatprep.subr.mxu0 0.0
    %1540 = vmatpush1.msra.mxu0 %v1482
    %1541 = vmatprep.subr.mxu0 0.0
    %1542 = vmatpush1.msra.mxu0 %v1483
    %1543 = vmatprep.subr.mxu0 0.0
    %1544 = vmatpush1.msra.mxu0 %v1484
    %1545 = vmatprep.subr.mxu0 0.0
    %1546 = vmatpush1.msra.mxu0 %v1485
    %1547 = vmatprep.subr.mxu0 0.0
    %1548 = vmatpush1.msra.mxu0 %v1486
    %1549 = vmatprep.subr.mxu0 0.0
    %1550 = vmatpush1.msra.mxu0 %v1487
    %1551 = vmatprep.subr.mxu0 0.0
    %1552 = vmatpush1.msra.mxu0 %v1488
    %1553 = vmatprep.subr.mxu0 0.0
    %1554 = vmatpush1.msra.mxu0 %v1489
    %1555 = vmatprep.mubr.f32.mxu0 %v1457
    %1556 = vmatmul.mubr.f32.gmra.mrb[0].mxu0 %v1456
    %v1557 = vpop.f32.mrb[0].mxu0
    %v1558 = vadd.f32 %v1490, %v1557
    %v1559 = vpop.f32.mrb[0].mxu0
    %1560 = vdwg.mxu0
    %1561 = vst [vmem:[%s17] sm:$0x1] %v1558
    %s1562 = scalar_lea.vmem %s1, 8
    %v1563 = vld [vmem:[%s1562] sm:$0x7f]
    %v1564 = vld [vmem:[%s2] sm:$0xff]
    %v1565 = vld [vmem:[%s2 + $0x8] sm:$0xff]
    %v1566 = vld [vmem:[%s2 + $0x10] sm:$0x1f]
    %v1567 = vld [vmem:[%s114] sm:$0xff]
    %v1568 = vld [vmem:[%s114 + $0x8] sm:$0xff]
    %v1569 = vld [vmem:[%s114 + $0x10] sm:$0x1f]
    %v1571 = vrot.slane %v1563, 1
    %v1572 = vsel %vm120, %v1571, 0
    %v1575 = vsel %vm123, %v1569, 0
    %1577 = vmatprep.subr.mxu0 0.0
    %1578 = vmatpush1.msra.mxu0 %v1567
    %1579 = vmatprep.subr.mxu0 0.0
    %1580 = vmatpush1.msra.mxu0 %v1568
    %1581 = vmatprep.subr.mxu0 0.0
    %1582 = vmatpush1.msra.mxu0 %v1575
    %1583 = vmatprep.subr.mxu0 0.0
    %1584 = vmatpush1.msra.mxu0 0.0
    %1585 = vmatprep.subr.mxu0 0.0
    %1586 = vmatpush1.msra.mxu0 0.0
    %1587 = vmatprep.subr.mxu0 0.0
    %1588 = vmatpush1.msra.mxu0 0.0
    %1589 = vmatprep.subr.mxu0 0.0
    %1590 = vmatpush1.msra.mxu0 0.0
    %1591 = vmatprep.subr.mxu0 0.0
    %1592 = vmatpush1.msra.mxu0 0.0
    %1593 = vmatprep.subr.mxu0 0.0
    %1594 = vmatpush1.msra.mxu0 0.0
    %1595 = vmatprep.subr.mxu0 0.0
    %1596 = vmatpush1.msra.mxu0 0.0
    %1597 = vmatprep.subr.mxu0 0.0
    %1598 = vmatpush1.msra.mxu0 0.0
    %1599 = vmatprep.subr.mxu0 0.0
    %1600 = vmatpush1.msra.mxu0 0.0
    %1601 = vmatprep.subr.mxu0 0.0
    %1602 = vmatpush1.msra.mxu0 0.0
    %1603 = vmatprep.subr.mxu0 0.0
    %1604 = vmatpush1.msra.mxu0 0.0
    %1605 = vmatprep.subr.mxu0 0.0
    %1606 = vmatpush1.msra.mxu0 0.0
    %1607 = vmatprep.subr.mxu0 0.0
    %1608 = vmatpush1.msra.mxu0 0.0
    %1609 = vmatprep.subr.mxu0 0.0
    %1610 = vmatpush1.msra.mxu0 0.0
    %1611 = vmatprep.subr.mxu0 0.0
    %1612 = vmatpush1.msra.mxu0 0.0
    %1613 = vmatprep.subr.mxu0 0.0
    %1614 = vmatpush1.msra.mxu0 0.0
    %1615 = vmatprep.subr.mxu0 0.0
    %1616 = vmatpush1.msra.mxu0 0.0
    %1617 = vmatprep.subr.mxu0 0.0
    %1618 = vmatpush1.msra.mxu0 0.0
    %1619 = vmatprep.subr.mxu0 0.0
    %1620 = vmatpush1.msra.mxu0 0.0
    %1621 = vmatprep.subr.mxu0 0.0
    %1622 = vmatpush1.msra.mxu0 0.0
    %1623 = vmatprep.subr.mxu0 0.0
    %1624 = vmatpush1.msra.mxu0 0.0
    %1625 = vmatprep.subr.mxu0 0.0
    %1626 = vmatpush1.msra.mxu0 0.0
    %1627 = vmatprep.subr.mxu0 0.0
    %1628 = vmatpush1.msra.mxu0 0.0
    %1629 = vmatprep.subr.mxu0 0.0
    %1630 = vmatpush1.msra.mxu0 0.0
    %1631 = vmatprep.subr.mxu0 0.0
    %1632 = vmatpush1.msra.mxu0 0.0
    %1633 = vmatprep.subr.mxu0 0.0
    %1634 = vmatpush1.msra.mxu0 0.0
    %1635 = vmatprep.subr.mxu0 0.0
    %1636 = vmatpush1.msra.mxu0 0.0
    %1637 = vmatprep.subr.mxu0 0.0
    %1638 = vmatpush1.msra.mxu0 0.0
    %1639 = vmatprep.subr.mxu0 0.0
    %1640 = vmatpush1.msra.mxu0 0.0
    %1641 = vmatprep.mubr.f32.mxu0 0.0
    %1642 = vmatmul.mubr.f32.gmra.mrb[0].mxu0 %v1572
    %v1643 = vpop.f32.mrb[0].mxu0
    %v1644 = vadd.f32 0.0, %v1643
    %v1645 = vpop.f32.mrb[0].mxu0
    %1646 = vdwg.mxu0
    %v1647 = vsel %vm120, %v1563, 0
    %v1650 = vsel %vm123, %v1566, 0
    %1652 = vmatprep.subr.mxu0 0.0
    %1653 = vmatpush1.msra.mxu0 %v1564
    %1654 = vmatprep.subr.mxu0 0.0
    %1655 = vmatpush1.msra.mxu0 %v1565
    %1656 = vmatprep.subr.mxu0 0.0
    %1657 = vmatpush1.msra.mxu0 %v1650
    %1658 = vmatprep.subr.mxu0 0.0
    %1659 = vmatpush1.msra.mxu0 0.0
    %1660 = vmatprep.subr.mxu0 0.0
    %1661 = vmatpush1.msra.mxu0 0.0
    %1662 = vmatprep.subr.mxu0 0.0
    %1663 = vmatpush1.msra.mxu0 0.0
    %1664 = vmatprep.subr.mxu0 0.0
    %1665 = vmatpush1.msra.mxu0 0.0
    %1666 = vmatprep.subr.mxu0 0.0
    %1667 = vmatpush1.msra.mxu0 0.0
    %1668 = vmatprep.subr.mxu0 0.0
    %1669 = vmatpush1.msra.mxu0 0.0
    %1670 = vmatprep.subr.mxu0 0.0
    %1671 = vmatpush1.msra.mxu0 0.0
    %1672 = vmatprep.subr.mxu0 0.0
    %1673 = vmatpush1.msra.mxu0 0.0
    %1674 = vmatprep.subr.mxu0 0.0
    %1675 = vmatpush1.msra.mxu0 0.0
    %1676 = vmatprep.subr.mxu0 0.0
    %1677 = vmatpush1.msra.mxu0 0.0
    %1678 = vmatprep.subr.mxu0 0.0
    %1679 = vmatpush1.msra.mxu0 0.0
    %1680 = vmatprep.subr.mxu0 0.0
    %1681 = vmatpush1.msra.mxu0 0.0
    %1682 = vmatprep.subr.mxu0 0.0
    %1683 = vmatpush1.msra.mxu0 0.0
    %1684 = vmatprep.subr.mxu0 0.0
    %1685 = vmatpush1.msra.mxu0 0.0
    %1686 = vmatprep.subr.mxu0 0.0
    %1687 = vmatpush1.msra.mxu0 0.0
    %1688 = vmatprep.subr.mxu0 0.0
    %1689 = vmatpush1.msra.mxu0 0.0
    %1690 = vmatprep.subr.mxu0 0.0
    %1691 = vmatpush1.msra.mxu0 0.0
    %1692 = vmatprep.subr.mxu0 0.0
    %1693 = vmatpush1.msra.mxu0 0.0
    %1694 = vmatprep.subr.mxu0 0.0
    %1695 = vmatpush1.msra.mxu0 0.0
    %1696 = vmatprep.subr.mxu0 0.0
    %1697 = vmatpush1.msra.mxu0 0.0
    %1698 = vmatprep.subr.mxu0 0.0
    %1699 = vmatpush1.msra.mxu0 0.0
    %1700 = vmatprep.subr.mxu0 0.0
    %1701 = vmatpush1.msra.mxu0 0.0
    %1702 = vmatprep.subr.mxu0 0.0
    %1703 = vmatpush1.msra.mxu0 0.0
    %1704 = vmatprep.subr.mxu0 0.0
    %1705 = vmatpush1.msra.mxu0 0.0
    %1706 = vmatprep.subr.mxu0 0.0
    %1707 = vmatpush1.msra.mxu0 0.0
    %1708 = vmatprep.subr.mxu0 0.0
    %1709 = vmatpush1.msra.mxu0 0.0
    %1710 = vmatprep.subr.mxu0 0.0
    %1711 = vmatpush1.msra.mxu0 0.0
    %1712 = vmatprep.subr.mxu0 0.0
    %1713 = vmatpush1.msra.mxu0 0.0
    %1714 = vmatprep.subr.mxu0 0.0
    %1715 = vmatpush1.msra.mxu0 0.0
    %1716 = vmatprep.mubr.f32.mxu0 0.0
    %1717 = vmatmul.mubr.f32.gmra.mrb[0].mxu0 %v1647
    %v1718 = vpop.f32.mrb[0].mxu0
    %v1719 = vadd.f32 %v1644, %v1718
    %v1720 = vpop.f32.mrb[0].mxu0
    %1721 = vdwg.mxu0
    %v1722 = vld [vmem:[%s3] sm:$0x1]
    %v1724 = vlaneseq
    %v1725 = vshrl.u32 %v1724, 7
    %v1726 = vsub.s32 0, %v1725
    %v1727 = vrot.slane %v1722, %v1726
    %v1729 = vadd.f32 %v1719, %v1727
    %v1730 = vmax.f32 %v1729, 0.0
    %v1731 = vld [vmem:[%s4] sm:$0xff]
    %v1732 = vld [vmem:[%s4 + $0x8] sm:$0xff]
    %v1733 = vld [vmem:[%s4 + $0x10] sm:$0xff]
    %v1734 = vld [vmem:[%s4 + $0x18] sm:$0xff]
    %v1735 = vld [vmem:[%s4 + $0x20] sm:$0xff]
    %v1736 = vld [vmem:[%s4 + $0x28] sm:$0xff]
    %v1737 = vld [vmem:[%s4 + $0x30] sm:$0xff]
    %v1738 = vld [vmem:[%s4 + $0x38] sm:$0xff]
    %v1739 = vld [vmem:[%s4 + $0x40] sm:$0xff]
    %v1740 = vld [vmem:[%s4 + $0x48] sm:$0xff]
    %v1741 = vld [vmem:[%s4 + $0x50] sm:$0xff]
    %v1742 = vld [vmem:[%s4 + $0x58] sm:$0xff]
    %v1743 = vld [vmem:[%s4 + $0x60] sm:$0xff]
    %v1744 = vld [vmem:[%s4 + $0x68] sm:$0xff]
    %v1745 = vld [vmem:[%s4 + $0x70] sm:$0xff]
    %v1746 = vld [vmem:[%s4 + $0x78] sm:$0xff]
    %v1747 = vld [vmem:[%s4 + $0x80] sm:$0xff]
    %v1748 = vld [vmem:[%s4 + $0x88] sm:$0xff]
    %v1749 = vld [vmem:[%s4 + $0x90] sm:$0xff]
    %v1750 = vld [vmem:[%s4 + $0x98] sm:$0xff]
    %v1751 = vld [vmem:[%s4 + $0xa0] sm:$0xff]
    %v1752 = vld [vmem:[%s4 + $0xa8] sm:$0xff]
    %v1753 = vld [vmem:[%s4 + $0xb0] sm:$0xff]
    %v1754 = vld [vmem:[%s4 + $0xb8] sm:$0xff]
    %v1755 = vld [vmem:[%s305] sm:$0xff]
    %v1756 = vld [vmem:[%s305 + $0x8] sm:$0xff]
    %v1757 = vld [vmem:[%s305 + $0x10] sm:$0xff]
    %v1758 = vld [vmem:[%s305 + $0x18] sm:$0xff]
    %v1759 = vld [vmem:[%s305 + $0x20] sm:$0xff]
    %v1760 = vld [vmem:[%s305 + $0x28] sm:$0xff]
    %v1761 = vld [vmem:[%s305 + $0x30] sm:$0xff]
    %v1762 = vld [vmem:[%s305 + $0x38] sm:$0xff]
    %v1763 = vld [vmem:[%s305 + $0x40] sm:$0xff]
    %v1764 = vld [vmem:[%s305 + $0x48] sm:$0xff]
    %v1765 = vld [vmem:[%s305 + $0x50] sm:$0xff]
    %v1766 = vld [vmem:[%s305 + $0x58] sm:$0xff]
    %v1767 = vld [vmem:[%s305 + $0x60] sm:$0xff]
    %v1768 = vld [vmem:[%s305 + $0x68] sm:$0xff]
    %v1769 = vld [vmem:[%s305 + $0x70] sm:$0xff]
    %v1770 = vld [vmem:[%s305 + $0x78] sm:$0xff]
    %v1771 = vld [vmem:[%s305 + $0x80] sm:$0xff]
    %v1772 = vld [vmem:[%s305 + $0x88] sm:$0xff]
    %v1773 = vld [vmem:[%s305 + $0x90] sm:$0xff]
    %v1774 = vld [vmem:[%s305 + $0x98] sm:$0xff]
    %v1775 = vld [vmem:[%s305 + $0xa0] sm:$0xff]
    %v1776 = vld [vmem:[%s305 + $0xa8] sm:$0xff]
    %v1777 = vld [vmem:[%s305 + $0xb0] sm:$0xff]
    %v1778 = vld [vmem:[%s305 + $0xb8] sm:$0xff]
    %v1780 = vrot.slane %v1730, 1
    %v1781 = vsel %vm332, %v1780, 0
    %1783 = vmatprep.subr.mxu0 %v1756
    %1784 = vmatpush1.msra.mxu0 %v1755
    %1785 = vmatprep.subr.mxu0 %v1758
    %1786 = vmatpush1.msra.mxu0 %v1757
    %1787 = vmatprep.subr.mxu0 %v1760
    %1788 = vmatpush1.msra.mxu0 %v1759
    %1789 = vmatprep.subr.mxu0 %v1762
    %1790 = vmatpush1.msra.mxu0 %v1761
    %1791 = vmatprep.subr.mxu0 %v1764
    %1792 = vmatpush1.msra.mxu0 %v1763
    %1793 = vmatprep.subr.mxu0 %v1766
    %1794 = vmatpush1.msra.mxu0 %v1765
    %1795 = vmatprep.subr.mxu0 %v1768
    %1796 = vmatpush1.msra.mxu0 %v1767
    %1797 = vmatprep.subr.mxu0 %v1770
    %1798 = vmatpush1.msra.mxu0 %v1769
    %1799 = vmatprep.subr.mxu0 %v1772
    %1800 = vmatpush1.msra.mxu0 %v1771
    %1801 = vmatprep.subr.mxu0 %v1774
    %1802 = vmatpush1.msra.mxu0 %v1773
    %1803 = vmatprep.subr.mxu0 %v1776
    %1804 = vmatpush1.msra.mxu0 %v1775
    %1805 = vmatprep.subr.mxu0 %v1778
    %1806 = vmatpush1.msra.mxu0 %v1777
    %1807 = vmatprep.subr.mxu0 0.0
    %1808 = vmatpush1.msra.mxu0 0.0
    %1809 = vmatprep.subr.mxu0 0.0
    %1810 = vmatpush1.msra.mxu0 0.0
    %1811 = vmatprep.subr.mxu0 0.0
    %1812 = vmatpush1.msra.mxu0 0.0
    %1813 = vmatprep.subr.mxu0 0.0
    %1814 = vmatpush1.msra.mxu0 0.0
    %1815 = vmatprep.subr.mxu0 0.0
    %1816 = vmatpush1.msra.mxu0 0.0
    %1817 = vmatprep.subr.mxu0 0.0
    %1818 = vmatpush1.msra.mxu0 0.0
    %1819 = vmatprep.subr.mxu0 0.0
    %1820 = vmatpush1.msra.mxu0 0.0
    %1821 = vmatprep.subr.mxu0 0.0
    %1822 = vmatpush1.msra.mxu0 0.0
    %1823 = vmatprep.subr.mxu0 0.0
    %1824 = vmatpush1.msra.mxu0 0.0
    %1825 = vmatprep.subr.mxu0 0.0
    %1826 = vmatpush1.msra.mxu0 0.0
    %1827 = vmatprep.subr.mxu0 0.0
    %1828 = vmatpush1.msra.mxu0 0.0
    %1829 = vmatprep.subr.mxu0 0.0
    %1830 = vmatpush1.msra.mxu0 0.0
    %1831 = vmatprep.subr.mxu0 0.0
    %1832 = vmatpush1.msra.mxu0 0.0
    %1833 = vmatprep.subr.mxu0 0.0
    %1834 = vmatpush1.msra.mxu0 0.0
    %1835 = vmatprep.subr.mxu0 0.0
    %1836 = vmatpush1.msra.mxu0 0.0
    %1837 = vmatprep.subr.mxu0 0.0
    %1838 = vmatpush1.msra.mxu0 0.0
    %1839 = vmatprep.subr.mxu0 0.0
    %1840 = vmatpush1.msra.mxu0 0.0
    %1841 = vmatprep.subr.mxu0 0.0
    %1842 = vmatpush1.msra.mxu0 0.0
    %1843 = vmatprep.subr.mxu0 0.0
    %1844 = vmatpush1.msra.mxu0 0.0
    %1845 = vmatprep.subr.mxu0 0.0
    %1846 = vmatpush1.msra.mxu0 0.0
    %1847 = vmatprep.mubr.f32.mxu0 0.0
    %1848 = vmatmul.mubr.f32.gmra.mrb[0].mxu0 %v1781
    %v1849 = vpop.f32.mrb[0].mxu0
    %v1850 = vadd.f32 0.0, %v1849
    %v1851 = vpop.f32.mrb[0].mxu0
    %v1852 = vadd.f32 0.0, %v1851
    %1853 = vdwg.mxu0
    %v1854 = vsel %vm332, %v1730, 0
    %1856 = vmatprep.subr.mxu0 %v1732
    %1857 = vmatpush1.msra.mxu0 %v1731
    %1858 = vmatprep.subr.mxu0 %v1734
    %1859 = vmatpush1.msra.mxu0 %v1733
    %1860 = vmatprep.subr.mxu0 %v1736
    %1861 = vmatpush1.msra.mxu0 %v1735
    %1862 = vmatprep.subr.mxu0 %v1738
    %1863 = vmatpush1.msra.mxu0 %v1737
    %1864 = vmatprep.subr.mxu0 %v1740
    %1865 = vmatpush1.msra.mxu0 %v1739
    %1866 = vmatprep.subr.mxu0 %v1742
    %1867 = vmatpush1.msra.mxu0 %v1741
    %1868 = vmatprep.subr.mxu0 %v1744
    %1869 = vmatpush1.msra.mxu0 %v1743
    %1870 = vmatprep.subr.mxu0 %v1746
    %1871 = vmatpush1.msra.mxu0 %v1745
    %1872 = vmatprep.subr.mxu0 %v1748
    %1873 = vmatpush1.msra.mxu0 %v1747
    %1874 = vmatprep.subr.mxu0 %v1750
    %1875 = vmatpush1.msra.mxu0 %v1749
    %1876 = vmatprep.subr.mxu0 %v1752
    %1877 = vmatpush1.msra.mxu0 %v1751
    %1878 = vmatprep.subr.mxu0 %v1754
    %1879 = vmatpush1.msra.mxu0 %v1753
    %1880 = vmatprep.subr.mxu0 0.0
    %1881 = vmatpush1.msra.mxu0 0.0
    %1882 = vmatprep.subr.mxu0 0.0
    %1883 = vmatpush1.msra.mxu0 0.0
    %1884 = vmatprep.subr.mxu0 0.0
    %1885 = vmatpush1.msra.mxu0 0.0
    %1886 = vmatprep.subr.mxu0 0.0
    %1887 = vmatpush1.msra.mxu0 0.0
    %1888 = vmatprep.subr.mxu0 0.0
    %1889 = vmatpush1.msra.mxu0 0.0
    %1890 = vmatprep.subr.mxu0 0.0
    %1891 = vmatpush1.msra.mxu0 0.0
    %1892 = vmatprep.subr.mxu0 0.0
    %1893 = vmatpush1.msra.mxu0 0.0
    %1894 = vmatprep.subr.mxu0 0.0
    %1895 = vmatpush1.msra.mxu0 0.0
    %1896 = vmatprep.subr.mxu0 0.0
    %1897 = vmatpush1.msra.mxu0 0.0
    %1898 = vmatprep.subr.mxu0 0.0
    %1899 = vmatpush1.msra.mxu0 0.0
    %1900 = vmatprep.subr.mxu0 0.0
    %1901 = vmatpush1.msra.mxu0 0.0
    %1902 = vmatprep.subr.mxu0 0.0
    %1903 = vmatpush1.msra.mxu0 0.0
    %1904 = vmatprep.subr.mxu0 0.0
    %1905 = vmatpush1.msra.mxu0 0.0
    %1906 = vmatprep.subr.mxu0 0.0
    %1907 = vmatpush1.msra.mxu0 0.0
    %1908 = vmatprep.subr.mxu0 0.0
    %1909 = vmatpush1.msra.mxu0 0.0
    %1910 = vmatprep.subr.mxu0 0.0
    %1911 = vmatpush1.msra.mxu0 0.0
    %1912 = vmatprep.subr.mxu0 0.0
    %1913 = vmatpush1.msra.mxu0 0.0
    %1914 = vmatprep.subr.mxu0 0.0
    %1915 = vmatpush1.msra.mxu0 0.0
    %1916 = vmatprep.subr.mxu0 0.0
    %1917 = vmatpush1.msra.mxu0 0.0
    %1918 = vmatprep.subr.mxu0 0.0
    %1919 = vmatpush1.msra.mxu0 0.0
    %1920 = vmatprep.mubr.f32.mxu0 0.0
    %1921 = vmatmul.mubr.f32.gmra.mrb[0].mxu0 %v1854
    %v1922 = vpop.f32.mrb[0].mxu0
    %v1923 = vadd.f32 %v1850, %v1922
    %v1924 = vpop.f32.mrb[0].mxu0
    %v1925 = vadd.f32 %v1852, %v1924
    %1926 = vdwg.mxu0
    %v1927 = vld [vmem:[%s5] sm:$0x3]
    %v1929 = vlaneseq
    %v1930 = vshrl.u32 %v1929, 7
    %v1931 = vsub.s32 0, %v1930
    %v1932 = vrot.slane %v1927, %v1931
    %v1933 = vlaneseq
    %v1934 = vshrl.u32 %v1933, 7
    %v1935 = vsub.s32 1, %v1934
    %v1936 = vrot.slane %v1927, %v1935
    %v1939 = vadd.f32 %v1923, %v1932
    %v1940 = vadd.f32 %v1925, %v1936
    %v1941 = vmax.f32 %v1939, 0.0
    %v1942 = vmax.f32 %v1940, 0.0
    %v1943 = vld [vmem:[%s6] sm:$0xff]
    %v1944 = vld [vmem:[%s6 + $0x8] sm:$0xff]
    %v1945 = vld [vmem:[%s6 + $0x10] sm:$0xff]
    %v1946 = vld [vmem:[%s6 + $0x18] sm:$0xff]
    %v1947 = vld [vmem:[%s6 + $0x20] sm:$0xff]
    %v1948 = vld [vmem:[%s6 + $0x28] sm:$0xff]
    %v1949 = vld [vmem:[%s6 + $0x30] sm:$0xff]
    %v1950 = vld [vmem:[%s6 + $0x38] sm:$0xff]
    %v1951 = vld [vmem:[%s6 + $0x40] sm:$0xff]
    %v1952 = vld [vmem:[%s6 + $0x48] sm:$0xff]
    %v1953 = vld [vmem:[%s6 + $0x50] sm:$0xff]
    %v1954 = vld [vmem:[%s6 + $0x58] sm:$0xff]
    %v1955 = vld [vmem:[%s6 + $0x60] sm:$0xff]
    %v1956 = vld [vmem:[%s6 + $0x68] sm:$0xff]
    %v1957 = vld [vmem:[%s6 + $0x70] sm:$0xff]
    %v1958 = vld [vmem:[%s6 + $0x78] sm:$0xff]
    %v1959 = vld [vmem:[%s6 + $0x80] sm:$0xff]
    %v1960 = vld [vmem:[%s6 + $0x88] sm:$0xff]
    %v1961 = vld [vmem:[%s6 + $0x90] sm:$0xff]
    %v1962 = vld [vmem:[%s6 + $0x98] sm:$0xff]
    %v1963 = vld [vmem:[%s6 + $0xa0] sm:$0xff]
    %v1964 = vld [vmem:[%s6 + $0xa8] sm:$0xff]
    %v1965 = vld [vmem:[%s6 + $0xb0] sm:$0xff]
    %v1966 = vld [vmem:[%s6 + $0xb8] sm:$0xff]
    %v1967 = vld [vmem:[%s6 + $0xc0] sm:$0xff]
    %v1968 = vld [vmem:[%s6 + $0xc8] sm:$0xff]
    %v1969 = vld [vmem:[%s6 + $0xd0] sm:$0xff]
    %v1970 = vld [vmem:[%s6 + $0xd8] sm:$0xff]
    %v1971 = vld [vmem:[%s6 + $0xe0] sm:$0xff]
    %v1972 = vld [vmem:[%s6 + $0xe8] sm:$0xff]
    %v1973 = vld [vmem:[%s6 + $0xf0] sm:$0xff]
    %v1974 = vld [vmem:[%s6 + $0xf8] sm:$0xff]
    %v1975 = vld [vmem:[%s6 + $0x100] sm:$0xff]
    %v1976 = vld [vmem:[%s6 + $0x108] sm:$0xff]
    %v1977 = vld [vmem:[%s6 + $0x110] sm:$0xff]
    %v1978 = vld [vmem:[%s6 + $0x118] sm:$0xff]
    %v1979 = vld [vmem:[%s6 + $0x120] sm:$0xff]
    %v1980 = vld [vmem:[%s6 + $0x128] sm:$0xff]
    %v1981 = vld [vmem:[%s6 + $0x130] sm:$0xff]
    %v1982 = vld [vmem:[%s6 + $0x138] sm:$0xff]
    %v1983 = vld [vmem:[%s535] sm:$0xff]
    %v1984 = vld [vmem:[%s535 + $0x8] sm:$0xff]
    %v1985 = vld [vmem:[%s535 + $0x10] sm:$0xff]
    %v1986 = vld [vmem:[%s535 + $0x18] sm:$0xff]
    %v1987 = vld [vmem:[%s535 + $0x20] sm:$0xff]
    %v1988 = vld [vmem:[%s535 + $0x28] sm:$0xff]
    %v1989 = vld [vmem:[%s535 + $0x30] sm:$0xff]
    %v1990 = vld [vmem:[%s535 + $0x38] sm:$0xff]
    %v1991 = vld [vmem:[%s535 + $0x40] sm:$0xff]
    %v1992 = vld [vmem:[%s535 + $0x48] sm:$0xff]
    %v1993 = vld [vmem:[%s535 + $0x50] sm:$0xff]
    %v1994 = vld [vmem:[%s535 + $0x58] sm:$0xff]
    %v1995 = vld [vmem:[%s535 + $0x60] sm:$0xff]
    %v1996 = vld [vmem:[%s535 + $0x68] sm:$0xff]
    %v1997 = vld [vmem:[%s535 + $0x70] sm:$0xff]
    %v1998 = vld [vmem:[%s535 + $0x78] sm:$0xff]
    %v1999 = vld [vmem:[%s535 + $0x80] sm:$0xff]
    %v2000 = vld [vmem:[%s535 + $0x88] sm:$0xff]
    %v2001 = vld [vmem:[%s535 + $0x90] sm:$0xff]
    %v2002 = vld [vmem:[%s535 + $0x98] sm:$0xff]
    %v2003 = vld [vmem:[%s535 + $0xa0] sm:$0xff]
    %v2004 = vld [vmem:[%s535 + $0xa8] sm:$0xff]
    %v2005 = vld [vmem:[%s535 + $0xb0] sm:$0xff]
    %v2006 = vld [vmem:[%s535 + $0xb8] sm:$0xff]
    %v2007 = vld [vmem:[%s535 + $0xc0] sm:$0xff]
    %v2008 = vld [vmem:[%s535 + $0xc8] sm:$0xff]
    %v2009 = vld [vmem:[%s535 + $0xd0] sm:$0xff]
    %v2010 = vld [vmem:[%s535 + $0xd8] sm:$0xff]
    %v2011 = vld [vmem:[%s535 + $0xe0] sm:$0xff]
    %v2012 = vld [vmem:[%s535 + $0xe8] sm:$0xff]
    %v2013 = vld [vmem:[%s535 + $0xf0] sm:$0xff]
    %v2014 = vld [vmem:[%s535 + $0xf8] sm:$0xff]
    %v2015 = vld [vmem:[%s535 + $0x100] sm:$0xff]
    %v2016 = vld [vmem:[%s535 + $0x108] sm:$0xff]
    %v2017 = vld [vmem:[%s535 + $0x110] sm:$0xff]
    %v2018 = vld [vmem:[%s535 + $0x118] sm:$0xff]
    %v2019 = vld [vmem:[%s535 + $0x120] sm:$0xff]
    %v2020 = vld [vmem:[%s535 + $0x128] sm:$0xff]
    %v2021 = vld [vmem:[%s535 + $0x130] sm:$0xff]
    %v2022 = vld [vmem:[%s535 + $0x138] sm:$0xff]
    %v2025 = vrot.slane %v1941, 1
    %v2026 = vrot.slane %v1942, 1
    %v2028 = vsel %vm581, %v2026, 0
    %2030 = vmatprep.subr.mxu0 %v1984
    %2031 = vmatpush1.msra.mxu0 %v1983
    %2032 = vmatprep.subr.mxu0 %v1986
    %2033 = vmatpush1.msra.mxu0 %v1985
    %2034 = vmatprep.subr.mxu0 %v1988
    %2035 = vmatpush1.msra.mxu0 %v1987
    %2036 = vmatprep.subr.mxu0 %v1990
    %2037 = vmatpush1.msra.mxu0 %v1989
    %2038 = vmatprep.subr.mxu0 %v1992
    %2039 = vmatpush1.msra.mxu0 %v1991
    %2040 = vmatprep.subr.mxu0 %v1994
    %2041 = vmatpush1.msra.mxu0 %v1993
    %2042 = vmatprep.subr.mxu0 %v1996
    %2043 = vmatpush1.msra.mxu0 %v1995
    %2044 = vmatprep.subr.mxu0 %v1998
    %2045 = vmatpush1.msra.mxu0 %v1997
    %2046 = vmatprep.subr.mxu0 %v2000
    %2047 = vmatpush1.msra.mxu0 %v1999
    %2048 = vmatprep.subr.mxu0 %v2002
    %2049 = vmatpush1.msra.mxu0 %v2001
    %2050 = vmatprep.subr.mxu0 %v2004
    %2051 = vmatpush1.msra.mxu0 %v2003
    %2052 = vmatprep.subr.mxu0 %v2006
    %2053 = vmatpush1.msra.mxu0 %v2005
    %2054 = vmatprep.subr.mxu0 %v2008
    %2055 = vmatpush1.msra.mxu0 %v2007
    %2056 = vmatprep.subr.mxu0 %v2010
    %2057 = vmatpush1.msra.mxu0 %v2009
    %2058 = vmatprep.subr.mxu0 %v2012
    %2059 = vmatpush1.msra.mxu0 %v2011
    %2060 = vmatprep.subr.mxu0 %v2014
    %2061 = vmatpush1.msra.mxu0 %v2013
    %2062 = vmatprep.subr.mxu0 %v2016
    %2063 = vmatpush1.msra.mxu0 %v2015
    %2064 = vmatprep.subr.mxu0 %v2018
    %2065 = vmatpush1.msra.mxu0 %v2017
    %2066 = vmatprep.subr.mxu0 %v2020
    %2067 = vmatpush1.msra.mxu0 %v2019
    %2068 = vmatprep.subr.mxu0 %v2022
    %2069 = vmatpush1.msra.mxu0 %v2021
    %2070 = vmatprep.subr.mxu0 0.0
    %2071 = vmatpush1.msra.mxu0 0.0
    %2072 = vmatprep.subr.mxu0 0.0
    %2073 = vmatpush1.msra.mxu0 0.0
    %2074 = vmatprep.subr.mxu0 0.0
    %2075 = vmatpush1.msra.mxu0 0.0
    %2076 = vmatprep.subr.mxu0 0.0
    %2077 = vmatpush1.msra.mxu0 0.0
    %2078 = vmatprep.subr.mxu0 0.0
    %2079 = vmatpush1.msra.mxu0 0.0
    %2080 = vmatprep.subr.mxu0 0.0
    %2081 = vmatpush1.msra.mxu0 0.0
    %2082 = vmatprep.subr.mxu0 0.0
    %2083 = vmatpush1.msra.mxu0 0.0
    %2084 = vmatprep.subr.mxu0 0.0
    %2085 = vmatpush1.msra.mxu0 0.0
    %2086 = vmatprep.subr.mxu0 0.0
    %2087 = vmatpush1.msra.mxu0 0.0
    %2088 = vmatprep.subr.mxu0 0.0
    %2089 = vmatpush1.msra.mxu0 0.0
    %2090 = vmatprep.subr.mxu0 0.0
    %2091 = vmatpush1.msra.mxu0 0.0
    %2092 = vmatprep.subr.mxu0 0.0
    %2093 = vmatpush1.msra.mxu0 0.0
    %2094 = vmatprep.mubr.f32.mxu0 %v2028
    %2095 = vmatmul.mubr.f32.gmra.mrb[0].mxu0 %v2025
    %v2096 = vpop.f32.mrb[0].mxu0
    %v2097 = vadd.f32 0.0, %v2096
    %v2098 = vpop.f32.mrb[0].mxu0
    %v2099 = vadd.f32 0.0, %v2098
    %2100 = vdwg.mxu0
    %v2101 = vsel %vm581, %v1942, 0
    %2103 = vmatprep.subr.mxu0 %v1944
    %2104 = vmatpush1.msra.mxu0 %v1943
    %2105 = vmatprep.subr.mxu0 %v1946
    %2106 = vmatpush1.msra.mxu0 %v1945
    %2107 = vmatprep.subr.mxu0 %v1948
    %2108 = vmatpush1.msra.mxu0 %v1947
    %2109 = vmatprep.subr.mxu0 %v1950
    %2110 = vmatpush1.msra.mxu0 %v1949
    %2111 = vmatprep.subr.mxu0 %v1952
    %2112 = vmatpush1.msra.mxu0 %v1951
    %2113 = vmatprep.subr.mxu0 %v1954
    %2114 = vmatpush1.msra.mxu0 %v1953
    %2115 = vmatprep.subr.mxu0 %v1956
    %2116 = vmatpush1.msra.mxu0 %v1955
    %2117 = vmatprep.subr.mxu0 %v1958
    %2118 = vmatpush1.msra.mxu0 %v1957
    %2119 = vmatprep.subr.mxu0 %v1960
    %2120 = vmatpush1.msra.mxu0 %v1959
    %2121 = vmatprep.subr.mxu0 %v1962
    %2122 = vmatpush1.msra.mxu0 %v1961
    %2123 = vmatprep.subr.mxu0 %v1964
    %2124 = vmatpush1.msra.mxu0 %v1963
    %2125 = vmatprep.subr.mxu0 %v1966
    %2126 = vmatpush1.msra.mxu0 %v1965
    %2127 = vmatprep.subr.mxu0 %v1968
    %2128 = vmatpush1.msra.mxu0 %v1967
    %2129 = vmatprep.subr.mxu0 %v1970
    %2130 = vmatpush1.msra.mxu0 %v1969
    %2131 = vmatprep.subr.mxu0 %v1972
    %2132 = vmatpush1.msra.mxu0 %v1971
    %2133 = vmatprep.subr.mxu0 %v1974
    %2134 = vmatpush1.msra.mxu0 %v1973
    %2135 = vmatprep.subr.mxu0 %v1976
    %2136 = vmatpush1.msra.mxu0 %v1975
    %2137 = vmatprep.subr.mxu0 %v1978
    %2138 = vmatpush1.msra.mxu0 %v1977
    %2139 = vmatprep.subr.mxu0 %v1980
    %2140 = vmatpush1.msra.mxu0 %v1979
    %2141 = vmatprep.subr.mxu0 %v1982
    %2142 = vmatpush1.msra.mxu0 %v1981
    %2143 = vmatprep.subr.mxu0 0.0
    %2144 = vmatpush1.msra.mxu0 0.0
    %2145 = vmatprep.subr.mxu0 0.0
    %2146 = vmatpush1.msra.mxu0 0.0
    %2147 = vmatprep.subr.mxu0 0.0
    %2148 = vmatpush1.msra.mxu0 0.0
    %2149 = vmatprep.subr.mxu0 0.0
    %2150 = vmatpush1.msra.mxu0 0.0
    %2151 = vmatprep.subr.mxu0 0.0
    %2152 = vmatpush1.msra.mxu0 0.0
    %2153 = vmatprep.subr.mxu0 0.0
    %2154 = vmatpush1.msra.mxu0 0.0
    %2155 = vmatprep.subr.mxu0 0.0
    %2156 = vmatpush1.msra.mxu0 0.0
    %2157 = vmatprep.subr.mxu0 0.0
    %2158 = vmatpush1.msra.mxu0 0.0
    %2159 = vmatprep.subr.mxu0 0.0
    %2160 = vmatpush1.msra.mxu0 0.0
    %2161 = vmatprep.subr.mxu0 0.0
    %2162 = vmatpush1.msra.mxu0 0.0
    %2163 = vmatprep.subr.mxu0 0.0
    %2164 = vmatpush1.msra.mxu0 0.0
    %2165 = vmatprep.subr.mxu0 0.0
    %2166 = vmatpush1.msra.mxu0 0.0
    %2167 = vmatprep.mubr.f32.mxu0 %v2101
    %2168 = vmatmul.mubr.f32.gmra.mrb[0].mxu0 %v1941
    %v2169 = vpop.f32.mrb[0].mxu0
    %v2170 = vadd.f32 %v2097, %v2169
    %v2171 = vpop.f32.mrb[0].mxu0
    %v2172 = vadd.f32 %v2099, %v2171
    %2173 = vdwg.mxu0
    %v2174 = vld [vmem:[%s7] sm:$0x3]
    %v2176 = vlaneseq
    %v2177 = vshrl.u32 %v2176, 7
    %v2178 = vsub.s32 0, %v2177
    %v2179 = vrot.slane %v2174, %v2178
    %v2180 = vlaneseq
    %v2181 = vshrl.u32 %v2180, 7
    %v2182 = vsub.s32 1, %v2181
    %v2183 = vrot.slane %v2174, %v2182
    %v2186 = vadd.f32 %v2170, %v2179
    %v2187 = vadd.f32 %v2172, %v2183
    %v2188 = vmax.f32 %v2186, 0.0
    %v2189 = vmax.f32 %v2187, 0.0
    %v2190 = vld [vmem:[%s9] sm:$0x1]
    %v2191 = vld [vmem:[#allocation5] sm:$0xff]
    %v2192 = vld [vmem:[#allocation5 + $0x8] sm:$0xff]
    %v2193 = vld [vmem:[#allocation5 + $0x10] sm:$0xff]
    %v2194 = vld [vmem:[#allocation5 + $0x18] sm:$0xff]
    %v2195 = vld [vmem:[#allocation5 + $0x20] sm:$0xff]
    %v2196 = vld [vmem:[#allocation5 + $0x28] sm:$0xff]
    %v2197 = vld [vmem:[#allocation5 + $0x30] sm:$0xff]
    %v2198 = vld [vmem:[#allocation5 + $0x38] sm:$0xff]
    %v2199 = vld [vmem:[#allocation5 + $0x40] sm:$0xff]
    %v2200 = vld [vmem:[#allocation5 + $0x48] sm:$0xff]
    %v2201 = vld [vmem:[#allocation5 + $0x50] sm:$0xff]
    %v2202 = vld [vmem:[#allocation5 + $0x58] sm:$0xff]
    %v2203 = vld [vmem:[#allocation5 + $0x60] sm:$0xff]
    %v2204 = vld [vmem:[#allocation5 + $0x68] sm:$0xff]
    %v2205 = vld [vmem:[#allocation5 + $0x70] sm:$0xff]
    %v2206 = vld [vmem:[#allocation5 + $0x78] sm:$0xff]
    %v2207 = vld [vmem:[#allocation5 + $0x80] sm:$0xff]
    %v2208 = vld [vmem:[#allocation5 + $0x88] sm:$0xff]
    %v2209 = vld [vmem:[#allocation5 + $0x90] sm:$0xff]
    %v2210 = vld [vmem:[#allocation5 + $0x98] sm:$0xff]
    %v2211 = vld [vmem:[#allocation5 + $0xa0] sm:$0xff]
    %v2212 = vld [vmem:[#allocation5 + $0xa8] sm:$0xff]
    %v2213 = vld [vmem:[#allocation5 + $0xb0] sm:$0xff]
    %v2214 = vld [vmem:[#allocation5 + $0xb8] sm:$0xff]
    %v2215 = vld [vmem:[#allocation5 + $0xc0] sm:$0xff]
    %v2216 = vld [vmem:[#allocation5 + $0xc8] sm:$0xff]
    %v2217 = vld [vmem:[#allocation5 + $0xd0] sm:$0xff]
    %v2218 = vld [vmem:[#allocation5 + $0xd8] sm:$0xff]
    %v2219 = vld [vmem:[#allocation5 + $0xe0] sm:$0xff]
    %v2220 = vld [vmem:[#allocation5 + $0xe8] sm:$0xff]
    %v2221 = vld [vmem:[#allocation5 + $0xf0] sm:$0xff]
    %v2222 = vld [vmem:[#allocation5 + $0xf8] sm:$0xff]
    %2223 = vmatprep.subr.mxu0 0.0
    %2224 = vmatpush1.msra.mxu0 %v2191
    %2225 = vmatprep.subr.mxu0 0.0
    %2226 = vmatpush1.msra.mxu0 %v2192
    %2227 = vmatprep.subr.mxu0 0.0
    %2228 = vmatpush1.msra.mxu0 %v2193
    %2229 = vmatprep.subr.mxu0 0.0
    %2230 = vmatpush1.msra.mxu0 %v2194
    %2231 = vmatprep.subr.mxu0 0.0
    %2232 = vmatpush1.msra.mxu0 %v2195
    %2233 = vmatprep.subr.mxu0 0.0
    %2234 = vmatpush1.msra.mxu0 %v2196
    %2235 = vmatprep.subr.mxu0 0.0
    %2236 = vmatpush1.msra.mxu0 %v2197
    %2237 = vmatprep.subr.mxu0 0.0
    %2238 = vmatpush1.msra.mxu0 %v2198
    %2239 = vmatprep.subr.mxu0 0.0
    %2240 = vmatpush1.msra.mxu0 %v2199
    %2241 = vmatprep.subr.mxu0 0.0
    %2242 = vmatpush1.msra.mxu0 %v2200
    %2243 = vmatprep.subr.mxu0 0.0
    %2244 = vmatpush1.msra.mxu0 %v2201
    %2245 = vmatprep.subr.mxu0 0.0
    %2246 = vmatpush1.msra.mxu0 %v2202
    %2247 = vmatprep.subr.mxu0 0.0
    %2248 = vmatpush1.msra.mxu0 %v2203
    %2249 = vmatprep.subr.mxu0 0.0
    %2250 = vmatpush1.msra.mxu0 %v2204
    %2251 = vmatprep.subr.mxu0 0.0
    %2252 = vmatpush1.msra.mxu0 %v2205
    %2253 = vmatprep.subr.mxu0 0.0
    %2254 = vmatpush1.msra.mxu0 %v2206
    %2255 = vmatprep.subr.mxu0 0.0
    %2256 = vmatpush1.msra.mxu0 %v2207
    %2257 = vmatprep.subr.mxu0 0.0
    %2258 = vmatpush1.msra.mxu0 %v2208
    %2259 = vmatprep.subr.mxu0 0.0
    %2260 = vmatpush1.msra.mxu0 %v2209
    %2261 = vmatprep.subr.mxu0 0.0
    %2262 = vmatpush1.msra.mxu0 %v2210
    %2263 = vmatprep.subr.mxu0 0.0
    %2264 = vmatpush1.msra.mxu0 %v2211
    %2265 = vmatprep.subr.mxu0 0.0
    %2266 = vmatpush1.msra.mxu0 %v2212
    %2267 = vmatprep.subr.mxu0 0.0
    %2268 = vmatpush1.msra.mxu0 %v2213
    %2269 = vmatprep.subr.mxu0 0.0
    %2270 = vmatpush1.msra.mxu0 %v2214
    %2271 = vmatprep.subr.mxu0 0.0
    %2272 = vmatpush1.msra.mxu0 %v2215
    %2273 = vmatprep.subr.mxu0 0.0
    %2274 = vmatpush1.msra.mxu0 %v2216
    %2275 = vmatprep.subr.mxu0 0.0
    %2276 = vmatpush1.msra.mxu0 %v2217
    %2277 = vmatprep.subr.mxu0 0.0
    %2278 = vmatpush1.msra.mxu0 %v2218
    %2279 = vmatprep.subr.mxu0 0.0
    %2280 = vmatpush1.msra.mxu0 %v2219
    %2281 = vmatprep.subr.mxu0 0.0
    %2282 = vmatpush1.msra.mxu0 %v2220
    %2283 = vmatprep.subr.mxu0 0.0
    %2284 = vmatpush1.msra.mxu0 %v2221
    %2285 = vmatprep.subr.mxu0 0.0
    %2286 = vmatpush1.msra.mxu0 %v2222
    %2287 = vmatprep.mubr.f32.mxu0 %v2189
    %2288 = vmatmul.mubr.f32.gmra.mrb[0].mxu0 %v2188
    %v2289 = vpop.f32.mrb[0].mxu0
    %v2290 = vadd.f32 0.0, %v2289
    %v2291 = vpop.f32.mrb[0].mxu0
    %2292 = vdwg.mxu0
    %v2293 = vadd.f32 %v2190, %v2290
    %v2294 = vld [vmem:[%s848] sm:$0xff]
    %v2295 = vld [vmem:[%s848 + $0x8] sm:$0xff]
    %v2296 = vld [vmem:[%s848 + $0x10] sm:$0xff]
    %v2297 = vld [vmem:[%s848 + $0x18] sm:$0xff]
    %v2298 = vld [vmem:[%s848 + $0x20] sm:$0xff]
    %v2299 = vld [vmem:[%s848 + $0x28] sm:$0xff]
    %v2300 = vld [vmem:[%s848 + $0x30] sm:$0xff]
    %v2301 = vld [vmem:[%s848 + $0x38] sm:$0xff]
    %v2302 = vld [vmem:[%s848 + $0x40] sm:$0xff]
    %v2303 = vld [vmem:[%s848 + $0x48] sm:$0xff]
    %v2304 = vld [vmem:[%s848 + $0x50] sm:$0xff]
    %v2305 = vld [vmem:[%s848 + $0x58] sm:$0xff]
    %v2306 = vld [vmem:[%s848 + $0x60] sm:$0xff]
    %v2307 = vld [vmem:[%s848 + $0x68] sm:$0xff]
    %v2308 = vld [vmem:[%s848 + $0x70] sm:$0xff]
    %v2309 = vld [vmem:[%s848 + $0x78] sm:$0xff]
    %v2310 = vld [vmem:[%s848 + $0x80] sm:$0xff]
    %v2311 = vld [vmem:[%s848 + $0x88] sm:$0xff]
    %v2312 = vld [vmem:[%s848 + $0x90] sm:$0xff]
    %v2313 = vld [vmem:[%s848 + $0x98] sm:$0xff]
    %v2314 = vld [vmem:[%s848 + $0xa0] sm:$0xff]
    %v2315 = vld [vmem:[%s848 + $0xa8] sm:$0xff]
    %v2316 = vld [vmem:[%s848 + $0xb0] sm:$0xff]
    %v2317 = vld [vmem:[%s848 + $0xb8] sm:$0xff]
    %v2318 = vld [vmem:[%s848 + $0xc0] sm:$0xff]
    %v2319 = vld [vmem:[%s848 + $0xc8] sm:$0xff]
    %v2320 = vld [vmem:[%s848 + $0xd0] sm:$0xff]
    %v2321 = vld [vmem:[%s848 + $0xd8] sm:$0xff]
    %v2322 = vld [vmem:[%s848 + $0xe0] sm:$0xff]
    %v2323 = vld [vmem:[%s848 + $0xe8] sm:$0xff]
    %v2324 = vld [vmem:[%s848 + $0xf0] sm:$0xff]
    %v2325 = vld [vmem:[%s848 + $0xf8] sm:$0xff]
    %v2328 = vrot.slane %v2188, 1
    %v2329 = vrot.slane %v2189, 1
    %2332 = vmatprep.subr.mxu0 0.0
    %2333 = vmatpush1.msra.mxu0 %v2294
    %2334 = vmatprep.subr.mxu0 0.0
    %2335 = vmatpush1.msra.mxu0 %v2295
    %2336 = vmatprep.subr.mxu0 0.0
    %2337 = vmatpush1.msra.mxu0 %v2296
    %2338 = vmatprep.subr.mxu0 0.0
    %2339 = vmatpush1.msra.mxu0 %v2297
    %2340 = vmatprep.subr.mxu0 0.0
    %2341 = vmatpush1.msra.mxu0 %v2298
    %2342 = vmatprep.subr.mxu0 0.0
    %2343 = vmatpush1.msra.mxu0 %v2299
    %2344 = vmatprep.subr.mxu0 0.0
    %2345 = vmatpush1.msra.mxu0 %v2300
    %2346 = vmatprep.subr.mxu0 0.0
    %2347 = vmatpush1.msra.mxu0 %v2301
    %2348 = vmatprep.subr.mxu0 0.0
    %2349 = vmatpush1.msra.mxu0 %v2302
    %2350 = vmatprep.subr.mxu0 0.0
    %2351 = vmatpush1.msra.mxu0 %v2303
    %2352 = vmatprep.subr.mxu0 0.0
    %2353 = vmatpush1.msra.mxu0 %v2304
    %2354 = vmatprep.subr.mxu0 0.0
    %2355 = vmatpush1.msra.mxu0 %v2305
    %2356 = vmatprep.subr.mxu0 0.0
    %2357 = vmatpush1.msra.mxu0 %v2306
    %2358 = vmatprep.subr.mxu0 0.0
    %2359 = vmatpush1.msra.mxu0 %v2307
    %2360 = vmatprep.subr.mxu0 0.0
    %2361 = vmatpush1.msra.mxu0 %v2308
    %2362 = vmatprep.subr.mxu0 0.0
    %2363 = vmatpush1.msra.mxu0 %v2309
    %2364 = vmatprep.subr.mxu0 0.0
    %2365 = vmatpush1.msra.mxu0 %v2310
    %2366 = vmatprep.subr.mxu0 0.0
    %2367 = vmatpush1.msra.mxu0 %v2311
    %2368 = vmatprep.subr.mxu0 0.0
    %2369 = vmatpush1.msra.mxu0 %v2312
    %2370 = vmatprep.subr.mxu0 0.0
    %2371 = vmatpush1.msra.mxu0 %v2313
    %2372 = vmatprep.subr.mxu0 0.0
    %2373 = vmatpush1.msra.mxu0 %v2314
    %2374 = vmatprep.subr.mxu0 0.0
    %2375 = vmatpush1.msra.mxu0 %v2315
    %2376 = vmatprep.subr.mxu0 0.0
    %2377 = vmatpush1.msra.mxu0 %v2316
    %2378 = vmatprep.subr.mxu0 0.0
    %2379 = vmatpush1.msra.mxu0 %v2317
    %2380 = vmatprep.subr.mxu0 0.0
    %2381 = vmatpush1.msra.mxu0 %v2318
    %2382 = vmatprep.subr.mxu0 0.0
    %2383 = vmatpush1.msra.mxu0 %v2319
    %2384 = vmatprep.subr.mxu0 0.0
    %2385 = vmatpush1.msra.mxu0 %v2320
    %2386 = vmatprep.subr.mxu0 0.0
    %2387 = vmatpush1.msra.mxu0 %v2321
    %2388 = vmatprep.subr.mxu0 0.0
    %2389 = vmatpush1.msra.mxu0 %v2322
    %2390 = vmatprep.subr.mxu0 0.0
    %2391 = vmatpush1.msra.mxu0 %v2323
    %2392 = vmatprep.subr.mxu0 0.0
    %2393 = vmatpush1.msra.mxu0 %v2324
    %2394 = vmatprep.subr.mxu0 0.0
    %2395 = vmatpush1.msra.mxu0 %v2325
    %2396 = vmatprep.mubr.f32.mxu0 %v2329
    %2397 = vmatmul.mubr.f32.gmra.mrb[0].mxu0 %v2328
    %v2398 = vpop.f32.mrb[0].mxu0
    %v2399 = vadd.f32 0.0, %v2398
    %v2400 = vpop.f32.mrb[0].mxu0
    %2401 = vdwg.mxu0
    %v2402 = vadd.f32 %v2293, %v2399
    %v2403 = vld [vmem:[%s958] sm:$0xff]
    %v2404 = vld [vmem:[%s958 + $0x8] sm:$0xff]
    %v2405 = vld [vmem:[%s958 + $0x10] sm:$0xff]
    %v2406 = vld [vmem:[%s958 + $0x18] sm:$0xff]
    %v2407 = vld [vmem:[%s958 + $0x20] sm:$0xff]
    %v2408 = vld [vmem:[%s958 + $0x28] sm:$0xff]
    %v2409 = vld [vmem:[%s958 + $0x30] sm:$0xff]
    %v2410 = vld [vmem:[%s958 + $0x38] sm:$0xff]
    %v2411 = vld [vmem:[%s958 + $0x40] sm:$0xff]
    %v2412 = vld [vmem:[%s958 + $0x48] sm:$0xff]
    %v2413 = vld [vmem:[%s958 + $0x50] sm:$0xff]
    %v2414 = vld [vmem:[%s958 + $0x58] sm:$0xff]
    %v2415 = vld [vmem:[%s958 + $0x60] sm:$0xff]
    %v2416 = vld [vmem:[%s958 + $0x68] sm:$0xff]
    %v2417 = vld [vmem:[%s958 + $0x70] sm:$0xff]
    %v2418 = vld [vmem:[%s958 + $0x78] sm:$0xff]
    %v2419 = vld [vmem:[%s958 + $0x80] sm:$0xff]
    %v2420 = vld [vmem:[%s958 + $0x88] sm:$0xff]
    %v2421 = vld [vmem:[%s958 + $0x90] sm:$0xff]
    %v2422 = vld [vmem:[%s958 + $0x98] sm:$0xff]
    %v2423 = vld [vmem:[%s958 + $0xa0] sm:$0xff]
    %v2424 = vld [vmem:[%s958 + $0xa8] sm:$0xff]
    %v2425 = vld [vmem:[%s958 + $0xb0] sm:$0xff]
    %v2426 = vld [vmem:[%s958 + $0xb8] sm:$0xff]
    %v2427 = vld [vmem:[%s958 + $0xc0] sm:$0xff]
    %v2428 = vld [vmem:[%s958 + $0xc8] sm:$0xff]
    %v2429 = vld [vmem:[%s958 + $0xd0] sm:$0xff]
    %v2430 = vld [vmem:[%s958 + $0xd8] sm:$0xff]
    %v2431 = vld [vmem:[%s958 + $0xe0] sm:$0xff]
    %v2432 = vld [vmem:[%s958 + $0xe8] sm:$0xff]
    %v2433 = vld [vmem:[%s958 + $0xf0] sm:$0xff]
    %v2434 = vld [vmem:[%s958 + $0xf8] sm:$0xff]
    %v2435 = vrot.slane %v2188, 2
    %v2436 = vrot.slane %v2189, 2
    %2439 = vmatprep.subr.mxu0 0.0
    %2440 = vmatpush1.msra.mxu0 %v2403
    %2441 = vmatprep.subr.mxu0 0.0
    %2442 = vmatpush1.msra.mxu0 %v2404
    %2443 = vmatprep.subr.mxu0 0.0
    %2444 = vmatpush1.msra.mxu0 %v2405
    %2445 = vmatprep.subr.mxu0 0.0
    %2446 = vmatpush1.msra.mxu0 %v2406
    %2447 = vmatprep.subr.mxu0 0.0
    %2448 = vmatpush1.msra.mxu0 %v2407
    %2449 = vmatprep.subr.mxu0 0.0
    %2450 = vmatpush1.msra.mxu0 %v2408
    %2451 = vmatprep.subr.mxu0 0.0
    %2452 = vmatpush1.msra.mxu0 %v2409
    %2453 = vmatprep.subr.mxu0 0.0
    %2454 = vmatpush1.msra.mxu0 %v2410
    %2455 = vmatprep.subr.mxu0 0.0
    %2456 = vmatpush1.msra.mxu0 %v2411
    %2457 = vmatprep.subr.mxu0 0.0
    %2458 = vmatpush1.msra.mxu0 %v2412
    %2459 = vmatprep.subr.mxu0 0.0
    %2460 = vmatpush1.msra.mxu0 %v2413
    %2461 = vmatprep.subr.mxu0 0.0
    %2462 = vmatpush1.msra.mxu0 %v2414
    %2463 = vmatprep.subr.mxu0 0.0
    %2464 = vmatpush1.msra.mxu0 %v2415
    %2465 = vmatprep.subr.mxu0 0.0
    %2466 = vmatpush1.msra.mxu0 %v2416
    %2467 = vmatprep.subr.mxu0 0.0
    %2468 = vmatpush1.msra.mxu0 %v2417
    %2469 = vmatprep.subr.mxu0 0.0
    %2470 = vmatpush1.msra.mxu0 %v2418
    %2471 = vmatprep.subr.mxu0 0.0
    %2472 = vmatpush1.msra.mxu0 %v2419
    %2473 = vmatprep.subr.mxu0 0.0
    %2474 = vmatpush1.msra.mxu0 %v2420
    %2475 = vmatprep.subr.mxu0 0.0
    %2476 = vmatpush1.msra.mxu0 %v2421
    %2477 = vmatprep.subr.mxu0 0.0
    %2478 = vmatpush1.msra.mxu0 %v2422
    %2479 = vmatprep.subr.mxu0 0.0
    %2480 = vmatpush1.msra.mxu0 %v2423
    %2481 = vmatprep.subr.mxu0 0.0
    %2482 = vmatpush1.msra.mxu0 %v2424
    %2483 = vmatprep.subr.mxu0 0.0
    %2484 = vmatpush1.msra.mxu0 %v2425
    %2485 = vmatprep.subr.mxu0 0.0
    %2486 = vmatpush1.msra.mxu0 %v2426
    %2487 = vmatprep.subr.mxu0 0.0
    %2488 = vmatpush1.msra.mxu0 %v2427
    %2489 = vmatprep.subr.mxu0 0.0
    %2490 = vmatpush1.msra.mxu0 %v2428
    %2491 = vmatprep.subr.mxu0 0.0
    %2492 = vmatpush1.msra.mxu0 %v2429
    %2493 = vmatprep.subr.mxu0 0.0
    %2494 = vmatpush1.msra.mxu0 %v2430
    %2495 = vmatprep.subr.mxu0 0.0
    %2496 = vmatpush1.msra.mxu0 %v2431
    %2497 = vmatprep.subr.mxu0 0.0
    %2498 = vmatpush1.msra.mxu0 %v2432
    %2499 = vmatprep.subr.mxu0 0.0
    %2500 = vmatpush1.msra.mxu0 %v2433
    %2501 = vmatprep.subr.mxu0 0.0
    %2502 = vmatpush1.msra.mxu0 %v2434
    %2503 = vmatprep.mubr.f32.mxu0 %v2436
    %2504 = vmatmul.mubr.f32.gmra.mrb[0].mxu0 %v2435
    %v2505 = vpop.f32.mrb[0].mxu0
    %v2506 = vadd.f32 0.0, %v2505
    %v2507 = vpop.f32.mrb[0].mxu0
    %2508 = vdwg.mxu0
    %v2509 = vadd.f32 %v2402, %v2506
    %v2510 = vld [vmem:[%s1066] sm:$0xff]
    %v2511 = vld [vmem:[%s1066 + $0x8] sm:$0xff]
    %v2512 = vld [vmem:[%s1066 + $0x10] sm:$0xff]
    %v2513 = vld [vmem:[%s1066 + $0x18] sm:$0xff]
    %v2514 = vld [vmem:[%s1066 + $0x20] sm:$0xff]
    %v2515 = vld [vmem:[%s1066 + $0x28] sm:$0xff]
    %v2516 = vld [vmem:[%s1066 + $0x30] sm:$0xff]
    %v2517 = vld [vmem:[%s1066 + $0x38] sm:$0xff]
    %v2518 = vld [vmem:[%s1066 + $0x40] sm:$0xff]
    %v2519 = vld [vmem:[%s1066 + $0x48] sm:$0xff]
    %v2520 = vld [vmem:[%s1066 + $0x50] sm:$0xff]
    %v2521 = vld [vmem:[%s1066 + $0x58] sm:$0xff]
    %v2522 = vld [vmem:[%s1066 + $0x60] sm:$0xff]
    %v2523 = vld [vmem:[%s1066 + $0x68] sm:$0xff]
    %v2524 = vld [vmem:[%s1066 + $0x70] sm:$0xff]
    %v2525 = vld [vmem:[%s1066 + $0x78] sm:$0xff]
    %v2526 = vld [vmem:[%s1066 + $0x80] sm:$0xff]
    %v2527 = vld [vmem:[%s1066 + $0x88] sm:$0xff]
    %v2528 = vld [vmem:[%s1066 + $0x90] sm:$0xff]
    %v2529 = vld [vmem:[%s1066 + $0x98] sm:$0xff]
    %v2530 = vld [vmem:[%s1066 + $0xa0] sm:$0xff]
    %v2531 = vld [vmem:[%s1066 + $0xa8] sm:$0xff]
    %v2532 = vld [vmem:[%s1066 + $0xb0] sm:$0xff]
    %v2533 = vld [vmem:[%s1066 + $0xb8] sm:$0xff]
    %v2534 = vld [vmem:[%s1066 + $0xc0] sm:$0xff]
    %v2535 = vld [vmem:[%s1066 + $0xc8] sm:$0xff]
    %v2536 = vld [vmem:[%s1066 + $0xd0] sm:$0xff]
    %v2537 = vld [vmem:[%s1066 + $0xd8] sm:$0xff]
    %v2538 = vld [vmem:[%s1066 + $0xe0] sm:$0xff]
    %v2539 = vld [vmem:[%s1066 + $0xe8] sm:$0xff]
    %v2540 = vld [vmem:[%s1066 + $0xf0] sm:$0xff]
    %v2541 = vld [vmem:[%s1066 + $0xf8] sm:$0xff]
    %v2542 = vrot.slane %v2188, 3
    %v2543 = vrot.slane %v2189, 3
    %2546 = vmatprep.subr.mxu0 0.0
    %2547 = vmatpush1.msra.mxu0 %v2510
    %2548 = vmatprep.subr.mxu0 0.0
    %2549 = vmatpush1.msra.mxu0 %v2511
    %2550 = vmatprep.subr.mxu0 0.0
    %2551 = vmatpush1.msra.mxu0 %v2512
    %2552 = vmatprep.subr.mxu0 0.0
    %2553 = vmatpush1.msra.mxu0 %v2513
    %2554 = vmatprep.subr.mxu0 0.0
    %2555 = vmatpush1.msra.mxu0 %v2514
    %2556 = vmatprep.subr.mxu0 0.0
    %2557 = vmatpush1.msra.mxu0 %v2515
    %2558 = vmatprep.subr.mxu0 0.0
    %2559 = vmatpush1.msra.mxu0 %v2516
    %2560 = vmatprep.subr.mxu0 0.0
    %2561 = vmatpush1.msra.mxu0 %v2517
    %2562 = vmatprep.subr.mxu0 0.0
    %2563 = vmatpush1.msra.mxu0 %v2518
    %2564 = vmatprep.subr.mxu0 0.0
    %2565 = vmatpush1.msra.mxu0 %v2519
    %2566 = vmatprep.subr.mxu0 0.0
    %2567 = vmatpush1.msra.mxu0 %v2520
    %2568 = vmatprep.subr.mxu0 0.0
    %2569 = vmatpush1.msra.mxu0 %v2521
    %2570 = vmatprep.subr.mxu0 0.0
    %2571 = vmatpush1.msra.mxu0 %v2522
    %2572 = vmatprep.subr.mxu0 0.0
    %2573 = vmatpush1.msra.mxu0 %v2523
    %2574 = vmatprep.subr.mxu0 0.0
    %2575 = vmatpush1.msra.mxu0 %v2524
    %2576 = vmatprep.subr.mxu0 0.0
    %2577 = vmatpush1.msra.mxu0 %v2525
    %2578 = vmatprep.subr.mxu0 0.0
    %2579 = vmatpush1.msra.mxu0 %v2526
    %2580 = vmatprep.subr.mxu0 0.0
    %2581 = vmatpush1.msra.mxu0 %v2527
    %2582 = vmatprep.subr.mxu0 0.0
    %2583 = vmatpush1.msra.mxu0 %v2528
    %2584 = vmatprep.subr.mxu0 0.0
    %2585 = vmatpush1.msra.mxu0 %v2529
    %2586 = vmatprep.subr.mxu0 0.0
    %2587 = vmatpush1.msra.mxu0 %v2530
    %2588 = vmatprep.subr.mxu0 0.0
    %2589 = vmatpush1.msra.mxu0 %v2531
    %2590 = vmatprep.subr.mxu0 0.0
    %2591 = vmatpush1.msra.mxu0 %v2532
    %2592 = vmatprep.subr.mxu0 0.0
    %2593 = vmatpush1.msra.mxu0 %v2533
    %2594 = vmatprep.subr.mxu0 0.0
    %2595 = vmatpush1.msra.mxu0 %v2534
    %2596 = vmatprep.subr.mxu0 0.0
    %2597 = vmatpush1.msra.mxu0 %v2535
    %2598 = vmatprep.subr.mxu0 0.0
    %2599 = vmatpush1.msra.mxu0 %v2536
    %2600 = vmatprep.subr.mxu0 0.0
    %2601 = vmatpush1.msra.mxu0 %v2537
    %2602 = vmatprep.subr.mxu0 0.0
    %2603 = vmatpush1.msra.mxu0 %v2538
    %2604 = vmatprep.subr.mxu0 0.0
    %2605 = vmatpush1.msra.mxu0 %v2539
    %2606 = vmatprep.subr.mxu0 0.0
    %2607 = vmatpush1.msra.mxu0 %v2540
    %2608 = vmatprep.subr.mxu0 0.0
    %2609 = vmatpush1.msra.mxu0 %v2541
    %2610 = vmatprep.mubr.f32.mxu0 %v2543
    %2611 = vmatmul.mubr.f32.gmra.mrb[0].mxu0 %v2542
    %v2612 = vpop.f32.mrb[0].mxu0
    %v2613 = vadd.f32 0.0, %v2612
    %v2614 = vpop.f32.mrb[0].mxu0
    %2615 = vdwg.mxu0
    %v2616 = vadd.f32 %v2509, %v2613
    %v2617 = vmax.f32 %v2616, 0.0
    %s2618 = sld [smem:[#allocation2 + $0x80]]
    %v2619 = vld [vmem:[%s10] sm:$0xff]
    %v2620 = vld [vmem:[%s10 + $0x8] sm:$0xff]
    %v2621 = vld [vmem:[%s10 + $0x10] sm:$0xff]
    %v2622 = vld [vmem:[%s10 + $0x18] sm:$0xff]
    %v2623 = vld [vmem:[%s10 + $0x20] sm:$0xff]
    %v2624 = vld [vmem:[%s10 + $0x28] sm:$0xff]
    %v2625 = vld [vmem:[%s10 + $0x30] sm:$0xff]
    %v2626 = vld [vmem:[%s10 + $0x38] sm:$0xff]
    %v2627 = vld [vmem:[%s10 + $0x40] sm:$0xff]
    %v2628 = vld [vmem:[%s10 + $0x48] sm:$0xff]
    %v2629 = vld [vmem:[%s10 + $0x50] sm:$0xff]
    %v2630 = vld [vmem:[%s10 + $0x58] sm:$0xff]
    %v2631 = vld [vmem:[%s10 + $0x60] sm:$0xff]
    %v2632 = vld [vmem:[%s10 + $0x68] sm:$0xff]
    %v2633 = vld [vmem:[%s10 + $0x70] sm:$0xff]
    %v2634 = vld [vmem:[%s10 + $0x78] sm:$0xff]
    %v2635 = vld [vmem:[%s10 + $0x80] sm:$0xff]
    %v2636 = vld [vmem:[%s10 + $0x88] sm:$0xff]
    %v2637 = vld [vmem:[%s10 + $0x90] sm:$0xff]
    %v2638 = vld [vmem:[%s10 + $0x98] sm:$0xff]
    %v2639 = vld [vmem:[%s10 + $0xa0] sm:$0xff]
    %v2640 = vld [vmem:[%s10 + $0xa8] sm:$0xff]
    %v2641 = vld [vmem:[%s10 + $0xb0] sm:$0xff]
    %v2642 = vld [vmem:[%s10 + $0xb8] sm:$0xff]
    %v2643 = vld [vmem:[%s10 + $0xc0] sm:$0xff]
    %v2644 = vld [vmem:[%s10 + $0xc8] sm:$0xff]
    %v2645 = vld [vmem:[%s10 + $0xd0] sm:$0xff]
    %v2646 = vld [vmem:[%s10 + $0xd8] sm:$0xff]
    %v2647 = vld [vmem:[%s10 + $0xe0] sm:$0xff]
    %v2648 = vld [vmem:[%s10 + $0xe8] sm:$0xff]
    %v2649 = vld [vmem:[%s10 + $0xf0] sm:$0xff]
    %v2650 = vld [vmem:[%s10 + $0xf8] sm:$0xff]
    %v2651 = vld [vmem:[%s11] sm:$0x3]
    %v2652 = vstv %s2618
    %v2653 = vmul.f32 %v2652, %v2651
    %v2655 = vlaneseq
    %v2656 = vshrl.u32 %v2655, 7
    %v2657 = vsub.s32 0, %v2656
    %v2658 = vrot.slane %v2653, %v2657
    %v2659 = vlaneseq
    %v2660 = vshrl.u32 %v2659, 7
    %v2661 = vsub.s32 1, %v2660
    %v2662 = vrot.slane %v2653, %v2661
    %2665 = vmatprep.subr.mxu0 %v2620
    %2666 = vmatpush1.msra.mxu0 %v2619
    %2667 = vmatprep.subr.mxu0 %v2622
    %2668 = vmatpush1.msra.mxu0 %v2621
    %2669 = vmatprep.subr.mxu0 %v2624
    %2670 = vmatpush1.msra.mxu0 %v2623
    %2671 = vmatprep.subr.mxu0 %v2626
    %2672 = vmatpush1.msra.mxu0 %v2625
    %2673 = vmatprep.subr.mxu0 %v2628
    %2674 = vmatpush1.msra.mxu0 %v2627
    %2675 = vmatprep.subr.mxu0 %v2630
    %2676 = vmatpush1.msra.mxu0 %v2629
    %2677 = vmatprep.subr.mxu0 %v2632
    %2678 = vmatpush1.msra.mxu0 %v2631
    %2679 = vmatprep.subr.mxu0 %v2634
    %2680 = vmatpush1.msra.mxu0 %v2633
    %2681 = vmatprep.subr.mxu0 %v2636
    %2682 = vmatpush1.msra.mxu0 %v2635
    %2683 = vmatprep.subr.mxu0 %v2638
    %2684 = vmatpush1.msra.mxu0 %v2637
    %2685 = vmatprep.subr.mxu0 %v2640
    %2686 = vmatpush1.msra.mxu0 %v2639
    %2687 = vmatprep.subr.mxu0 %v2642
    %2688 = vmatpush1.msra.mxu0 %v2641
    %2689 = vmatprep.subr.mxu0 %v2644
    %2690 = vmatpush1.msra.mxu0 %v2643
    %2691 = vmatprep.subr.mxu0 %v2646
    %2692 = vmatpush1.msra.mxu0 %v2645
    %2693 = vmatprep.subr.mxu0 %v2648
    %2694 = vmatpush1.msra.mxu0 %v2647
    %2695 = vmatprep.subr.mxu0 %v2650
    %2696 = vmatpush1.msra.mxu0 %v2649
    %2697 = vmatprep.subr.mxu0 0.0
    %2698 = vmatpush1.msra.mxu0 0.0
    %2699 = vmatprep.subr.mxu0 0.0
    %2700 = vmatpush1.msra.mxu0 0.0
    %2701 = vmatprep.subr.mxu0 0.0
    %2702 = vmatpush1.msra.mxu0 0.0
    %2703 = vmatprep.subr.mxu0 0.0
    %2704 = vmatpush1.msra.mxu0 0.0
    %2705 = vmatprep.subr.mxu0 0.0
    %2706 = vmatpush1.msra.mxu0 0.0
    %2707 = vmatprep.subr.mxu0 0.0
    %2708 = vmatpush1.msra.mxu0 0.0
    %2709 = vmatprep.subr.mxu0 0.0
    %2710 = vmatpush1.msra.mxu0 0.0
    %2711 = vmatprep.subr.mxu0 0.0
    %2712 = vmatpush1.msra.mxu0 0.0
    %2713 = vmatprep.subr.mxu0 0.0
    %2714 = vmatpush1.msra.mxu0 0.0
    %2715 = vmatprep.subr.mxu0 0.0
    %2716 = vmatpush1.msra.mxu0 0.0
    %2717 = vmatprep.subr.mxu0 0.0
    %2718 = vmatpush1.msra.mxu0 0.0
    %2719 = vmatprep.subr.mxu0 0.0
    %2720 = vmatpush1.msra.mxu0 0.0
    %2721 = vmatprep.subr.mxu0 0.0
    %2722 = vmatpush1.msra.mxu0 0.0
    %2723 = vmatprep.subr.mxu0 0.0
    %2724 = vmatpush1.msra.mxu0 0.0
    %2725 = vmatprep.subr.mxu0 0.0
    %2726 = vmatpush1.msra.mxu0 0.0
    %2727 = vmatprep.subr.mxu0 0.0
    %2728 = vmatpush1.msra.mxu0 0.0
    %2729 = vmatprep.mubr.f32.mxu0 0.0
    %2730 = vmatmul.mubr.f32.gmra.mrb[0].mxu0 %v2617
    %v2731 = vpop.f32.mrb[0].mxu0
    %v2732 = vadd.f32 %v2658, %v2731
    %v2733 = vpop.f32.mrb[0].mxu0
    %v2734 = vadd.f32 %v2662, %v2733
    %2735 = vdwg.mxu0
    %v2736 = vld [vmem:[%s12] sm:$0x3]
    %v2738 = vlaneseq
    %v2739 = vshrl.u32 %v2738, 7
    %v2740 = vsub.s32 0, %v2739
    %v2741 = vrot.slane %v2736, %v2740
    %v2742 = vlaneseq
    %v2743 = vshrl.u32 %v2742, 7
    %v2744 = vsub.s32 1, %v2743
    %v2745 = vrot.slane %v2736, %v2744
    %v2748 = vadd.f32 %v2732, %v2741
    %v2749 = vadd.f32 %v2734, %v2745
    %v2750 = vmax.f32 %v2748, 0.0
    %v2751 = vmax.f32 %v2749, 0.0
    %v2752 = vld [vmem:[#allocation6] sm:$0xff]
    %v2753 = vld [vmem:[#allocation6 + $0x8] sm:$0xff]
    %v2754 = vld [vmem:[#allocation6 + $0x10] sm:$0xff]
    %v2755 = vld [vmem:[#allocation6 + $0x18] sm:$0xff]
    %v2756 = vld [vmem:[#allocation6 + $0x20] sm:$0xff]
    %v2757 = vld [vmem:[#allocation6 + $0x28] sm:$0xff]
    %v2758 = vld [vmem:[#allocation6 + $0x30] sm:$0xff]
    %v2759 = vld [vmem:[#allocation6 + $0x38] sm:$0xff]
    %v2760 = vld [vmem:[#allocation6 + $0x40] sm:$0xff]
    %v2761 = vld [vmem:[#allocation6 + $0x48] sm:$0xff]
    %v2762 = vld [vmem:[#allocation6 + $0x50] sm:$0xff]
    %v2763 = vld [vmem:[#allocation6 + $0x58] sm:$0xff]
    %v2764 = vld [vmem:[#allocation6 + $0x60] sm:$0xff]
    %v2765 = vld [vmem:[#allocation6 + $0x68] sm:$0xff]
    %v2766 = vld [vmem:[#allocation6 + $0x70] sm:$0xff]
    %v2767 = vld [vmem:[#allocation6 + $0x78] sm:$0xff]
    %v2768 = vld [vmem:[#allocation6 + $0x80] sm:$0xff]
    %v2769 = vld [vmem:[#allocation6 + $0x88] sm:$0xff]
    %v2770 = vld [vmem:[#allocation6 + $0x90] sm:$0xff]
    %v2771 = vld [vmem:[#allocation6 + $0x98] sm:$0xff]
    %v2772 = vld [vmem:[#allocation6 + $0xa0] sm:$0xff]
    %v2773 = vld [vmem:[#allocation6 + $0xa8] sm:$0xff]
    %v2774 = vld [vmem:[#allocation6 + $0xb0] sm:$0xff]
    %v2775 = vld [vmem:[#allocation6 + $0xb8] sm:$0xff]
    %v2776 = vld [vmem:[#allocation6 + $0xc0] sm:$0xff]
    %v2777 = vld [vmem:[#allocation6 + $0xc8] sm:$0xff]
    %v2778 = vld [vmem:[#allocation6 + $0xd0] sm:$0xff]
    %v2779 = vld [vmem:[#allocation6 + $0xd8] sm:$0xff]
    %v2780 = vld [vmem:[#allocation6 + $0xe0] sm:$0xff]
    %v2781 = vld [vmem:[#allocation6 + $0xe8] sm:$0xff]
    %v2782 = vld [vmem:[#allocation6 + $0xf0] sm:$0xff]
    %v2783 = vld [vmem:[#allocation6 + $0xf8] sm:$0xff]
    %v2784 = vld [vmem:[#allocation6 + $0x100] sm:$0xff]
    %v2785 = vld [vmem:[#allocation6 + $0x108] sm:$0xff]
    %v2786 = vld [vmem:[#allocation6 + $0x110] sm:$0xff]
    %v2787 = vld [vmem:[#allocation6 + $0x118] sm:$0xff]
    %v2788 = vld [vmem:[#allocation6 + $0x120] sm:$0xff]
    %v2789 = vld [vmem:[#allocation6 + $0x128] sm:$0xff]
    %v2790 = vld [vmem:[#allocation6 + $0x130] sm:$0xff]
    %v2791 = vld [vmem:[#allocation6 + $0x138] sm:$0xff]
    %v2792 = vld [vmem:[#allocation6 + $0x140] sm:$0xff]
    %v2793 = vld [vmem:[#allocation6 + $0x148] sm:$0xff]
    %v2794 = vld [vmem:[#allocation6 + $0x150] sm:$0xff]
    %v2795 = vld [vmem:[#allocation6 + $0x158] sm:$0xff]
    %v2796 = vld [vmem:[#allocation6 + $0x160] sm:$0xff]
    %v2797 = vld [vmem:[#allocation6 + $0x168] sm:$0xff]
    %v2798 = vld [vmem:[#allocation6 + $0x170] sm:$0xff]
    %v2799 = vld [vmem:[#allocation6 + $0x178] sm:$0xff]
    %v2800 = vld [vmem:[#allocation6 + $0x180] sm:$0xff]
    %v2801 = vld [vmem:[#allocation6 + $0x188] sm:$0xff]
    %v2802 = vld [vmem:[#allocation6 + $0x190] sm:$0xff]
    %v2803 = vld [vmem:[#allocation6 + $0x198] sm:$0xff]
    %v2804 = vld [vmem:[#allocation6 + $0x1a0] sm:$0xff]
    %v2805 = vld [vmem:[#allocation6 + $0x1a8] sm:$0xff]
    %v2806 = vld [vmem:[#allocation6 + $0x1b0] sm:$0xff]
    %v2807 = vld [vmem:[#allocation6 + $0x1b8] sm:$0xff]
    %v2808 = vld [vmem:[#allocation6 + $0x1c0] sm:$0xff]
    %v2809 = vld [vmem:[#allocation6 + $0x1c8] sm:$0xff]
    %v2810 = vld [vmem:[#allocation6 + $0x1d0] sm:$0xff]
    %v2811 = vld [vmem:[#allocation6 + $0x1d8] sm:$0xff]
    %v2812 = vld [vmem:[#allocation6 + $0x1e0] sm:$0xff]
    %v2813 = vld [vmem:[#allocation6 + $0x1e8] sm:$0xff]
    %v2814 = vld [vmem:[#allocation6 + $0x1f0] sm:$0xff]
    %v2815 = vld [vmem:[#allocation6 + $0x1f8] sm:$0xff]
    %v2816 = vld [vmem:[%s14] sm:$0x3]
    %v2818 = vlaneseq
    %v2819 = vshrl.u32 %v2818, 7
    %v2820 = vsub.s32 0, %v2819
    %v2821 = vrot.slane %v2816, %v2820
    %v2822 = vlaneseq
    %v2823 = vshrl.u32 %v2822, 7
    %v2824 = vsub.s32 1, %v2823
    %v2825 = vrot.slane %v2816, %v2824
    %2828 = vmatprep.subr.mxu0 %v2753
    %2829 = vmatpush1.msra.mxu0 %v2752
    %2830 = vmatprep.subr.mxu0 %v2755
    %2831 = vmatpush1.msra.mxu0 %v2754
    %2832 = vmatprep.subr.mxu0 %v2757
    %2833 = vmatpush1.msra.mxu0 %v2756
    %2834 = vmatprep.subr.mxu0 %v2759
    %2835 = vmatpush1.msra.mxu0 %v2758
    %2836 = vmatprep.subr.mxu0 %v2761
    %2837 = vmatpush1.msra.mxu0 %v2760
    %2838 = vmatprep.subr.mxu0 %v2763
    %2839 = vmatpush1.msra.mxu0 %v2762
    %2840 = vmatprep.subr.mxu0 %v2765
    %2841 = vmatpush1.msra.mxu0 %v2764
    %2842 = vmatprep.subr.mxu0 %v2767
    %2843 = vmatpush1.msra.mxu0 %v2766
    %2844 = vmatprep.subr.mxu0 %v2769
    %2845 = vmatpush1.msra.mxu0 %v2768
    %2846 = vmatprep.subr.mxu0 %v2771
    %2847 = vmatpush1.msra.mxu0 %v2770
    %2848 = vmatprep.subr.mxu0 %v2773
    %2849 = vmatpush1.msra.mxu0 %v2772
    %2850 = vmatprep.subr.mxu0 %v2775
    %2851 = vmatpush1.msra.mxu0 %v2774
    %2852 = vmatprep.subr.mxu0 %v2777
    %2853 = vmatpush1.msra.mxu0 %v2776
    %2854 = vmatprep.subr.mxu0 %v2779
    %2855 = vmatpush1.msra.mxu0 %v2778
    %2856 = vmatprep.subr.mxu0 %v2781
    %2857 = vmatpush1.msra.mxu0 %v2780
    %2858 = vmatprep.subr.mxu0 %v2783
    %2859 = vmatpush1.msra.mxu0 %v2782
    %2860 = vmatprep.subr.mxu0 %v2785
    %2861 = vmatpush1.msra.mxu0 %v2784
    %2862 = vmatprep.subr.mxu0 %v2787
    %2863 = vmatpush1.msra.mxu0 %v2786
    %2864 = vmatprep.subr.mxu0 %v2789
    %2865 = vmatpush1.msra.mxu0 %v2788
    %2866 = vmatprep.subr.mxu0 %v2791
    %2867 = vmatpush1.msra.mxu0 %v2790
    %2868 = vmatprep.subr.mxu0 %v2793
    %2869 = vmatpush1.msra.mxu0 %v2792
    %2870 = vmatprep.subr.mxu0 %v2795
    %2871 = vmatpush1.msra.mxu0 %v2794
    %2872 = vmatprep.subr.mxu0 %v2797
    %2873 = vmatpush1.msra.mxu0 %v2796
    %2874 = vmatprep.subr.mxu0 %v2799
    %2875 = vmatpush1.msra.mxu0 %v2798
    %2876 = vmatprep.subr.mxu0 %v2801
    %2877 = vmatpush1.msra.mxu0 %v2800
    %2878 = vmatprep.subr.mxu0 %v2803
    %2879 = vmatpush1.msra.mxu0 %v2802
    %2880 = vmatprep.subr.mxu0 %v2805
    %2881 = vmatpush1.msra.mxu0 %v2804
    %2882 = vmatprep.subr.mxu0 %v2807
    %2883 = vmatpush1.msra.mxu0 %v2806
    %2884 = vmatprep.subr.mxu0 %v2809
    %2885 = vmatpush1.msra.mxu0 %v2808
    %2886 = vmatprep.subr.mxu0 %v2811
    %2887 = vmatpush1.msra.mxu0 %v2810
    %2888 = vmatprep.subr.mxu0 %v2813
    %2889 = vmatpush1.msra.mxu0 %v2812
    %2890 = vmatprep.subr.mxu0 %v2815
    %2891 = vmatpush1.msra.mxu0 %v2814
    %2892 = vmatprep.mubr.f32.mxu0 %v2751
    %2893 = vmatmul.mubr.f32.gmra.mrb[0].mxu0 %v2750
    %v2894 = vpop.f32.mrb[0].mxu0
    %v2895 = vadd.f32 %v2821, %v2894
    %v2896 = vpop.f32.mrb[0].mxu0
    %v2897 = vadd.f32 %v2825, %v2896
    %2898 = vdwg.mxu0
    %v2899 = vmax.f32 %v2895, 0.0
    %v2900 = vmax.f32 %v2897, 0.0
    %v2901 = vld [vmem:[#allocation8] sm:$0xff]
    %v2902 = vld [vmem:[#allocation8 + $0x8] sm:$0xff]
    %v2903 = vld [vmem:[#allocation8 + $0x10] sm:$0xff]
    %v2904 = vld [vmem:[#allocation8 + $0x18] sm:$0xff]
    %v2905 = vld [vmem:[#allocation8 + $0x20] sm:$0xff]
    %v2906 = vld [vmem:[#allocation8 + $0x28] sm:$0xff]
    %v2907 = vld [vmem:[#allocation8 + $0x30] sm:$0xff]
    %v2908 = vld [vmem:[#allocation8 + $0x38] sm:$0xff]
    %v2909 = vld [vmem:[#allocation8 + $0x40] sm:$0xff]
    %v2910 = vld [vmem:[#allocation8 + $0x48] sm:$0xff]
    %v2911 = vld [vmem:[#allocation8 + $0x50] sm:$0xff]
    %v2912 = vld [vmem:[#allocation8 + $0x58] sm:$0xff]
    %v2913 = vld [vmem:[#allocation8 + $0x60] sm:$0xff]
    %v2914 = vld [vmem:[#allocation8 + $0x68] sm:$0xff]
    %v2915 = vld [vmem:[#allocation8 + $0x70] sm:$0xff]
    %v2916 = vld [vmem:[#allocation8 + $0x78] sm:$0xff]
    %v2917 = vld [vmem:[#allocation8 + $0x80] sm:$0xff]
    %v2918 = vld [vmem:[#allocation8 + $0x88] sm:$0xff]
    %v2919 = vld [vmem:[#allocation8 + $0x90] sm:$0xff]
    %v2920 = vld [vmem:[#allocation8 + $0x98] sm:$0xff]
    %v2921 = vld [vmem:[#allocation8 + $0xa0] sm:$0xff]
    %v2922 = vld [vmem:[#allocation8 + $0xa8] sm:$0xff]
    %v2923 = vld [vmem:[#allocation8 + $0xb0] sm:$0xff]
    %v2924 = vld [vmem:[#allocation8 + $0xb8] sm:$0xff]
    %v2925 = vld [vmem:[#allocation8 + $0xc0] sm:$0xff]
    %v2926 = vld [vmem:[#allocation8 + $0xc8] sm:$0xff]
    %v2927 = vld [vmem:[#allocation8 + $0xd0] sm:$0xff]
    %v2928 = vld [vmem:[#allocation8 + $0xd8] sm:$0xff]
    %v2929 = vld [vmem:[#allocation8 + $0xe0] sm:$0xff]
    %v2930 = vld [vmem:[#allocation8 + $0xe8] sm:$0xff]
    %v2931 = vld [vmem:[#allocation8 + $0xf0] sm:$0xff]
    %v2932 = vld [vmem:[#allocation8 + $0xf8] sm:$0xff]
    %v2933 = vld [vmem:[%s16] sm:$0x1]
    %2934 = vmatprep.subr.mxu0 0.0
    %2935 = vmatpush1.msra.mxu0 %v2901
    %2936 = vmatprep.subr.mxu0 0.0
    %2937 = vmatpush1.msra.mxu0 %v2902
    %2938 = vmatprep.subr.mxu0 0.0
    %2939 = vmatpush1.msra.mxu0 %v2903
    %2940 = vmatprep.subr.mxu0 0.0
    %2941 = vmatpush1.msra.mxu0 %v2904
    %2942 = vmatprep.subr.mxu0 0.0
    %2943 = vmatpush1.msra.mxu0 %v2905
    %2944 = vmatprep.subr.mxu0 0.0
    %2945 = vmatpush1.msra.mxu0 %v2906
    %2946 = vmatprep.subr.mxu0 0.0
    %2947 = vmatpush1.msra.mxu0 %v2907
    %2948 = vmatprep.subr.mxu0 0.0
    %2949 = vmatpush1.msra.mxu0 %v2908
    %2950 = vmatprep.subr.mxu0 0.0
    %2951 = vmatpush1.msra.mxu0 %v2909
    %2952 = vmatprep.subr.mxu0 0.0
    %2953 = vmatpush1.msra.mxu0 %v2910
    %2954 = vmatprep.subr.mxu0 0.0
    %2955 = vmatpush1.msra.mxu0 %v2911
    %2956 = vmatprep.subr.mxu0 0.0
    %2957 = vmatpush1.msra.mxu0 %v2912
    %2958 = vmatprep.subr.mxu0 0.0
    %2959 = vmatpush1.msra.mxu0 %v2913
    %2960 = vmatprep.subr.mxu0 0.0
    %2961 = vmatpush1.msra.mxu0 %v2914
    %2962 = vmatprep.subr.mxu0 0.0
    %2963 = vmatpush1.msra.mxu0 %v2915
    %2964 = vmatprep.subr.mxu0 0.0
    %2965 = vmatpush1.msra.mxu0 %v2916
    %2966 = vmatprep.subr.mxu0 0.0
    %2967 = vmatpush1.msra.mxu0 %v2917
    %2968 = vmatprep.subr.mxu0 0.0
    %2969 = vmatpush1.msra.mxu0 %v2918
    %2970 = vmatprep.subr.mxu0 0.0
    %2971 = vmatpush1.msra.mxu0 %v2919
    %2972 = vmatprep.subr.mxu0 0.0
    %2973 = vmatpush1.msra.mxu0 %v2920
    %2974 = vmatprep.subr.mxu0 0.0
    %2975 = vmatpush1.msra.mxu0 %v2921
    %2976 = vmatprep.subr.mxu0 0.0
    %2977 = vmatpush1.msra.mxu0 %v2922
    %2978 = vmatprep.subr.mxu0 0.0
    %2979 = vmatpush1.msra.mxu0 %v2923
    %2980 = vmatprep.subr.mxu0 0.0
    %2981 = vmatpush1.msra.mxu0 %v2924
    %2982 = vmatprep.subr.mxu0 0.0
    %2983 = vmatpush1.msra.mxu0 %v2925
    %2984 = vmatprep.subr.mxu0 0.0
    %2985 = vmatpush1.msra.mxu0 %v2926
    %2986 = vmatprep.subr.mxu0 0.0
    %2987 = vmatpush1.msra.mxu0 %v2927
    %2988 = vmatprep.subr.mxu0 0.0
    %2989 = vmatpush1.msra.mxu0 %v2928
    %2990 = vmatprep.subr.mxu0 0.0
    %2991 = vmatpush1.msra.mxu0 %v2929
    %2992 = vmatprep.subr.mxu0 0.0
    %2993 = vmatpush1.msra.mxu0 %v2930
    %2994 = vmatprep.subr.mxu0 0.0
    %2995 = vmatpush1.msra.mxu0 %v2931
    %2996 = vmatprep.subr.mxu0 0.0
    %2997 = vmatpush1.msra.mxu0 %v2932
    %2998 = vmatprep.mubr.f32.mxu0 %v2900
    %2999 = vmatmul.mubr.f32.gmra.mrb[0].mxu0 %v2899
    %v3000 = vpop.f32.mrb[0].mxu0
    %v3001 = vadd.f32 %v2933, %v3000
    %v3002 = vpop.f32.mrb[0].mxu0
    %3003 = vdwg.mxu0
    %3004 = vst [vmem:[%s17 + $0x1] sm:$0x1] %v3001
    // Predicated region
    $region86: #{bootstrapped_dqn_forward.1} parent=1 // pred_check
      _
    $region87: #{bootstrapped_dqn_forward.1} parent=1 // pred_check_branch
      %3006 = sbr.rel (0) target = $region89
    $region88: #{bootstrapped_dqn_forward.1} parent=1 // pred_region
      _
    $region89: #{bootstrapped_dqn_forward.1} parent=1 // pred_fallthru
      _
    // Predicated region
    $region90: #{bootstrapped_dqn_forward.1} parent=1 // pred_check
      _
    $region91: #{bootstrapped_dqn_forward.1} parent=1 // pred_check_branch
      %3008 = sbr.rel (0) target = $region93
    $region92: #{bootstrapped_dqn_forward.1} parent=1 // pred_region
      _
    $region93: #{bootstrapped_dqn_forward.1} parent=1 // pred_fallthru
      _
    %3009 = vsyncpa [#allocation3], 1
    %3010 = vsyncpa [#allocation7], 1
    %3011 = vsyncpa [#allocation4], 1

</llo_original>
